<compile_context>
chip_gen: v7x
topology: tpu7x:2x2x1
jax: 0.10.0
libtpu: 0.0.40
codegen_flags: <defaults>
</compile_context>

<pallas_src>
import numpy as np
import jax
import jax.numpy as jnp
from jax import lax
from jax.experimental import pallas as pl
from jax.experimental.pallas import tpu as pltpu

CAP_VALUE = 10.0
# bf16 weights: native MXU path + half the weight DMA bytes (review item 3).
WEIGHT_DTYPE = jnp.bfloat16


def _round_up(n, m):
    return ((n + m - 1) // m) * m


def _square_relu_capped(z):
    r = jnp.maximum(z, 0.0)
    return jnp.minimum(r * r, CAP_VALUE)


def freenet_kernel(x_ref, w_ih_ref, b_ih_ref, w_hh_ref, b_hh_ref,
                   w_ho_ref, b_ho_ref, out_ref, h_ref):
    c = pl.program_id(1)               # layer-chunk index
    lc = w_hh_ref.shape[0]             # layers handled per grid step (static)

    # --- first chunk of each batch block: input_to_hidden + activation -> h scratch
    @pl.when(c == 0)
    def _():
        x = x_ref[...]
        w_ih = w_ih_ref[...]
        z0 = (jnp.dot(x.astype(w_ih.dtype), w_ih,
                      preferred_element_type=jnp.float32)
              + b_ih_ref[...])
        h_ref[...] = _square_relu_capped(z0)

    # --- lc hidden layers (zero-padded formulation of the ragged Linear stack)
    def layer_body(i, h):
        w = w_hh_ref[i]                          # [HD, HD], WEIGHT_DTYPE
        b = b_hh_ref[c * lc + i]                 # [1, HD], f32, VMEM-resident
        z = jnp.dot(h.astype(w.dtype), w,
                    preferred_element_type=jnp.float32) + b
        return h + _square_relu_capped(z)
    # TODO(synk): triangular K/N trimming (only rows 0..l / cols l+1.. are nonzero)
    # would cut ~2x weight bytes and up to ~6x MXU flops at large HD.

    h = lax.fori_loop(0, lc, layer_body, h_ref[...],
                      unroll=True if lc <= 64 else 8)
    h_ref[...] = h

    # --- last chunk: hidden_to_output straight from registers (lane-dense OD_pad)
    @pl.when(c == pl.num_programs(1) - 1)
    def _():
        w_ho = w_ho_ref[...]
        out = (jnp.dot(h.astype(w_ho.dtype), w_ho,
                       preferred_element_type=jnp.float32)
               + b_ho_ref[...])
        out_ref[...] = out.astype(out_ref.dtype)


def freenet_capped(x, params, *, batch_tile=256):
    w_ih_t, b_ih, w_hh_p, b_hh_p, w_ho_t, b_ho = params
    B, IN = x.shape
    HD = w_ih_t.shape[1]
    OD = w_ho_t.shape[1]
    n_layers = w_hh_p.shape[0]
    assert n_layers == HD - 1 and n_layers >= 1

    # ---- lane-dense feature padding (wrapper-side plumbing, exact zeros) ----
    IN_pad = _round_up(IN, 128)
    OD_pad = _round_up(OD, 128)
    B_pad = _round_up(B, 8)
    TB = min(_round_up(batch_tile, 8), B_pad)
    B_pad = _round_up(B_pad, TB)
    NB = B_pad // TB

    x_p = jnp.pad(x, ((0, B_pad - B), (0, IN_pad - IN)))
    w_ih_p = jnp.pad(w_ih_t, ((0, IN_pad - IN), (0, 0)))
    w_ho_p = jnp.pad(w_ho_t, ((0, 0), (0, OD_pad - OD)))
    b_ho_p = jnp.pad(b_ho, ((0, 0), (0, OD_pad - OD)))

    # ---- per-generation VMEM budget and layer-chunk size (review items 1, 2) ----
    wbytes = jnp.dtype(WEIGHT_DTYPE).itemsize
    try:
        vmem_cap = int(pltpu.get_tpu_info().vmem_capacity_bytes)
    except Exception:
        vmem_cap = 64 * 1024 * 1024            # conservative v7x fallback
    budget = max(16 * 1024 * 1024, int(vmem_cap * 0.75) - (8 << 20))

    per_layer = HD * HD * wbytes
    resident = (2 * ((IN_pad * HD + HD * OD_pad) * wbytes     # w_ih / w_ho (dbuf)
                     + (HD + OD_pad) * 4                      # b_ih / b_ho
                     + n_layers * HD * 4)                     # resident b_hh
                + TB * HD * 4)                                # h scratch
    streamed = 2 * TB * (IN_pad + OD_pad) * 4                 # x / out blocks (dbuf)
    avail = budget - resident - streamed
    LC = int(max(1, min(n_layers, avail // (2 * per_layer))))
    n_chunks = -(-n_layers // LC)
    LC = -(-n_layers // n_chunks)              # rebalance chunk sizes
    n_layers_pad = n_chunks * LC
    # TODO(synk): when n_chunks > 1 and NB > 1 the weights are re-streamed once per
    # batch block; a layer-outer / batch-inner restructure would cut that NBx traffic.

    if n_layers_pad != n_layers:               # zero layers are exact no-ops
        w_hh_p = jnp.pad(w_hh_p, ((0, n_layers_pad - n_layers), (0, 0), (0, 0)))
        b_hh_p = jnp.pad(b_hh_p, ((0, n_layers_pad - n_layers), (0, 0), (0, 0)))

    vmem_need = resident + streamed + 2 * LC * per_layer
    vmem_limit = int(min(vmem_cap - (4 << 20),
                         max(16 * 1024 * 1024, 2 * vmem_need)))

    grid_spec = pltpu.PrefetchScalarGridSpec(
        num_scalar_prefetch=0,
        grid=(NB, n_chunks),
        in_specs=[
            pl.BlockSpec((TB, IN_pad), lambda b, c: (b, 0)),          # x
            pl.BlockSpec((IN_pad, HD), lambda b, c: (0, 0)),          # w_ih (resident)
            pl.BlockSpec((1, HD), lambda b, c: (0, 0)),               # b_ih
            pl.BlockSpec((LC, HD, HD), lambda b, c: (c, 0, 0)),       # w_hh (chunked)
            pl.BlockSpec((n_layers_pad, 1, HD), lambda b, c: (0, 0, 0)),  # b_hh (resident)
            pl.BlockSpec((HD, OD_pad), lambda b, c: (0, 0)),          # w_ho (resident)
            pl.BlockSpec((1, OD_pad), lambda b, c: (0, 0)),           # b_ho
        ],
        out_specs=pl.BlockSpec((TB, OD_pad), lambda b, c: (b, 0)),
        scratch_shapes=[pltpu.VMEM((TB, HD), jnp.float32)],
    )

    out = pl.pallas_call(
        freenet_kernel,
        out_shape=jax.ShapeDtypeStruct((B_pad, OD_pad), x.dtype),
        grid_spec=grid_spec,
        compiler_params=pltpu.CompilerParams(
            dimension_semantics=("parallel", "arbitrary"),
            vmem_limit_bytes=vmem_limit),
    )(x_p, w_ih_p, b_ih, w_hh_p, b_hh_p, w_ho_p, b_ho_p)
    return out[:B, :OD]


# ---------------- parameter construction (deterministic, PyTorch-Linear-style) ----
def _linear_init(key, fan_in, fan_out):
    kw, kb = jax.random.split(key)
    bound = 1.0 / np.sqrt(fan_in)
    w = jax.random.uniform(kw, (fan_out, fan_in), jnp.float32, -bound, bound)
    b = jax.random.uniform(kb, (fan_out,), jnp.float32, -bound, bound)
    return w, b


def init_raw_params(input_dim, hidden_dim, output_dim, key):
    keys = jax.random.split(key, hidden_dim + 1)
    w_ih, b_ih = _linear_init(keys[0], input_dim, hidden_dim)
    hh = [_linear_init(keys[1 + i], i + 1, hidden_dim - i - 1)
          for i in range(hidden_dim - 1)]
    w_ho, b_ho = _linear_init(keys[-1], hidden_dim, output_dim)
    return (w_ih, b_ih), hh, (w_ho, b_ho)


def pack_params(raw, hidden_dim, weight_dtype=WEIGHT_DTYPE):
    (w_ih, b_ih), hh, (w_ho, b_ho) = raw
    w_hh_p = np.zeros((hidden_dim - 1, hidden_dim, hidden_dim), np.float32)
    b_hh_p = np.zeros((hidden_dim - 1, 1, hidden_dim), np.float32)
    for i, (w, b) in enumerate(hh):
        # w: (out = hidden_dim-i-1, in = i+1). Its transpose feeds input columns
        # 0..i into output columns i+1..hidden_dim-1; the rest stays zero.
        w_hh_p[i, :i + 1, i + 1:] = np.asarray(w).T
        b_hh_p[i, 0, i + 1:] = np.asarray(b)
    return (jnp.asarray(np.asarray(w_ih).T, dtype=weight_dtype),        # [IN, HD]
            jnp.asarray(np.asarray(b_ih), dtype=jnp.float32)[None, :],  # [1, HD]
            jnp.asarray(w_hh_p, dtype=weight_dtype),                    # [HD-1, HD, HD]
            jnp.asarray(b_hh_p, dtype=jnp.float32),                     # [HD-1, 1, HD]
            jnp.asarray(np.asarray(w_ho).T, dtype=weight_dtype),        # [HD, OD]
            jnp.asarray(np.asarray(b_ho), dtype=jnp.float32)[None, :])  # [1, OD]


# ---------------- pure-JAX reference (mirrors the PyTorch module exactly) ---------
def reference(x, raw):
    (w_ih, b_ih), hh, (w_ho, b_ho) = raw
    h = _square_relu_capped(x @ w_ih.T + b_ih)
    hidden_dim = w_ih.shape[0]
    for i in range(hidden_dim - 1):
        w, b = hh[i]
        outputs = _square_relu_capped(h[:, :i + 1] @ w.T + b)
        h = jnp.concatenate([h[:, :i + 1], h[:, i + 1:] + outputs], axis=1)
    return h @ w_ho.T + b_ho


if __name__ == "__main__":
    B, INPUT_DIM, HIDDEN_DIM, OUTPUT_DIM = 4, 16, 32, 8

    key = jax.random.PRNGKey(0)
    kx, kp = jax.random.split(key)
    x = jax.random.normal(kx, (B, INPUT_DIM), jnp.float32)

    raw = init_raw_params(INPUT_DIM, HIDDEN_DIM, OUTPUT_DIM, kp)
    params = pack_params(raw, HIDDEN_DIM)

    out = freenet_capped(x, params)
    jax.block_until_ready(out)

    ref = reference(x, raw)
    if WEIGHT_DTYPE == jnp.float32:
        atol, rtol = 1e-4, 1e-4
    else:  # bf16 weights, f32 accumulation/residual across HD-1 layers
        atol, rtol = 1e-1, 5e-2
    assert np.allclose(np.asarray(out), np.asarray(ref), atol=atol, rtol=rtol), \
        "Pallas kernel output does not match reference"

    print("KERNEL_OK")
</pallas_src>

<mosaic_0001>
module attributes {stable_mosaic.version = 11 : i64} {
  func.func @freenet_kernel(%arg0: i32, %arg1: i32, %arg2: memref<8x128xf32, #tpu.memory_space<vmem>>, %arg3: memref<128x32xbf16, #tpu.memory_space<vmem>>, %arg4: memref<1x32xf32, #tpu.memory_space<vmem>>, %arg5: memref<31x32x32xbf16, #tpu.memory_space<vmem>>, %arg6: memref<31x1x32xf32, #tpu.memory_space<vmem>>, %arg7: memref<32x128xbf16, #tpu.memory_space<vmem>>, %arg8: memref<1x128xf32, #tpu.memory_space<vmem>>, %arg9: memref<8x128xf32, #tpu.memory_space<vmem>>, %arg10: memref<8x32xf32, #tpu.memory_space<vmem>>) attributes {dimension_semantics = [#tpu.dimension_semantics<parallel>, #tpu.dimension_semantics<arbitrary>], iteration_bounds = array<i64: 1, 1>, scalar_prefetch = 0 : i64, scratch_operands = 1 : i64, tpu.core_type = #tpu.core_type<tc>, window_params = [{transform_indices = @transform_0, window_bounds = array<i64: 8, 128>}, {pipeline_mode = #tpu.pipeline_mode<synchronous>, transform_indices = @transform_1, window_bounds = array<i64: 128, 32>}, {pipeline_mode = #tpu.pipeline_mode<synchronous>, transform_indices = @transform_2, window_bounds = array<i64: 1, 32>}, {transform_indices = @transform_3, window_bounds = array<i64: 31, 32, 32>}, {pipeline_mode = #tpu.pipeline_mode<synchronous>, transform_indices = @transform_4, window_bounds = array<i64: 31, 1, 32>}, {pipeline_mode = #tpu.pipeline_mode<synchronous>, transform_indices = @transform_5, window_bounds = array<i64: 32, 128>}, {pipeline_mode = #tpu.pipeline_mode<synchronous>, transform_indices = @transform_6, window_bounds = array<i64: 1, 128>}, {transform_indices = @transform_7, window_bounds = array<i64: 8, 128>}]} {
    %c0_i32 = arith.constant 0 : i32
    %0 = arith.cmpi eq, %arg1, %c0_i32 : i32
    %1 = arith.extui %0 : i1 to i32
    %c0_i32_0 = arith.constant 0 : i32
    %2 = arith.cmpi ne, %1, %c0_i32_0 : i32
    scf.if %2 {
      %c0_254 = arith.constant 0 : index
      %c0_255 = arith.constant 0 : index
      %566 = vector.load %arg2[%c0_254, %c0_255] : memref<8x128xf32, #tpu.memory_space<vmem>>, vector<8x128xf32>
      %c0_256 = arith.constant 0 : index
      %c0_257 = arith.constant 0 : index
      %567 = vector.load %arg3[%c0_256, %c0_257] : memref<128x32xbf16, #tpu.memory_space<vmem>>, vector<128x32xbf16>
      %568 = arith.truncf %566 : vector<8x128xf32> to vector<8x128xbf16>
      %cst_258 = arith.constant dense<0.000000e+00> : vector<8x32xf32>
      %569 = tpu.matmul %568, %567, %cst_258 {dimension_numbers = #tpu.dot_dimension_numbers<[1], [0], [0], [1], [0, 0, 1, 1], [], []>} : vector<8x128xbf16>, vector<128x32xbf16>, vector<8x32xf32> -> vector<8x32xf32>
      %c0_259 = arith.constant 0 : index
      %c0_260 = arith.constant 0 : index
      %570 = vector.load %arg4[%c0_259, %c0_260] : memref<1x32xf32, #tpu.memory_space<vmem>>, vector<1x32xf32>
      %571 = vector.broadcast %570 : vector<1x32xf32> to vector<8x32xf32>
      %572 = arith.addf %569, %571 : vector<8x32xf32>
      %cst_261 = arith.constant 0.000000e+00 : f32
      %573 = vector.broadcast %cst_261 : f32 to vector<8x32xf32>
      %574 = arith.maximumf %572, %573 : vector<8x32xf32>
      %575 = arith.mulf %574, %574 : vector<8x32xf32>
      %cst_262 = arith.constant 1.000000e+01 : f32
      %576 = vector.broadcast %cst_262 : f32 to vector<8x32xf32>
      %577 = arith.minimumf %575, %576 : vector<8x32xf32>
      %c0_263 = arith.constant 0 : index
      %c0_264 = arith.constant 0 : index
      %578 = vector.load %arg10[%c0_263, %c0_264] : memref<8x32xf32, #tpu.memory_space<vmem>>, vector<8x32xf32>
      tpu.vector_store %arg10[%c0_263, %c0_264], %577 {strides = array<i32>} : memref<8x32xf32, #tpu.memory_space<vmem>>, vector<8x32xf32>,
    } else {
    }
    %c0 = arith.constant 0 : index
    %c0_1 = arith.constant 0 : index
    %3 = vector.load %arg10[%c0, %c0_1] : memref<8x32xf32, #tpu.memory_space<vmem>>, vector<8x32xf32>
    %c0_i32_2 = arith.constant 0 : i32
    %4 = arith.index_cast %c0_i32_2 : i32 to index
    %c0_3 = arith.constant 0 : index
    %c0_4 = arith.constant 0 : index
    %5 = vector.load %arg5[%4, %c0_3, %c0_4] : memref<31x32x32xbf16, #tpu.memory_space<vmem>>, vector<1x32x32xbf16>
    %6 = vector.shape_cast %5 : vector<1x32x32xbf16> to vector<32x32xbf16>
    %c31_i32 = arith.constant 31 : i32
    %7 = arith.muli %arg1, %c31_i32 : i32
    %8 = arith.addi %7, %c0_i32_2 : i32
    %9 = arith.index_cast %8 : i32 to index
    %c0_5 = arith.constant 0 : index
    %c0_6 = arith.constant 0 : index
    %10 = vector.load %arg6[%9, %c0_5, %c0_6] : memref<31x1x32xf32, #tpu.memory_space<vmem>>, vector<1x1x32xf32>
    %11 = vector.shape_cast %10 : vector<1x1x32xf32> to vector<1x32xf32>
    %12 = arith.truncf %3 : vector<8x32xf32> to vector<8x32xbf16>
    %cst = arith.constant dense<0.000000e+00> : vector<8x32xf32>
    %13 = tpu.matmul %12, %6, %cst {dimension_numbers = #tpu.dot_dimension_numbers<[1], [0], [0], [1], [0, 0, 1, 1], [], []>} : vector<8x32xbf16>, vector<32x32xbf16>, vector<8x32xf32> -> vector<8x32xf32>
    %14 = vector.broadcast %11 : vector<1x32xf32> to vector<8x32xf32>
    %15 = arith.addf %13, %14 : vector<8x32xf32>
    %cst_7 = arith.constant 0.000000e+00 : f32
    %16 = vector.broadcast %cst_7 : f32 to vector<8x32xf32>
    %17 = arith.maximumf %15, %16 : vector<8x32xf32>
    %18 = arith.mulf %17, %17 : vector<8x32xf32>
    %cst_8 = arith.constant 1.000000e+01 : f32
    %19 = vector.broadcast %cst_8 : f32 to vector<8x32xf32>
    %20 = arith.minimumf %18, %19 : vector<8x32xf32>
    %21 = arith.addf %3, %20 : vector<8x32xf32>
    %c1_i32 = arith.constant 1 : i32
    %22 = arith.index_cast %c1_i32 : i32 to index
    %c0_9 = arith.constant 0 : index
    %c0_10 = arith.constant 0 : index
    %23 = vector.load %arg5[%22, %c0_9, %c0_10] : memref<31x32x32xbf16, #tpu.memory_space<vmem>>, vector<1x32x32xbf16>
    %24 = vector.shape_cast %23 : vector<1x32x32xbf16> to vector<32x32xbf16>
    %c31_i32_11 = arith.constant 31 : i32
    %25 = arith.muli %arg1, %c31_i32_11 : i32
    %26 = arith.addi %25, %c1_i32 : i32
    %27 = arith.index_cast %26 : i32 to index
    %c0_12 = arith.constant 0 : index
    %c0_13 = arith.constant 0 : index
    %28 = vector.load %arg6[%27, %c0_12, %c0_13] : memref<31x1x32xf32, #tpu.memory_space<vmem>>, vector<1x1x32xf32>
    %29 = vector.shape_cast %28 : vector<1x1x32xf32> to vector<1x32xf32>
    %30 = arith.truncf %21 : vector<8x32xf32> to vector<8x32xbf16>
    %cst_14 = arith.constant dense<0.000000e+00> : vector<8x32xf32>
    %31 = tpu.matmul %30, %24, %cst_14 {dimension_numbers = #tpu.dot_dimension_numbers<[1], [0], [0], [1], [0, 0, 1, 1], [], []>} : vector<8x32xbf16>, vector<32x32xbf16>, vector<8x32xf32> -> vector<8x32xf32>
    %32 = vector.broadcast %29 : vector<1x32xf32> to vector<8x32xf32>
    %33 = arith.addf %31, %32 : vector<8x32xf32>
    %cst_15 = arith.constant 0.000000e+00 : f32
    %34 = vector.broadcast %cst_15 : f32 to vector<8x32xf32>
    %35 = arith.maximumf %33, %34 : vector<8x32xf32>
    %36 = arith.mulf %35, %35 : vector<8x32xf32>
    %cst_16 = arith.constant 1.000000e+01 : f32
    %37 = vector.broadcast %cst_16 : f32 to vector<8x32xf32>
    %38 = arith.minimumf %36, %37 : vector<8x32xf32>
    %39 = arith.addf %21, %38 : vector<8x32xf32>
    %c2_i32 = arith.constant 2 : i32
    %40 = arith.index_cast %c2_i32 : i32 to index
    %c0_17 = arith.constant 0 : index
    %c0_18 = arith.constant 0 : index
    %41 = vector.load %arg5[%40, %c0_17, %c0_18] : memref<31x32x32xbf16, #tpu.memory_space<vmem>>, vector<1x32x32xbf16>
    %42 = vector.shape_cast %41 : vector<1x32x32xbf16> to vector<32x32xbf16>
    %c31_i32_19 = arith.constant 31 : i32
    %43 = arith.muli %arg1, %c31_i32_19 : i32
    %44 = arith.addi %43, %c2_i32 : i32
    %45 = arith.index_cast %44 : i32 to index
    %c0_20 = arith.constant 0 : index
    %c0_21 = arith.constant 0 : index
    %46 = vector.load %arg6[%45, %c0_20, %c0_21] : memref<31x1x32xf32, #tpu.memory_space<vmem>>, vector<1x1x32xf32>
    %47 = vector.shape_cast %46 : vector<1x1x32xf32> to vector<1x32xf32>
    %48 = arith.truncf %39 : vector<8x32xf32> to vector<8x32xbf16>
    %cst_22 = arith.constant dense<0.000000e+00> : vector<8x32xf32>
    %49 = tpu.matmul %48, %42, %cst_22 {dimension_numbers = #tpu.dot_dimension_numbers<[1], [0], [0], [1], [0, 0, 1, 1], [], []>} : vector<8x32xbf16>, vector<32x32xbf16>, vector<8x32xf32> -> vector<8x32xf32>
    %50 = vector.broadcast %47 : vector<1x32xf32> to vector<8x32xf32>
    %51 = arith.addf %49, %50 : vector<8x32xf32>
    %cst_23 = arith.constant 0.000000e+00 : f32
    %52 = vector.broadcast %cst_23 : f32 to vector<8x32xf32>
    %53 = arith.maximumf %51, %52 : vector<8x32xf32>
    %54 = arith.mulf %53, %53 : vector<8x32xf32>
    %cst_24 = arith.constant 1.000000e+01 : f32
    %55 = vector.broadcast %cst_24 : f32 to vector<8x32xf32>
    %56 = arith.minimumf %54, %55 : vector<8x32xf32>
    %57 = arith.addf %39, %56 : vector<8x32xf32>
    %c3_i32 = arith.constant 3 : i32
    %58 = arith.index_cast %c3_i32 : i32 to index
    %c0_25 = arith.constant 0 : index
    %c0_26 = arith.constant 0 : index
    %59 = vector.load %arg5[%58, %c0_25, %c0_26] : memref<31x32x32xbf16, #tpu.memory_space<vmem>>, vector<1x32x32xbf16>
    %60 = vector.shape_cast %59 : vector<1x32x32xbf16> to vector<32x32xbf16>
    %c31_i32_27 = arith.constant 31 : i32
    %61 = arith.muli %arg1, %c31_i32_27 : i32
    %62 = arith.addi %61, %c3_i32 : i32
    %63 = arith.index_cast %62 : i32 to index
    %c0_28 = arith.constant 0 : index
    %c0_29 = arith.constant 0 : index
    %64 = vector.load %arg6[%63, %c0_28, %c0_29] : memref<31x1x32xf32, #tpu.memory_space<vmem>>, vector<1x1x32xf32>
    %65 = vector.shape_cast %64 : vector<1x1x32xf32> to vector<1x32xf32>
    %66 = arith.truncf %57 : vector<8x32xf32> to vector<8x32xbf16>
    %cst_30 = arith.constant dense<0.000000e+00> : vector<8x32xf32>
    %67 = tpu.matmul %66, %60, %cst_30 {dimension_numbers = #tpu.dot_dimension_numbers<[1], [0], [0], [1], [0, 0, 1, 1], [], []>} : vector<8x32xbf16>, vector<32x32xbf16>, vector<8x32xf32> -> vector<8x32xf32>
    %68 = vector.broadcast %65 : vector<1x32xf32> to vector<8x32xf32>
    %69 = arith.addf %67, %68 : vector<8x32xf32>
    %cst_31 = arith.constant 0.000000e+00 : f32
    %70 = vector.broadcast %cst_31 : f32 to vector<8x32xf32>
    %71 = arith.maximumf %69, %70 : vector<8x32xf32>
    %72 = arith.mulf %71, %71 : vector<8x32xf32>
    %cst_32 = arith.constant 1.000000e+01 : f32
    %73 = vector.broadcast %cst_32 : f32 to vector<8x32xf32>
    %74 = arith.minimumf %72, %73 : vector<8x32xf32>
    %75 = arith.addf %57, %74 : vector<8x32xf32>
    %c4_i32 = arith.constant 4 : i32
    %76 = arith.index_cast %c4_i32 : i32 to index
    %c0_33 = arith.constant 0 : index
    %c0_34 = arith.constant 0 : index
    %77 = vector.load %arg5[%76, %c0_33, %c0_34] : memref<31x32x32xbf16, #tpu.memory_space<vmem>>, vector<1x32x32xbf16>
    %78 = vector.shape_cast %77 : vector<1x32x32xbf16> to vector<32x32xbf16>
    %c31_i32_35 = arith.constant 31 : i32
    %79 = arith.muli %arg1, %c31_i32_35 : i32
    %80 = arith.addi %79, %c4_i32 : i32
    %81 = arith.index_cast %80 : i32 to index
    %c0_36 = arith.constant 0 : index
    %c0_37 = arith.constant 0 : index
    %82 = vector.load %arg6[%81, %c0_36, %c0_37] : memref<31x1x32xf32, #tpu.memory_space<vmem>>, vector<1x1x32xf32>
    %83 = vector.shape_cast %82 : vector<1x1x32xf32> to vector<1x32xf32>
    %84 = arith.truncf %75 : vector<8x32xf32> to vector<8x32xbf16>
    %cst_38 = arith.constant dense<0.000000e+00> : vector<8x32xf32>
    %85 = tpu.matmul %84, %78, %cst_38 {dimension_numbers = #tpu.dot_dimension_numbers<[1], [0], [0], [1], [0, 0, 1, 1], [], []>} : vector<8x32xbf16>, vector<32x32xbf16>, vector<8x32xf32> -> vector<8x32xf32>
    %86 = vector.broadcast %83 : vector<1x32xf32> to vector<8x32xf32>
    %87 = arith.addf %85, %86 : vector<8x32xf32>
    %cst_39 = arith.constant 0.000000e+00 : f32
    %88 = vector.broadcast %cst_39 : f32 to vector<8x32xf32>
    %89 = arith.maximumf %87, %88 : vector<8x32xf32>
    %90 = arith.mulf %89, %89 : vector<8x32xf32>
    %cst_40 = arith.constant 1.000000e+01 : f32
    %91 = vector.broadcast %cst_40 : f32 to vector<8x32xf32>
    %92 = arith.minimumf %90, %91 : vector<8x32xf32>
    %93 = arith.addf %75, %92 : vector<8x32xf32>
    %c5_i32 = arith.constant 5 : i32
    %94 = arith.index_cast %c5_i32 : i32 to index
    %c0_41 = arith.constant 0 : index
    %c0_42 = arith.constant 0 : index
    %95 = vector.load %arg5[%94, %c0_41, %c0_42] : memref<31x32x32xbf16, #tpu.memory_space<vmem>>, vector<1x32x32xbf16>
    %96 = vector.shape_cast %95 : vector<1x32x32xbf16> to vector<32x32xbf16>
    %c31_i32_43 = arith.constant 31 : i32
    %97 = arith.muli %arg1, %c31_i32_43 : i32
    %98 = arith.addi %97, %c5_i32 : i32
    %99 = arith.index_cast %98 : i32 to index
    %c0_44 = arith.constant 0 : index
    %c0_45 = arith.constant 0 : index
    %100 = vector.load %arg6[%99, %c0_44, %c0_45] : memref<31x1x32xf32, #tpu.memory_space<vmem>>, vector<1x1x32xf32>
    %101 = vector.shape_cast %100 : vector<1x1x32xf32> to vector<1x32xf32>
    %102 = arith.truncf %93 : vector<8x32xf32> to vector<8x32xbf16>
    %cst_46 = arith.constant dense<0.000000e+00> : vector<8x32xf32>
    %103 = tpu.matmul %102, %96, %cst_46 {dimension_numbers = #tpu.dot_dimension_numbers<[1], [0], [0], [1], [0, 0, 1, 1], [], []>} : vector<8x32xbf16>, vector<32x32xbf16>, vector<8x32xf32> -> vector<8x32xf32>
    %104 = vector.broadcast %101 : vector<1x32xf32> to vector<8x32xf32>
    %105 = arith.addf %103, %104 : vector<8x32xf32>
    %cst_47 = arith.constant 0.000000e+00 : f32
    %106 = vector.broadcast %cst_47 : f32 to vector<8x32xf32>
    %107 = arith.maximumf %105, %106 : vector<8x32xf32>
    %108 = arith.mulf %107, %107 : vector<8x32xf32>
    %cst_48 = arith.constant 1.000000e+01 : f32
    %109 = vector.broadcast %cst_48 : f32 to vector<8x32xf32>
    %110 = arith.minimumf %108, %109 : vector<8x32xf32>
    %111 = arith.addf %93, %110 : vector<8x32xf32>
    %c6_i32 = arith.constant 6 : i32
    %112 = arith.index_cast %c6_i32 : i32 to index
    %c0_49 = arith.constant 0 : index
    %c0_50 = arith.constant 0 : index
    %113 = vector.load %arg5[%112, %c0_49, %c0_50] : memref<31x32x32xbf16, #tpu.memory_space<vmem>>, vector<1x32x32xbf16>
    %114 = vector.shape_cast %113 : vector<1x32x32xbf16> to vector<32x32xbf16>
    %c31_i32_51 = arith.constant 31 : i32
    %115 = arith.muli %arg1, %c31_i32_51 : i32
    %116 = arith.addi %115, %c6_i32 : i32
    %117 = arith.index_cast %116 : i32 to index
    %c0_52 = arith.constant 0 : index
    %c0_53 = arith.constant 0 : index
    %118 = vector.load %arg6[%117, %c0_52, %c0_53] : memref<31x1x32xf32, #tpu.memory_space<vmem>>, vector<1x1x32xf32>
    %119 = vector.shape_cast %118 : vector<1x1x32xf32> to vector<1x32xf32>
    %120 = arith.truncf %111 : vector<8x32xf32> to vector<8x32xbf16>
    %cst_54 = arith.constant dense<0.000000e+00> : vector<8x32xf32>
    %121 = tpu.matmul %120, %114, %cst_54 {dimension_numbers = #tpu.dot_dimension_numbers<[1], [0], [0], [1], [0, 0, 1, 1], [], []>} : vector<8x32xbf16>, vector<32x32xbf16>, vector<8x32xf32> -> vector<8x32xf32>
    %122 = vector.broadcast %119 : vector<1x32xf32> to vector<8x32xf32>
    %123 = arith.addf %121, %122 : vector<8x32xf32>
    %cst_55 = arith.constant 0.000000e+00 : f32
    %124 = vector.broadcast %cst_55 : f32 to vector<8x32xf32>
    %125 = arith.maximumf %123, %124 : vector<8x32xf32>
    %126 = arith.mulf %125, %125 : vector<8x32xf32>
    %cst_56 = arith.constant 1.000000e+01 : f32
    %127 = vector.broadcast %cst_56 : f32 to vector<8x32xf32>
    %128 = arith.minimumf %126, %127 : vector<8x32xf32>
    %129 = arith.addf %111, %128 : vector<8x32xf32>
    %c7_i32 = arith.constant 7 : i32
    %130 = arith.index_cast %c7_i32 : i32 to index
    %c0_57 = arith.constant 0 : index
    %c0_58 = arith.constant 0 : index
    %131 = vector.load %arg5[%130, %c0_57, %c0_58] : memref<31x32x32xbf16, #tpu.memory_space<vmem>>, vector<1x32x32xbf16>
    %132 = vector.shape_cast %131 : vector<1x32x32xbf16> to vector<32x32xbf16>
    %c31_i32_59 = arith.constant 31 : i32
    %133 = arith.muli %arg1, %c31_i32_59 : i32
    %134 = arith.addi %133, %c7_i32 : i32
    %135 = arith.index_cast %134 : i32 to index
    %c0_60 = arith.constant 0 : index
    %c0_61 = arith.constant 0 : index
    %136 = vector.load %arg6[%135, %c0_60, %c0_61] : memref<31x1x32xf32, #tpu.memory_space<vmem>>, vector<1x1x32xf32>
    %137 = vector.shape_cast %136 : vector<1x1x32xf32> to vector<1x32xf32>
    %138 = arith.truncf %129 : vector<8x32xf32> to vector<8x32xbf16>
    %cst_62 = arith.constant dense<0.000000e+00> : vector<8x32xf32>
    %139 = tpu.matmul %138, %132, %cst_62 {dimension_numbers = #tpu.dot_dimension_numbers<[1], [0], [0], [1], [0, 0, 1, 1], [], []>} : vector<8x32xbf16>, vector<32x32xbf16>, vector<8x32xf32> -> vector<8x32xf32>
    %140 = vector.broadcast %137 : vector<1x32xf32> to vector<8x32xf32>
    %141 = arith.addf %139, %140 : vector<8x32xf32>
    %cst_63 = arith.constant 0.000000e+00 : f32
    %142 = vector.broadcast %cst_63 : f32 to vector<8x32xf32>
    %143 = arith.maximumf %141, %142 : vector<8x32xf32>
    %144 = arith.mulf %143, %143 : vector<8x32xf32>
    %cst_64 = arith.constant 1.000000e+01 : f32
    %145 = vector.broadcast %cst_64 : f32 to vector<8x32xf32>
    %146 = arith.minimumf %144, %145 : vector<8x32xf32>
    %147 = arith.addf %129, %146 : vector<8x32xf32>
    %c8_i32 = arith.constant 8 : i32
    %148 = arith.index_cast %c8_i32 : i32 to index
    %c0_65 = arith.constant 0 : index
    %c0_66 = arith.constant 0 : index
    %149 = vector.load %arg5[%148, %c0_65, %c0_66] : memref<31x32x32xbf16, #tpu.memory_space<vmem>>, vector<1x32x32xbf16>
    %150 = vector.shape_cast %149 : vector<1x32x32xbf16> to vector<32x32xbf16>
    %c31_i32_67 = arith.constant 31 : i32
    %151 = arith.muli %arg1, %c31_i32_67 : i32
    %152 = arith.addi %151, %c8_i32 : i32
    %153 = arith.index_cast %152 : i32 to index
    %c0_68 = arith.constant 0 : index
    %c0_69 = arith.constant 0 : index
    %154 = vector.load %arg6[%153, %c0_68, %c0_69] : memref<31x1x32xf32, #tpu.memory_space<vmem>>, vector<1x1x32xf32>
    %155 = vector.shape_cast %154 : vector<1x1x32xf32> to vector<1x32xf32>
    %156 = arith.truncf %147 : vector<8x32xf32> to vector<8x32xbf16>
    %cst_70 = arith.constant dense<0.000000e+00> : vector<8x32xf32>
    %157 = tpu.matmul %156, %150, %cst_70 {dimension_numbers = #tpu.dot_dimension_numbers<[1], [0], [0], [1], [0, 0, 1, 1], [], []>} : vector<8x32xbf16>, vector<32x32xbf16>, vector<8x32xf32> -> vector<8x32xf32>
    %158 = vector.broadcast %155 : vector<1x32xf32> to vector<8x32xf32>
    %159 = arith.addf %157, %158 : vector<8x32xf32>
    %cst_71 = arith.constant 0.000000e+00 : f32
    %160 = vector.broadcast %cst_71 : f32 to vector<8x32xf32>
    %161 = arith.maximumf %159, %160 : vector<8x32xf32>
    %162 = arith.mulf %161, %161 : vector<8x32xf32>
    %cst_72 = arith.constant 1.000000e+01 : f32
    %163 = vector.broadcast %cst_72 : f32 to vector<8x32xf32>
    %164 = arith.minimumf %162, %163 : vector<8x32xf32>
    %165 = arith.addf %147, %164 : vector<8x32xf32>
    %c9_i32 = arith.constant 9 : i32
    %166 = arith.index_cast %c9_i32 : i32 to index
    %c0_73 = arith.constant 0 : index
    %c0_74 = arith.constant 0 : index
    %167 = vector.load %arg5[%166, %c0_73, %c0_74] : memref<31x32x32xbf16, #tpu.memory_space<vmem>>, vector<1x32x32xbf16>
    %168 = vector.shape_cast %167 : vector<1x32x32xbf16> to vector<32x32xbf16>
    %c31_i32_75 = arith.constant 31 : i32
    %169 = arith.muli %arg1, %c31_i32_75 : i32
    %170 = arith.addi %169, %c9_i32 : i32
    %171 = arith.index_cast %170 : i32 to index
    %c0_76 = arith.constant 0 : index
    %c0_77 = arith.constant 0 : index
    %172 = vector.load %arg6[%171, %c0_76, %c0_77] : memref<31x1x32xf32, #tpu.memory_space<vmem>>, vector<1x1x32xf32>
    %173 = vector.shape_cast %172 : vector<1x1x32xf32> to vector<1x32xf32>
    %174 = arith.truncf %165 : vector<8x32xf32> to vector<8x32xbf16>
    %cst_78 = arith.constant dense<0.000000e+00> : vector<8x32xf32>
    %175 = tpu.matmul %174, %168, %cst_78 {dimension_numbers = #tpu.dot_dimension_numbers<[1], [0], [0], [1], [0, 0, 1, 1], [], []>} : vector<8x32xbf16>, vector<32x32xbf16>, vector<8x32xf32> -> vector<8x32xf32>
    %176 = vector.broadcast %173 : vector<1x32xf32> to vector<8x32xf32>
    %177 = arith.addf %175, %176 : vector<8x32xf32>
    %cst_79 = arith.constant 0.000000e+00 : f32
    %178 = vector.broadcast %cst_79 : f32 to vector<8x32xf32>
    %179 = arith.maximumf %177, %178 : vector<8x32xf32>
    %180 = arith.mulf %179, %179 : vector<8x32xf32>
    %cst_80 = arith.constant 1.000000e+01 : f32
    %181 = vector.broadcast %cst_80 : f32 to vector<8x32xf32>
    %182 = arith.minimumf %180, %181 : vector<8x32xf32>
    %183 = arith.addf %165, %182 : vector<8x32xf32>
    %c10_i32 = arith.constant 10 : i32
    %184 = arith.index_cast %c10_i32 : i32 to index
    %c0_81 = arith.constant 0 : index
    %c0_82 = arith.constant 0 : index
    %185 = vector.load %arg5[%184, %c0_81, %c0_82] : memref<31x32x32xbf16, #tpu.memory_space<vmem>>, vector<1x32x32xbf16>
    %186 = vector.shape_cast %185 : vector<1x32x32xbf16> to vector<32x32xbf16>
    %c31_i32_83 = arith.constant 31 : i32
    %187 = arith.muli %arg1, %c31_i32_83 : i32
    %188 = arith.addi %187, %c10_i32 : i32
    %189 = arith.index_cast %188 : i32 to index
    %c0_84 = arith.constant 0 : index
    %c0_85 = arith.constant 0 : index
    %190 = vector.load %arg6[%189, %c0_84, %c0_85] : memref<31x1x32xf32, #tpu.memory_space<vmem>>, vector<1x1x32xf32>
    %191 = vector.shape_cast %190 : vector<1x1x32xf32> to vector<1x32xf32>
    %192 = arith.truncf %183 : vector<8x32xf32> to vector<8x32xbf16>
    %cst_86 = arith.constant dense<0.000000e+00> : vector<8x32xf32>
    %193 = tpu.matmul %192, %186, %cst_86 {dimension_numbers = #tpu.dot_dimension_numbers<[1], [0], [0], [1], [0, 0, 1, 1], [], []>} : vector<8x32xbf16>, vector<32x32xbf16>, vector<8x32xf32> -> vector<8x32xf32>
    %194 = vector.broadcast %191 : vector<1x32xf32> to vector<8x32xf32>
    %195 = arith.addf %193, %194 : vector<8x32xf32>
    %cst_87 = arith.constant 0.000000e+00 : f32
    %196 = vector.broadcast %cst_87 : f32 to vector<8x32xf32>
    %197 = arith.maximumf %195, %196 : vector<8x32xf32>
    %198 = arith.mulf %197, %197 : vector<8x32xf32>
    %cst_88 = arith.constant 1.000000e+01 : f32
    %199 = vector.broadcast %cst_88 : f32 to vector<8x32xf32>
    %200 = arith.minimumf %198, %199 : vector<8x32xf32>
    %201 = arith.addf %183, %200 : vector<8x32xf32>
    %c11_i32 = arith.constant 11 : i32
    %202 = arith.index_cast %c11_i32 : i32 to index
    %c0_89 = arith.constant 0 : index
    %c0_90 = arith.constant 0 : index
    %203 = vector.load %arg5[%202, %c0_89, %c0_90] : memref<31x32x32xbf16, #tpu.memory_space<vmem>>, vector<1x32x32xbf16>
    %204 = vector.shape_cast %203 : vector<1x32x32xbf16> to vector<32x32xbf16>
    %c31_i32_91 = arith.constant 31 : i32
    %205 = arith.muli %arg1, %c31_i32_91 : i32
    %206 = arith.addi %205, %c11_i32 : i32
    %207 = arith.index_cast %206 : i32 to index
    %c0_92 = arith.constant 0 : index
    %c0_93 = arith.constant 0 : index
    %208 = vector.load %arg6[%207, %c0_92, %c0_93] : memref<31x1x32xf32, #tpu.memory_space<vmem>>, vector<1x1x32xf32>
    %209 = vector.shape_cast %208 : vector<1x1x32xf32> to vector<1x32xf32>
    %210 = arith.truncf %201 : vector<8x32xf32> to vector<8x32xbf16>
    %cst_94 = arith.constant dense<0.000000e+00> : vector<8x32xf32>
    %211 = tpu.matmul %210, %204, %cst_94 {dimension_numbers = #tpu.dot_dimension_numbers<[1], [0], [0], [1], [0, 0, 1, 1], [], []>} : vector<8x32xbf16>, vector<32x32xbf16>, vector<8x32xf32> -> vector<8x32xf32>
    %212 = vector.broadcast %209 : vector<1x32xf32> to vector<8x32xf32>
    %213 = arith.addf %211, %212 : vector<8x32xf32>
    %cst_95 = arith.constant 0.000000e+00 : f32
    %214 = vector.broadcast %cst_95 : f32 to vector<8x32xf32>
    %215 = arith.maximumf %213, %214 : vector<8x32xf32>
    %216 = arith.mulf %215, %215 : vector<8x32xf32>
    %cst_96 = arith.constant 1.000000e+01 : f32
    %217 = vector.broadcast %cst_96 : f32 to vector<8x32xf32>
    %218 = arith.minimumf %216, %217 : vector<8x32xf32>
    %219 = arith.addf %201, %218 : vector<8x32xf32>
    %c12_i32 = arith.constant 12 : i32
    %220 = arith.index_cast %c12_i32 : i32 to index
    %c0_97 = arith.constant 0 : index
    %c0_98 = arith.constant 0 : index
    %221 = vector.load %arg5[%220, %c0_97, %c0_98] : memref<31x32x32xbf16, #tpu.memory_space<vmem>>, vector<1x32x32xbf16>
    %222 = vector.shape_cast %221 : vector<1x32x32xbf16> to vector<32x32xbf16>
    %c31_i32_99 = arith.constant 31 : i32
    %223 = arith.muli %arg1, %c31_i32_99 : i32
    %224 = arith.addi %223, %c12_i32 : i32
    %225 = arith.index_cast %224 : i32 to index
    %c0_100 = arith.constant 0 : index
    %c0_101 = arith.constant 0 : index
    %226 = vector.load %arg6[%225, %c0_100, %c0_101] : memref<31x1x32xf32, #tpu.memory_space<vmem>>, vector<1x1x32xf32>
    %227 = vector.shape_cast %226 : vector<1x1x32xf32> to vector<1x32xf32>
    %228 = arith.truncf %219 : vector<8x32xf32> to vector<8x32xbf16>
    %cst_102 = arith.constant dense<0.000000e+00> : vector<8x32xf32>
    %229 = tpu.matmul %228, %222, %cst_102 {dimension_numbers = #tpu.dot_dimension_numbers<[1], [0], [0], [1], [0, 0, 1, 1], [], []>} : vector<8x32xbf16>, vector<32x32xbf16>, vector<8x32xf32> -> vector<8x32xf32>
    %230 = vector.broadcast %227 : vector<1x32xf32> to vector<8x32xf32>
    %231 = arith.addf %229, %230 : vector<8x32xf32>
    %cst_103 = arith.constant 0.000000e+00 : f32
    %232 = vector.broadcast %cst_103 : f32 to vector<8x32xf32>
    %233 = arith.maximumf %231, %232 : vector<8x32xf32>
    %234 = arith.mulf %233, %233 : vector<8x32xf32>
    %cst_104 = arith.constant 1.000000e+01 : f32
    %235 = vector.broadcast %cst_104 : f32 to vector<8x32xf32>
    %236 = arith.minimumf %234, %235 : vector<8x32xf32>
    %237 = arith.addf %219, %236 : vector<8x32xf32>
    %c13_i32 = arith.constant 13 : i32
    %238 = arith.index_cast %c13_i32 : i32 to index
    %c0_105 = arith.constant 0 : index
    %c0_106 = arith.constant 0 : index
    %239 = vector.load %arg5[%238, %c0_105, %c0_106] : memref<31x32x32xbf16, #tpu.memory_space<vmem>>, vector<1x32x32xbf16>
    %240 = vector.shape_cast %239 : vector<1x32x32xbf16> to vector<32x32xbf16>
    %c31_i32_107 = arith.constant 31 : i32
    %241 = arith.muli %arg1, %c31_i32_107 : i32
    %242 = arith.addi %241, %c13_i32 : i32
    %243 = arith.index_cast %242 : i32 to index
    %c0_108 = arith.constant 0 : index
    %c0_109 = arith.constant 0 : index
    %244 = vector.load %arg6[%243, %c0_108, %c0_109] : memref<31x1x32xf32, #tpu.memory_space<vmem>>, vector<1x1x32xf32>
    %245 = vector.shape_cast %244 : vector<1x1x32xf32> to vector<1x32xf32>
    %246 = arith.truncf %237 : vector<8x32xf32> to vector<8x32xbf16>
    %cst_110 = arith.constant dense<0.000000e+00> : vector<8x32xf32>
    %247 = tpu.matmul %246, %240, %cst_110 {dimension_numbers = #tpu.dot_dimension_numbers<[1], [0], [0], [1], [0, 0, 1, 1], [], []>} : vector<8x32xbf16>, vector<32x32xbf16>, vector<8x32xf32> -> vector<8x32xf32>
    %248 = vector.broadcast %245 : vector<1x32xf32> to vector<8x32xf32>
    %249 = arith.addf %247, %248 : vector<8x32xf32>
    %cst_111 = arith.constant 0.000000e+00 : f32
    %250 = vector.broadcast %cst_111 : f32 to vector<8x32xf32>
    %251 = arith.maximumf %249, %250 : vector<8x32xf32>
    %252 = arith.mulf %251, %251 : vector<8x32xf32>
    %cst_112 = arith.constant 1.000000e+01 : f32
    %253 = vector.broadcast %cst_112 : f32 to vector<8x32xf32>
    %254 = arith.minimumf %252, %253 : vector<8x32xf32>
    %255 = arith.addf %237, %254 : vector<8x32xf32>
    %c14_i32 = arith.constant 14 : i32
    %256 = arith.index_cast %c14_i32 : i32 to index
    %c0_113 = arith.constant 0 : index
    %c0_114 = arith.constant 0 : index
    %257 = vector.load %arg5[%256, %c0_113, %c0_114] : memref<31x32x32xbf16, #tpu.memory_space<vmem>>, vector<1x32x32xbf16>
    %258 = vector.shape_cast %257 : vector<1x32x32xbf16> to vector<32x32xbf16>
    %c31_i32_115 = arith.constant 31 : i32
    %259 = arith.muli %arg1, %c31_i32_115 : i32
    %260 = arith.addi %259, %c14_i32 : i32
    %261 = arith.index_cast %260 : i32 to index
    %c0_116 = arith.constant 0 : index
    %c0_117 = arith.constant 0 : index
    %262 = vector.load %arg6[%261, %c0_116, %c0_117] : memref<31x1x32xf32, #tpu.memory_space<vmem>>, vector<1x1x32xf32>
    %263 = vector.shape_cast %262 : vector<1x1x32xf32> to vector<1x32xf32>
    %264 = arith.truncf %255 : vector<8x32xf32> to vector<8x32xbf16>
    %cst_118 = arith.constant dense<0.000000e+00> : vector<8x32xf32>
    %265 = tpu.matmul %264, %258, %cst_118 {dimension_numbers = #tpu.dot_dimension_numbers<[1], [0], [0], [1], [0, 0, 1, 1], [], []>} : vector<8x32xbf16>, vector<32x32xbf16>, vector<8x32xf32> -> vector<8x32xf32>
    %266 = vector.broadcast %263 : vector<1x32xf32> to vector<8x32xf32>
    %267 = arith.addf %265, %266 : vector<8x32xf32>
    %cst_119 = arith.constant 0.000000e+00 : f32
    %268 = vector.broadcast %cst_119 : f32 to vector<8x32xf32>
    %269 = arith.maximumf %267, %268 : vector<8x32xf32>
    %270 = arith.mulf %269, %269 : vector<8x32xf32>
    %cst_120 = arith.constant 1.000000e+01 : f32
    %271 = vector.broadcast %cst_120 : f32 to vector<8x32xf32>
    %272 = arith.minimumf %270, %271 : vector<8x32xf32>
    %273 = arith.addf %255, %272 : vector<8x32xf32>
    %c15_i32 = arith.constant 15 : i32
    %274 = arith.index_cast %c15_i32 : i32 to index
    %c0_121 = arith.constant 0 : index
    %c0_122 = arith.constant 0 : index
    %275 = vector.load %arg5[%274, %c0_121, %c0_122] : memref<31x32x32xbf16, #tpu.memory_space<vmem>>, vector<1x32x32xbf16>
    %276 = vector.shape_cast %275 : vector<1x32x32xbf16> to vector<32x32xbf16>
    %c31_i32_123 = arith.constant 31 : i32
    %277 = arith.muli %arg1, %c31_i32_123 : i32
    %278 = arith.addi %277, %c15_i32 : i32
    %279 = arith.index_cast %278 : i32 to index
    %c0_124 = arith.constant 0 : index
    %c0_125 = arith.constant 0 : index
    %280 = vector.load %arg6[%279, %c0_124, %c0_125] : memref<31x1x32xf32, #tpu.memory_space<vmem>>, vector<1x1x32xf32>
    %281 = vector.shape_cast %280 : vector<1x1x32xf32> to vector<1x32xf32>
    %282 = arith.truncf %273 : vector<8x32xf32> to vector<8x32xbf16>
    %cst_126 = arith.constant dense<0.000000e+00> : vector<8x32xf32>
    %283 = tpu.matmul %282, %276, %cst_126 {dimension_numbers = #tpu.dot_dimension_numbers<[1], [0], [0], [1], [0, 0, 1, 1], [], []>} : vector<8x32xbf16>, vector<32x32xbf16>, vector<8x32xf32> -> vector<8x32xf32>
    %284 = vector.broadcast %281 : vector<1x32xf32> to vector<8x32xf32>
    %285 = arith.addf %283, %284 : vector<8x32xf32>
    %cst_127 = arith.constant 0.000000e+00 : f32
    %286 = vector.broadcast %cst_127 : f32 to vector<8x32xf32>
    %287 = arith.maximumf %285, %286 : vector<8x32xf32>
    %288 = arith.mulf %287, %287 : vector<8x32xf32>
    %cst_128 = arith.constant 1.000000e+01 : f32
    %289 = vector.broadcast %cst_128 : f32 to vector<8x32xf32>
    %290 = arith.minimumf %288, %289 : vector<8x32xf32>
    %291 = arith.addf %273, %290 : vector<8x32xf32>
    %c16_i32 = arith.constant 16 : i32
    %292 = arith.index_cast %c16_i32 : i32 to index
    %c0_129 = arith.constant 0 : index
    %c0_130 = arith.constant 0 : index
    %293 = vector.load %arg5[%292, %c0_129, %c0_130] : memref<31x32x32xbf16, #tpu.memory_space<vmem>>, vector<1x32x32xbf16>
    %294 = vector.shape_cast %293 : vector<1x32x32xbf16> to vector<32x32xbf16>
    %c31_i32_131 = arith.constant 31 : i32
    %295 = arith.muli %arg1, %c31_i32_131 : i32
    %296 = arith.addi %295, %c16_i32 : i32
    %297 = arith.index_cast %296 : i32 to index
    %c0_132 = arith.constant 0 : index
    %c0_133 = arith.constant 0 : index
    %298 = vector.load %arg6[%297, %c0_132, %c0_133] : memref<31x1x32xf32, #tpu.memory_space<vmem>>, vector<1x1x32xf32>
    %299 = vector.shape_cast %298 : vector<1x1x32xf32> to vector<1x32xf32>
    %300 = arith.truncf %291 : vector<8x32xf32> to vector<8x32xbf16>
    %cst_134 = arith.constant dense<0.000000e+00> : vector<8x32xf32>
    %301 = tpu.matmul %300, %294, %cst_134 {dimension_numbers = #tpu.dot_dimension_numbers<[1], [0], [0], [1], [0, 0, 1, 1], [], []>} : vector<8x32xbf16>, vector<32x32xbf16>, vector<8x32xf32> -> vector<8x32xf32>
    %302 = vector.broadcast %299 : vector<1x32xf32> to vector<8x32xf32>
    %303 = arith.addf %301, %302 : vector<8x32xf32>
    %cst_135 = arith.constant 0.000000e+00 : f32
    %304 = vector.broadcast %cst_135 : f32 to vector<8x32xf32>
    %305 = arith.maximumf %303, %304 : vector<8x32xf32>
    %306 = arith.mulf %305, %305 : vector<8x32xf32>
    %cst_136 = arith.constant 1.000000e+01 : f32
    %307 = vector.broadcast %cst_136 : f32 to vector<8x32xf32>
    %308 = arith.minimumf %306, %307 : vector<8x32xf32>
    %309 = arith.addf %291, %308 : vector<8x32xf32>
    %c17_i32 = arith.constant 17 : i32
    %310 = arith.index_cast %c17_i32 : i32 to index
    %c0_137 = arith.constant 0 : index
    %c0_138 = arith.constant 0 : index
    %311 = vector.load %arg5[%310, %c0_137, %c0_138] : memref<31x32x32xbf16, #tpu.memory_space<vmem>>, vector<1x32x32xbf16>
    %312 = vector.shape_cast %311 : vector<1x32x32xbf16> to vector<32x32xbf16>
    %c31_i32_139 = arith.constant 31 : i32
    %313 = arith.muli %arg1, %c31_i32_139 : i32
    %314 = arith.addi %313, %c17_i32 : i32
    %315 = arith.index_cast %314 : i32 to index
    %c0_140 = arith.constant 0 : index
    %c0_141 = arith.constant 0 : index
    %316 = vector.load %arg6[%315, %c0_140, %c0_141] : memref<31x1x32xf32, #tpu.memory_space<vmem>>, vector<1x1x32xf32>
    %317 = vector.shape_cast %316 : vector<1x1x32xf32> to vector<1x32xf32>
    %318 = arith.truncf %309 : vector<8x32xf32> to vector<8x32xbf16>
    %cst_142 = arith.constant dense<0.000000e+00> : vector<8x32xf32>
    %319 = tpu.matmul %318, %312, %cst_142 {dimension_numbers = #tpu.dot_dimension_numbers<[1], [0], [0], [1], [0, 0, 1, 1], [], []>} : vector<8x32xbf16>, vector<32x32xbf16>, vector<8x32xf32> -> vector<8x32xf32>
    %320 = vector.broadcast %317 : vector<1x32xf32> to vector<8x32xf32>
    %321 = arith.addf %319, %320 : vector<8x32xf32>
    %cst_143 = arith.constant 0.000000e+00 : f32
    %322 = vector.broadcast %cst_143 : f32 to vector<8x32xf32>
    %323 = arith.maximumf %321, %322 : vector<8x32xf32>
    %324 = arith.mulf %323, %323 : vector<8x32xf32>
    %cst_144 = arith.constant 1.000000e+01 : f32
    %325 = vector.broadcast %cst_144 : f32 to vector<8x32xf32>
    %326 = arith.minimumf %324, %325 : vector<8x32xf32>
    %327 = arith.addf %309, %326 : vector<8x32xf32>
    %c18_i32 = arith.constant 18 : i32
    %328 = arith.index_cast %c18_i32 : i32 to index
    %c0_145 = arith.constant 0 : index
    %c0_146 = arith.constant 0 : index
    %329 = vector.load %arg5[%328, %c0_145, %c0_146] : memref<31x32x32xbf16, #tpu.memory_space<vmem>>, vector<1x32x32xbf16>
    %330 = vector.shape_cast %329 : vector<1x32x32xbf16> to vector<32x32xbf16>
    %c31_i32_147 = arith.constant 31 : i32
    %331 = arith.muli %arg1, %c31_i32_147 : i32
    %332 = arith.addi %331, %c18_i32 : i32
    %333 = arith.index_cast %332 : i32 to index
    %c0_148 = arith.constant 0 : index
    %c0_149 = arith.constant 0 : index
    %334 = vector.load %arg6[%333, %c0_148, %c0_149] : memref<31x1x32xf32, #tpu.memory_space<vmem>>, vector<1x1x32xf32>
    %335 = vector.shape_cast %334 : vector<1x1x32xf32> to vector<1x32xf32>
    %336 = arith.truncf %327 : vector<8x32xf32> to vector<8x32xbf16>
    %cst_150 = arith.constant dense<0.000000e+00> : vector<8x32xf32>
    %337 = tpu.matmul %336, %330, %cst_150 {dimension_numbers = #tpu.dot_dimension_numbers<[1], [0], [0], [1], [0, 0, 1, 1], [], []>} : vector<8x32xbf16>, vector<32x32xbf16>, vector<8x32xf32> -> vector<8x32xf32>
    %338 = vector.broadcast %335 : vector<1x32xf32> to vector<8x32xf32>
    %339 = arith.addf %337, %338 : vector<8x32xf32>
    %cst_151 = arith.constant 0.000000e+00 : f32
    %340 = vector.broadcast %cst_151 : f32 to vector<8x32xf32>
    %341 = arith.maximumf %339, %340 : vector<8x32xf32>
    %342 = arith.mulf %341, %341 : vector<8x32xf32>
    %cst_152 = arith.constant 1.000000e+01 : f32
    %343 = vector.broadcast %cst_152 : f32 to vector<8x32xf32>
    %344 = arith.minimumf %342, %343 : vector<8x32xf32>
    %345 = arith.addf %327, %344 : vector<8x32xf32>
    %c19_i32 = arith.constant 19 : i32
    %346 = arith.index_cast %c19_i32 : i32 to index
    %c0_153 = arith.constant 0 : index
    %c0_154 = arith.constant 0 : index
    %347 = vector.load %arg5[%346, %c0_153, %c0_154] : memref<31x32x32xbf16, #tpu.memory_space<vmem>>, vector<1x32x32xbf16>
    %348 = vector.shape_cast %347 : vector<1x32x32xbf16> to vector<32x32xbf16>
    %c31_i32_155 = arith.constant 31 : i32
    %349 = arith.muli %arg1, %c31_i32_155 : i32
    %350 = arith.addi %349, %c19_i32 : i32
    %351 = arith.index_cast %350 : i32 to index
    %c0_156 = arith.constant 0 : index
    %c0_157 = arith.constant 0 : index
    %352 = vector.load %arg6[%351, %c0_156, %c0_157] : memref<31x1x32xf32, #tpu.memory_space<vmem>>, vector<1x1x32xf32>
    %353 = vector.shape_cast %352 : vector<1x1x32xf32> to vector<1x32xf32>
    %354 = arith.truncf %345 : vector<8x32xf32> to vector<8x32xbf16>
    %cst_158 = arith.constant dense<0.000000e+00> : vector<8x32xf32>
    %355 = tpu.matmul %354, %348, %cst_158 {dimension_numbers = #tpu.dot_dimension_numbers<[1], [0], [0], [1], [0, 0, 1, 1], [], []>} : vector<8x32xbf16>, vector<32x32xbf16>, vector<8x32xf32> -> vector<8x32xf32>
    %356 = vector.broadcast %353 : vector<1x32xf32> to vector<8x32xf32>
    %357 = arith.addf %355, %356 : vector<8x32xf32>
    %cst_159 = arith.constant 0.000000e+00 : f32
    %358 = vector.broadcast %cst_159 : f32 to vector<8x32xf32>
    %359 = arith.maximumf %357, %358 : vector<8x32xf32>
    %360 = arith.mulf %359, %359 : vector<8x32xf32>
    %cst_160 = arith.constant 1.000000e+01 : f32
    %361 = vector.broadcast %cst_160 : f32 to vector<8x32xf32>
    %362 = arith.minimumf %360, %361 : vector<8x32xf32>
    %363 = arith.addf %345, %362 : vector<8x32xf32>
    %c20_i32 = arith.constant 20 : i32
    %364 = arith.index_cast %c20_i32 : i32 to index
    %c0_161 = arith.constant 0 : index
    %c0_162 = arith.constant 0 : index
    %365 = vector.load %arg5[%364, %c0_161, %c0_162] : memref<31x32x32xbf16, #tpu.memory_space<vmem>>, vector<1x32x32xbf16>
    %366 = vector.shape_cast %365 : vector<1x32x32xbf16> to vector<32x32xbf16>
    %c31_i32_163 = arith.constant 31 : i32
    %367 = arith.muli %arg1, %c31_i32_163 : i32
    %368 = arith.addi %367, %c20_i32 : i32
    %369 = arith.index_cast %368 : i32 to index
    %c0_164 = arith.constant 0 : index
    %c0_165 = arith.constant 0 : index
    %370 = vector.load %arg6[%369, %c0_164, %c0_165] : memref<31x1x32xf32, #tpu.memory_space<vmem>>, vector<1x1x32xf32>
    %371 = vector.shape_cast %370 : vector<1x1x32xf32> to vector<1x32xf32>
    %372 = arith.truncf %363 : vector<8x32xf32> to vector<8x32xbf16>
    %cst_166 = arith.constant dense<0.000000e+00> : vector<8x32xf32>
    %373 = tpu.matmul %372, %366, %cst_166 {dimension_numbers = #tpu.dot_dimension_numbers<[1], [0], [0], [1], [0, 0, 1, 1], [], []>} : vector<8x32xbf16>, vector<32x32xbf16>, vector<8x32xf32> -> vector<8x32xf32>
    %374 = vector.broadcast %371 : vector<1x32xf32> to vector<8x32xf32>
    %375 = arith.addf %373, %374 : vector<8x32xf32>
    %cst_167 = arith.constant 0.000000e+00 : f32
    %376 = vector.broadcast %cst_167 : f32 to vector<8x32xf32>
    %377 = arith.maximumf %375, %376 : vector<8x32xf32>
    %378 = arith.mulf %377, %377 : vector<8x32xf32>
    %cst_168 = arith.constant 1.000000e+01 : f32
    %379 = vector.broadcast %cst_168 : f32 to vector<8x32xf32>
    %380 = arith.minimumf %378, %379 : vector<8x32xf32>
    %381 = arith.addf %363, %380 : vector<8x32xf32>
    %c21_i32 = arith.constant 21 : i32
    %382 = arith.index_cast %c21_i32 : i32 to index
    %c0_169 = arith.constant 0 : index
    %c0_170 = arith.constant 0 : index
    %383 = vector.load %arg5[%382, %c0_169, %c0_170] : memref<31x32x32xbf16, #tpu.memory_space<vmem>>, vector<1x32x32xbf16>
    %384 = vector.shape_cast %383 : vector<1x32x32xbf16> to vector<32x32xbf16>
    %c31_i32_171 = arith.constant 31 : i32
    %385 = arith.muli %arg1, %c31_i32_171 : i32
    %386 = arith.addi %385, %c21_i32 : i32
    %387 = arith.index_cast %386 : i32 to index
    %c0_172 = arith.constant 0 : index
    %c0_173 = arith.constant 0 : index
    %388 = vector.load %arg6[%387, %c0_172, %c0_173] : memref<31x1x32xf32, #tpu.memory_space<vmem>>, vector<1x1x32xf32>
    %389 = vector.shape_cast %388 : vector<1x1x32xf32> to vector<1x32xf32>
    %390 = arith.truncf %381 : vector<8x32xf32> to vector<8x32xbf16>
    %cst_174 = arith.constant dense<0.000000e+00> : vector<8x32xf32>
    %391 = tpu.matmul %390, %384, %cst_174 {dimension_numbers = #tpu.dot_dimension_numbers<[1], [0], [0], [1], [0, 0, 1, 1], [], []>} : vector<8x32xbf16>, vector<32x32xbf16>, vector<8x32xf32> -> vector<8x32xf32>
    %392 = vector.broadcast %389 : vector<1x32xf32> to vector<8x32xf32>
    %393 = arith.addf %391, %392 : vector<8x32xf32>
    %cst_175 = arith.constant 0.000000e+00 : f32
    %394 = vector.broadcast %cst_175 : f32 to vector<8x32xf32>
    %395 = arith.maximumf %393, %394 : vector<8x32xf32>
    %396 = arith.mulf %395, %395 : vector<8x32xf32>
    %cst_176 = arith.constant 1.000000e+01 : f32
    %397 = vector.broadcast %cst_176 : f32 to vector<8x32xf32>
    %398 = arith.minimumf %396, %397 : vector<8x32xf32>
    %399 = arith.addf %381, %398 : vector<8x32xf32>
    %c22_i32 = arith.constant 22 : i32
    %400 = arith.index_cast %c22_i32 : i32 to index
    %c0_177 = arith.constant 0 : index
    %c0_178 = arith.constant 0 : index
    %401 = vector.load %arg5[%400, %c0_177, %c0_178] : memref<31x32x32xbf16, #tpu.memory_space<vmem>>, vector<1x32x32xbf16>
    %402 = vector.shape_cast %401 : vector<1x32x32xbf16> to vector<32x32xbf16>
    %c31_i32_179 = arith.constant 31 : i32
    %403 = arith.muli %arg1, %c31_i32_179 : i32
    %404 = arith.addi %403, %c22_i32 : i32
    %405 = arith.index_cast %404 : i32 to index
    %c0_180 = arith.constant 0 : index
    %c0_181 = arith.constant 0 : index
    %406 = vector.load %arg6[%405, %c0_180, %c0_181] : memref<31x1x32xf32, #tpu.memory_space<vmem>>, vector<1x1x32xf32>
    %407 = vector.shape_cast %406 : vector<1x1x32xf32> to vector<1x32xf32>
    %408 = arith.truncf %399 : vector<8x32xf32> to vector<8x32xbf16>
    %cst_182 = arith.constant dense<0.000000e+00> : vector<8x32xf32>
    %409 = tpu.matmul %408, %402, %cst_182 {dimension_numbers = #tpu.dot_dimension_numbers<[1], [0], [0], [1], [0, 0, 1, 1], [], []>} : vector<8x32xbf16>, vector<32x32xbf16>, vector<8x32xf32> -> vector<8x32xf32>
    %410 = vector.broadcast %407 : vector<1x32xf32> to vector<8x32xf32>
    %411 = arith.addf %409, %410 : vector<8x32xf32>
    %cst_183 = arith.constant 0.000000e+00 : f32
    %412 = vector.broadcast %cst_183 : f32 to vector<8x32xf32>
    %413 = arith.maximumf %411, %412 : vector<8x32xf32>
    %414 = arith.mulf %413, %413 : vector<8x32xf32>
    %cst_184 = arith.constant 1.000000e+01 : f32
    %415 = vector.broadcast %cst_184 : f32 to vector<8x32xf32>
    %416 = arith.minimumf %414, %415 : vector<8x32xf32>
    %417 = arith.addf %399, %416 : vector<8x32xf32>
    %c23_i32 = arith.constant 23 : i32
    %418 = arith.index_cast %c23_i32 : i32 to index
    %c0_185 = arith.constant 0 : index
    %c0_186 = arith.constant 0 : index
    %419 = vector.load %arg5[%418, %c0_185, %c0_186] : memref<31x32x32xbf16, #tpu.memory_space<vmem>>, vector<1x32x32xbf16>
    %420 = vector.shape_cast %419 : vector<1x32x32xbf16> to vector<32x32xbf16>
    %c31_i32_187 = arith.constant 31 : i32
    %421 = arith.muli %arg1, %c31_i32_187 : i32
    %422 = arith.addi %421, %c23_i32 : i32
    %423 = arith.index_cast %422 : i32 to index
    %c0_188 = arith.constant 0 : index
    %c0_189 = arith.constant 0 : index
    %424 = vector.load %arg6[%423, %c0_188, %c0_189] : memref<31x1x32xf32, #tpu.memory_space<vmem>>, vector<1x1x32xf32>
    %425 = vector.shape_cast %424 : vector<1x1x32xf32> to vector<1x32xf32>
    %426 = arith.truncf %417 : vector<8x32xf32> to vector<8x32xbf16>
    %cst_190 = arith.constant dense<0.000000e+00> : vector<8x32xf32>
    %427 = tpu.matmul %426, %420, %cst_190 {dimension_numbers = #tpu.dot_dimension_numbers<[1], [0], [0], [1], [0, 0, 1, 1], [], []>} : vector<8x32xbf16>, vector<32x32xbf16>, vector<8x32xf32> -> vector<8x32xf32>
    %428 = vector.broadcast %425 : vector<1x32xf32> to vector<8x32xf32>
    %429 = arith.addf %427, %428 : vector<8x32xf32>
    %cst_191 = arith.constant 0.000000e+00 : f32
    %430 = vector.broadcast %cst_191 : f32 to vector<8x32xf32>
    %431 = arith.maximumf %429, %430 : vector<8x32xf32>
    %432 = arith.mulf %431, %431 : vector<8x32xf32>
    %cst_192 = arith.constant 1.000000e+01 : f32
    %433 = vector.broadcast %cst_192 : f32 to vector<8x32xf32>
    %434 = arith.minimumf %432, %433 : vector<8x32xf32>
    %435 = arith.addf %417, %434 : vector<8x32xf32>
    %c24_i32 = arith.constant 24 : i32
    %436 = arith.index_cast %c24_i32 : i32 to index
    %c0_193 = arith.constant 0 : index
    %c0_194 = arith.constant 0 : index
    %437 = vector.load %arg5[%436, %c0_193, %c0_194] : memref<31x32x32xbf16, #tpu.memory_space<vmem>>, vector<1x32x32xbf16>
    %438 = vector.shape_cast %437 : vector<1x32x32xbf16> to vector<32x32xbf16>
    %c31_i32_195 = arith.constant 31 : i32
    %439 = arith.muli %arg1, %c31_i32_195 : i32
    %440 = arith.addi %439, %c24_i32 : i32
    %441 = arith.index_cast %440 : i32 to index
    %c0_196 = arith.constant 0 : index
    %c0_197 = arith.constant 0 : index
    %442 = vector.load %arg6[%441, %c0_196, %c0_197] : memref<31x1x32xf32, #tpu.memory_space<vmem>>, vector<1x1x32xf32>
    %443 = vector.shape_cast %442 : vector<1x1x32xf32> to vector<1x32xf32>
    %444 = arith.truncf %435 : vector<8x32xf32> to vector<8x32xbf16>
    %cst_198 = arith.constant dense<0.000000e+00> : vector<8x32xf32>
    %445 = tpu.matmul %444, %438, %cst_198 {dimension_numbers = #tpu.dot_dimension_numbers<[1], [0], [0], [1], [0, 0, 1, 1], [], []>} : vector<8x32xbf16>, vector<32x32xbf16>, vector<8x32xf32> -> vector<8x32xf32>
    %446 = vector.broadcast %443 : vector<1x32xf32> to vector<8x32xf32>
    %447 = arith.addf %445, %446 : vector<8x32xf32>
    %cst_199 = arith.constant 0.000000e+00 : f32
    %448 = vector.broadcast %cst_199 : f32 to vector<8x32xf32>
    %449 = arith.maximumf %447, %448 : vector<8x32xf32>
    %450 = arith.mulf %449, %449 : vector<8x32xf32>
    %cst_200 = arith.constant 1.000000e+01 : f32
    %451 = vector.broadcast %cst_200 : f32 to vector<8x32xf32>
    %452 = arith.minimumf %450, %451 : vector<8x32xf32>
    %453 = arith.addf %435, %452 : vector<8x32xf32>
    %c25_i32 = arith.constant 25 : i32
    %454 = arith.index_cast %c25_i32 : i32 to index
    %c0_201 = arith.constant 0 : index
    %c0_202 = arith.constant 0 : index
    %455 = vector.load %arg5[%454, %c0_201, %c0_202] : memref<31x32x32xbf16, #tpu.memory_space<vmem>>, vector<1x32x32xbf16>
    %456 = vector.shape_cast %455 : vector<1x32x32xbf16> to vector<32x32xbf16>
    %c31_i32_203 = arith.constant 31 : i32
    %457 = arith.muli %arg1, %c31_i32_203 : i32
    %458 = arith.addi %457, %c25_i32 : i32
    %459 = arith.index_cast %458 : i32 to index
    %c0_204 = arith.constant 0 : index
    %c0_205 = arith.constant 0 : index
    %460 = vector.load %arg6[%459, %c0_204, %c0_205] : memref<31x1x32xf32, #tpu.memory_space<vmem>>, vector<1x1x32xf32>
    %461 = vector.shape_cast %460 : vector<1x1x32xf32> to vector<1x32xf32>
    %462 = arith.truncf %453 : vector<8x32xf32> to vector<8x32xbf16>
    %cst_206 = arith.constant dense<0.000000e+00> : vector<8x32xf32>
    %463 = tpu.matmul %462, %456, %cst_206 {dimension_numbers = #tpu.dot_dimension_numbers<[1], [0], [0], [1], [0, 0, 1, 1], [], []>} : vector<8x32xbf16>, vector<32x32xbf16>, vector<8x32xf32> -> vector<8x32xf32>
    %464 = vector.broadcast %461 : vector<1x32xf32> to vector<8x32xf32>
    %465 = arith.addf %463, %464 : vector<8x32xf32>
    %cst_207 = arith.constant 0.000000e+00 : f32
    %466 = vector.broadcast %cst_207 : f32 to vector<8x32xf32>
    %467 = arith.maximumf %465, %466 : vector<8x32xf32>
    %468 = arith.mulf %467, %467 : vector<8x32xf32>
    %cst_208 = arith.constant 1.000000e+01 : f32
    %469 = vector.broadcast %cst_208 : f32 to vector<8x32xf32>
    %470 = arith.minimumf %468, %469 : vector<8x32xf32>
    %471 = arith.addf %453, %470 : vector<8x32xf32>
    %c26_i32 = arith.constant 26 : i32
    %472 = arith.index_cast %c26_i32 : i32 to index
    %c0_209 = arith.constant 0 : index
    %c0_210 = arith.constant 0 : index
    %473 = vector.load %arg5[%472, %c0_209, %c0_210] : memref<31x32x32xbf16, #tpu.memory_space<vmem>>, vector<1x32x32xbf16>
    %474 = vector.shape_cast %473 : vector<1x32x32xbf16> to vector<32x32xbf16>
    %c31_i32_211 = arith.constant 31 : i32
    %475 = arith.muli %arg1, %c31_i32_211 : i32
    %476 = arith.addi %475, %c26_i32 : i32
    %477 = arith.index_cast %476 : i32 to index
    %c0_212 = arith.constant 0 : index
    %c0_213 = arith.constant 0 : index
    %478 = vector.load %arg6[%477, %c0_212, %c0_213] : memref<31x1x32xf32, #tpu.memory_space<vmem>>, vector<1x1x32xf32>
    %479 = vector.shape_cast %478 : vector<1x1x32xf32> to vector<1x32xf32>
    %480 = arith.truncf %471 : vector<8x32xf32> to vector<8x32xbf16>
    %cst_214 = arith.constant dense<0.000000e+00> : vector<8x32xf32>
    %481 = tpu.matmul %480, %474, %cst_214 {dimension_numbers = #tpu.dot_dimension_numbers<[1], [0], [0], [1], [0, 0, 1, 1], [], []>} : vector<8x32xbf16>, vector<32x32xbf16>, vector<8x32xf32> -> vector<8x32xf32>
    %482 = vector.broadcast %479 : vector<1x32xf32> to vector<8x32xf32>
    %483 = arith.addf %481, %482 : vector<8x32xf32>
    %cst_215 = arith.constant 0.000000e+00 : f32
    %484 = vector.broadcast %cst_215 : f32 to vector<8x32xf32>
    %485 = arith.maximumf %483, %484 : vector<8x32xf32>
    %486 = arith.mulf %485, %485 : vector<8x32xf32>
    %cst_216 = arith.constant 1.000000e+01 : f32
    %487 = vector.broadcast %cst_216 : f32 to vector<8x32xf32>
    %488 = arith.minimumf %486, %487 : vector<8x32xf32>
    %489 = arith.addf %471, %488 : vector<8x32xf32>
    %c27_i32 = arith.constant 27 : i32
    %490 = arith.index_cast %c27_i32 : i32 to index
    %c0_217 = arith.constant 0 : index
    %c0_218 = arith.constant 0 : index
    %491 = vector.load %arg5[%490, %c0_217, %c0_218] : memref<31x32x32xbf16, #tpu.memory_space<vmem>>, vector<1x32x32xbf16>
    %492 = vector.shape_cast %491 : vector<1x32x32xbf16> to vector<32x32xbf16>
    %c31_i32_219 = arith.constant 31 : i32
    %493 = arith.muli %arg1, %c31_i32_219 : i32
    %494 = arith.addi %493, %c27_i32 : i32
    %495 = arith.index_cast %494 : i32 to index
    %c0_220 = arith.constant 0 : index
    %c0_221 = arith.constant 0 : index
    %496 = vector.load %arg6[%495, %c0_220, %c0_221] : memref<31x1x32xf32, #tpu.memory_space<vmem>>, vector<1x1x32xf32>
    %497 = vector.shape_cast %496 : vector<1x1x32xf32> to vector<1x32xf32>
    %498 = arith.truncf %489 : vector<8x32xf32> to vector<8x32xbf16>
    %cst_222 = arith.constant dense<0.000000e+00> : vector<8x32xf32>
    %499 = tpu.matmul %498, %492, %cst_222 {dimension_numbers = #tpu.dot_dimension_numbers<[1], [0], [0], [1], [0, 0, 1, 1], [], []>} : vector<8x32xbf16>, vector<32x32xbf16>, vector<8x32xf32> -> vector<8x32xf32>
    %500 = vector.broadcast %497 : vector<1x32xf32> to vector<8x32xf32>
    %501 = arith.addf %499, %500 : vector<8x32xf32>
    %cst_223 = arith.constant 0.000000e+00 : f32
    %502 = vector.broadcast %cst_223 : f32 to vector<8x32xf32>
    %503 = arith.maximumf %501, %502 : vector<8x32xf32>
    %504 = arith.mulf %503, %503 : vector<8x32xf32>
    %cst_224 = arith.constant 1.000000e+01 : f32
    %505 = vector.broadcast %cst_224 : f32 to vector<8x32xf32>
    %506 = arith.minimumf %504, %505 : vector<8x32xf32>
    %507 = arith.addf %489, %506 : vector<8x32xf32>
    %c28_i32 = arith.constant 28 : i32
    %508 = arith.index_cast %c28_i32 : i32 to index
    %c0_225 = arith.constant 0 : index
    %c0_226 = arith.constant 0 : index
    %509 = vector.load %arg5[%508, %c0_225, %c0_226] : memref<31x32x32xbf16, #tpu.memory_space<vmem>>, vector<1x32x32xbf16>
    %510 = vector.shape_cast %509 : vector<1x32x32xbf16> to vector<32x32xbf16>
    %c31_i32_227 = arith.constant 31 : i32
    %511 = arith.muli %arg1, %c31_i32_227 : i32
    %512 = arith.addi %511, %c28_i32 : i32
    %513 = arith.index_cast %512 : i32 to index
    %c0_228 = arith.constant 0 : index
    %c0_229 = arith.constant 0 : index
    %514 = vector.load %arg6[%513, %c0_228, %c0_229] : memref<31x1x32xf32, #tpu.memory_space<vmem>>, vector<1x1x32xf32>
    %515 = vector.shape_cast %514 : vector<1x1x32xf32> to vector<1x32xf32>
    %516 = arith.truncf %507 : vector<8x32xf32> to vector<8x32xbf16>
    %cst_230 = arith.constant dense<0.000000e+00> : vector<8x32xf32>
    %517 = tpu.matmul %516, %510, %cst_230 {dimension_numbers = #tpu.dot_dimension_numbers<[1], [0], [0], [1], [0, 0, 1, 1], [], []>} : vector<8x32xbf16>, vector<32x32xbf16>, vector<8x32xf32> -> vector<8x32xf32>
    %518 = vector.broadcast %515 : vector<1x32xf32> to vector<8x32xf32>
    %519 = arith.addf %517, %518 : vector<8x32xf32>
    %cst_231 = arith.constant 0.000000e+00 : f32
    %520 = vector.broadcast %cst_231 : f32 to vector<8x32xf32>
    %521 = arith.maximumf %519, %520 : vector<8x32xf32>
    %522 = arith.mulf %521, %521 : vector<8x32xf32>
    %cst_232 = arith.constant 1.000000e+01 : f32
    %523 = vector.broadcast %cst_232 : f32 to vector<8x32xf32>
    %524 = arith.minimumf %522, %523 : vector<8x32xf32>
    %525 = arith.addf %507, %524 : vector<8x32xf32>
    %c29_i32 = arith.constant 29 : i32
    %526 = arith.index_cast %c29_i32 : i32 to index
    %c0_233 = arith.constant 0 : index
    %c0_234 = arith.constant 0 : index
    %527 = vector.load %arg5[%526, %c0_233, %c0_234] : memref<31x32x32xbf16, #tpu.memory_space<vmem>>, vector<1x32x32xbf16>
    %528 = vector.shape_cast %527 : vector<1x32x32xbf16> to vector<32x32xbf16>
    %c31_i32_235 = arith.constant 31 : i32
    %529 = arith.muli %arg1, %c31_i32_235 : i32
    %530 = arith.addi %529, %c29_i32 : i32
    %531 = arith.index_cast %530 : i32 to index
    %c0_236 = arith.constant 0 : index
    %c0_237 = arith.constant 0 : index
    %532 = vector.load %arg6[%531, %c0_236, %c0_237] : memref<31x1x32xf32, #tpu.memory_space<vmem>>, vector<1x1x32xf32>
    %533 = vector.shape_cast %532 : vector<1x1x32xf32> to vector<1x32xf32>
    %534 = arith.truncf %525 : vector<8x32xf32> to vector<8x32xbf16>
    %cst_238 = arith.constant dense<0.000000e+00> : vector<8x32xf32>
    %535 = tpu.matmul %534, %528, %cst_238 {dimension_numbers = #tpu.dot_dimension_numbers<[1], [0], [0], [1], [0, 0, 1, 1], [], []>} : vector<8x32xbf16>, vector<32x32xbf16>, vector<8x32xf32> -> vector<8x32xf32>
    %536 = vector.broadcast %533 : vector<1x32xf32> to vector<8x32xf32>
    %537 = arith.addf %535, %536 : vector<8x32xf32>
    %cst_239 = arith.constant 0.000000e+00 : f32
    %538 = vector.broadcast %cst_239 : f32 to vector<8x32xf32>
    %539 = arith.maximumf %537, %538 : vector<8x32xf32>
    %540 = arith.mulf %539, %539 : vector<8x32xf32>
    %cst_240 = arith.constant 1.000000e+01 : f32
    %541 = vector.broadcast %cst_240 : f32 to vector<8x32xf32>
    %542 = arith.minimumf %540, %541 : vector<8x32xf32>
    %543 = arith.addf %525, %542 : vector<8x32xf32>
    %c30_i32 = arith.constant 30 : i32
    %544 = arith.index_cast %c30_i32 : i32 to index
    %c0_241 = arith.constant 0 : index
    %c0_242 = arith.constant 0 : index
    %545 = vector.load %arg5[%544, %c0_241, %c0_242] : memref<31x32x32xbf16, #tpu.memory_space<vmem>>, vector<1x32x32xbf16>
    %546 = vector.shape_cast %545 : vector<1x32x32xbf16> to vector<32x32xbf16>
    %c31_i32_243 = arith.constant 31 : i32
    %547 = arith.muli %arg1, %c31_i32_243 : i32
    %548 = arith.addi %547, %c30_i32 : i32
    %549 = arith.index_cast %548 : i32 to index
    %c0_244 = arith.constant 0 : index
    %c0_245 = arith.constant 0 : index
    %550 = vector.load %arg6[%549, %c0_244, %c0_245] : memref<31x1x32xf32, #tpu.memory_space<vmem>>, vector<1x1x32xf32>
    %551 = vector.shape_cast %550 : vector<1x1x32xf32> to vector<1x32xf32>
    %552 = arith.truncf %543 : vector<8x32xf32> to vector<8x32xbf16>
    %cst_246 = arith.constant dense<0.000000e+00> : vector<8x32xf32>
    %553 = tpu.matmul %552, %546, %cst_246 {dimension_numbers = #tpu.dot_dimension_numbers<[1], [0], [0], [1], [0, 0, 1, 1], [], []>} : vector<8x32xbf16>, vector<32x32xbf16>, vector<8x32xf32> -> vector<8x32xf32>
    %554 = vector.broadcast %551 : vector<1x32xf32> to vector<8x32xf32>
    %555 = arith.addf %553, %554 : vector<8x32xf32>
    %cst_247 = arith.constant 0.000000e+00 : f32
    %556 = vector.broadcast %cst_247 : f32 to vector<8x32xf32>
    %557 = arith.maximumf %555, %556 : vector<8x32xf32>
    %558 = arith.mulf %557, %557 : vector<8x32xf32>
    %cst_248 = arith.constant 1.000000e+01 : f32
    %559 = vector.broadcast %cst_248 : f32 to vector<8x32xf32>
    %560 = arith.minimumf %558, %559 : vector<8x32xf32>
    %561 = arith.addf %543, %560 : vector<8x32xf32>
    %c31_i32_249 = arith.constant 31 : i32
    %c0_250 = arith.constant 0 : index
    %c0_251 = arith.constant 0 : index
    %562 = vector.load %arg10[%c0_250, %c0_251] : memref<8x32xf32, #tpu.memory_space<vmem>>, vector<8x32xf32>
    tpu.vector_store %arg10[%c0_250, %c0_251], %561 {strides = array<i32>} : memref<8x32xf32, #tpu.memory_space<vmem>>, vector<8x32xf32>,
    %c0_i32_252 = arith.constant 0 : i32
    %563 = arith.cmpi eq, %arg1, %c0_i32_252 : i32
    %564 = arith.extui %563 : i1 to i32
    %c0_i32_253 = arith.constant 0 : i32
    %565 = arith.cmpi ne, %564, %c0_i32_253 : i32
    scf.if %565 {
      %c0_254 = arith.constant 0 : index
      %c0_255 = arith.constant 0 : index
      %566 = vector.load %arg7[%c0_254, %c0_255] : memref<32x128xbf16, #tpu.memory_space<vmem>>, vector<32x128xbf16>
      %567 = arith.truncf %561 : vector<8x32xf32> to vector<8x32xbf16>
      %cst_256 = arith.constant dense<0.000000e+00> : vector<8x128xf32>
      %568 = tpu.matmul %567, %566, %cst_256 {dimension_numbers = #tpu.dot_dimension_numbers<[1], [0], [0], [1], [0, 0, 1, 1], [], []>} : vector<8x32xbf16>, vector<32x128xbf16>, vector<8x128xf32> -> vector<8x128xf32>
      %c0_257 = arith.constant 0 : index
      %c0_258 = arith.constant 0 : index
      %569 = vector.load %arg8[%c0_257, %c0_258] : memref<1x128xf32, #tpu.memory_space<vmem>>, vector<1x128xf32>
      %570 = vector.broadcast %569 : vector<1x128xf32> to vector<8x128xf32>
      %571 = arith.addf %568, %570 : vector<8x128xf32>
      %c0_259 = arith.constant 0 : index
      %c0_260 = arith.constant 0 : index
      %572 = vector.load %arg9[%c0_259, %c0_260] : memref<8x128xf32, #tpu.memory_space<vmem>>, vector<8x128xf32>
      tpu.vector_store %arg9[%c0_259, %c0_260], %571 {strides = array<i32>} : memref<8x128xf32, #tpu.memory_space<vmem>>, vector<8x128xf32>,
    } else {
    }
    return
  }
  func.func @transform_0(%arg0: i32, %arg1: i32) -> (i32, i32) {
    %c0_i32 = arith.constant 0 : i32
    %c0_i32_0 = arith.constant 0 : i32
    return %arg0, %c0_i32 : i32, i32
  }
  func.func @transform_1(%arg0: i32, %arg1: i32) -> (i32, i32) {
    %c0_i32 = arith.constant 0 : i32
    %c0_i32_0 = arith.constant 0 : i32
    %c0_i32_1 = arith.constant 0 : i32
    return %c0_i32, %c0_i32_0 : i32, i32
  }
  func.func @transform_2(%arg0: i32, %arg1: i32) -> (i32, i32) {
    %c0_i32 = arith.constant 0 : i32
    %c0_i32_0 = arith.constant 0 : i32
    %c0_i32_1 = arith.constant 0 : i32
    return %c0_i32, %c0_i32_0 : i32, i32
  }
  func.func @transform_3(%arg0: i32, %arg1: i32) -> (i32, i32, i32) {
    %c0_i32 = arith.constant 0 : i32
    %c0_i32_0 = arith.constant 0 : i32
    %c0_i32_1 = arith.constant 0 : i32
    return %arg1, %c0_i32, %c0_i32_0 : i32, i32, i32
  }
  func.func @transform_4(%arg0: i32, %arg1: i32) -> (i32, i32, i32) {
    %c0_i32 = arith.constant 0 : i32
    %c0_i32_0 = arith.constant 0 : i32
    %c0_i32_1 = arith.constant 0 : i32
    %c0_i32_2 = arith.constant 0 : i32
    return %c0_i32, %c0_i32_0, %c0_i32_1 : i32, i32, i32
  }
  func.func @transform_5(%arg0: i32, %arg1: i32) -> (i32, i32) {
    %c0_i32 = arith.constant 0 : i32
    %c0_i32_0 = arith.constant 0 : i32
    %c0_i32_1 = arith.constant 0 : i32
    return %c0_i32, %c0_i32_0 : i32, i32
  }
  func.func @transform_6(%arg0: i32, %arg1: i32) -> (i32, i32) {
    %c0_i32 = arith.constant 0 : i32
    %c0_i32_0 = arith.constant 0 : i32
    %c0_i32_1 = arith.constant 0 : i32
    return %c0_i32, %c0_i32_0 : i32, i32
  }
  func.func @transform_7(%arg0: i32, %arg1: i32) -> (i32, i32) {
    %c0_i32 = arith.constant 0 : i32
    %c0_i32_0 = arith.constant 0 : i32
    return %arg0, %c0_i32 : i32, i32
  }
}

</mosaic_0001>

<llo_original>
// kernel: tpu_custom_call.1
$region0: #{tpu_custom_call.1}
  #allocation0 [shape = 'u32[]', space=smem, size = 0x4, offset = 0x4, fixed_abs, tag = 'smem constant byte address 0x4 - core index']
  #allocation1 [shape = 'u32[144,128]{1,0:T(1,128)}', space=vmem, size = 0x12000, scoped, tag = 'internal scratch']
  #allocation2 [shape = 'f32[8,32]{1,0:T(8,128)}', space=vmem, size = 0x1000, scoped, tag = 'scratch operand']
  %s0 = inlined_call_operand.vmem [shape: f32[8,128], index: 0, kind: input, shape index: {}]
  %s1 = inlined_call_operand.vmem [shape: bf16[128,32], index: 1, kind: input, shape index: {}]
  %s2 = inlined_call_operand.vmem [shape: f32[1,32], index: 2, kind: input, shape index: {}]
  %s3 = inlined_call_operand.hbm [shape: bf16[31,32,32], index: 3, kind: input, shape index: {}]
  %s4 = inlined_call_operand.vmem [shape: f32[31,1,32], index: 4, kind: input, shape index: {}]
  %s5 = inlined_call_operand.vmem [shape: bf16[32,128], index: 5, kind: input, shape index: {}]
  %s6 = inlined_call_operand.vmem [shape: f32[1,128], index: 6, kind: input, shape index: {}]
  %s7 = inlined_call_operand.hbm [shape: f32[8,128], index: 7, kind: output, shape index: {}]
  %s8 = sld [smem:[#allocation0]]
  $region50: #{tpu_custom_call.1} parent=0
    _
  %s10 = ssub.s32 1, %s8
  %s11 = scalar_select 0, %s10, %s8
  $region1: #{tpu_custom_call.1} parent=0
    #allocation3 [shape = 'u8[253952]{0}', space=vmem, size = 0x3e000, scoped, tag = 'input window, operand 3, single buffered']
    #allocation4 [shape = 's32[1]{0}', space=sflag, size = 0x4, scoped, tag = 'scoped memory for tpu_custom_call.1']
    #allocation5 [shape = 's32[1]{0}', space=sflag, size = 0x4, scoped, tag = 'scoped memory for tpu_custom_call.1']
    #allocation6 [shape = 'u8[4096]{0}', space=vmem, size = 0x1000, scoped, tag = 'output window, operand 0, single buffered']
    %12 = vsyncpa [#allocation4], 0
    %13 = vsyncpa [#allocation5], 0
    // Predicated region
    $region2: #{tpu_custom_call.1} parent=1 // pred_check
      _
    $region3: #{tpu_custom_call.1} parent=1 // pred_check_branch
      %15 = sbr.rel (0) target = $region5
    $region4: #{tpu_custom_call.1} parent=1 // pred_region
      _
    $region5: #{tpu_custom_call.1} parent=1 // pred_fallthru
      _
    // Predicated region
    $region6: #{tpu_custom_call.1} parent=1 // pred_check
      _
    $region7: #{tpu_custom_call.1} parent=1 // pred_check_branch
      %17 = sbr.rel (0) target = $region9
    $region8: #{tpu_custom_call.1} parent=1 // pred_region
      _
    $region9: #{tpu_custom_call.1} parent=1 // pred_fallthru
      _
    // Predicated region
    $region10: #{tpu_custom_call.1} parent=1 // pred_check
      _
    $region11: #{tpu_custom_call.1} parent=1 // pred_check_branch
      %19 = sbr.rel (0) target = $region13
    $region12: #{tpu_custom_call.1} parent=1 // pred_region
      _
    $region13: #{tpu_custom_call.1} parent=1 // pred_fallthru
      _
    // Predicated region
    $region14: #{tpu_custom_call.1} parent=1 // pred_check
      _
    $region15: #{tpu_custom_call.1} parent=1 // pred_check_branch
      %21 = sbr.rel (0) target = $region17
    $region16: #{tpu_custom_call.1} parent=1 // pred_region
      %s23 = ssub.s32 7936, 7936
      %24 = vsyncadd [#allocation4], %s23
      %s25 = sshll.u32 [#allocation3], 4
      %s26 = int_to_ptr.vmem [resolvable:$true] %s25
      %31 = dma.hbm_to_vmem [thread:$0]  %s3, 7936, %s26, [#allocation4], 64, 64, 4
    $region17: #{tpu_custom_call.1} parent=1 // pred_fallthru
      _
    // Predicated region
    $region18: #{tpu_custom_call.1} parent=1 // pred_check
      _
    $region19: #{tpu_custom_call.1} parent=1 // pred_check_branch
      %33 = sbr.rel (0) target = $region21
    $region20: #{tpu_custom_call.1} parent=1 // pred_region
      _
    $region21: #{tpu_custom_call.1} parent=1 // pred_fallthru
      _
    // Predicated region
    $region22: #{tpu_custom_call.1} parent=1 // pred_check
      _
    $region23: #{tpu_custom_call.1} parent=1 // pred_check_branch
      %35 = sbr.rel (0) target = $region25
    $region24: #{tpu_custom_call.1} parent=1 // pred_region
      _
    $region25: #{tpu_custom_call.1} parent=1 // pred_fallthru
      _
    // Predicated region
    $region26: #{tpu_custom_call.1} parent=1 // pred_check
      _
    $region27: #{tpu_custom_call.1} parent=1 // pred_check_branch
      %37 = sbr.rel (0) target = $region29
    $region28: #{tpu_custom_call.1} parent=1 // pred_region
      _
    $region29: #{tpu_custom_call.1} parent=1 // pred_fallthru
      _
    // Predicated region
    $region30: #{tpu_custom_call.1} parent=1 // pred_check
      _
    $region31: #{tpu_custom_call.1} parent=1 // pred_check_branch
      %39 = sbr.rel (0) target = $region33
    $region32: #{tpu_custom_call.1} parent=1 // pred_region
      %40 = dma.done [#allocation4], 7936
    $region33: #{tpu_custom_call.1} parent=1 // pred_fallthru
      _
    %p42 = scmp.eq.s32.totalorder 0, 0
    // Predicated region
    $region34: #{tpu_custom_call.1} parent=1 // pred_check
      %p43 = pneg %p42
    $region35: #{tpu_custom_call.1} parent=1 // pred_check_branch
      %45 = sbr.rel (%p43) target = $region37
    $region36: #{tpu_custom_call.1} parent=1 // pred_region
      %v46 = vld [vmem:[%s0] sm:$0xff]
      %v47 = vld [vmem:[%s1] sm:$0xf]
      %v48 = vld [vmem:[%s1 + $0x4] sm:$0xf]
      %v49 = vld [vmem:[%s1 + $0x8] sm:$0xf]
      %v50 = vld [vmem:[%s1 + $0xc] sm:$0xf]
      %v51 = vld [vmem:[%s1 + $0x10] sm:$0xf]
      %v52 = vld [vmem:[%s1 + $0x14] sm:$0xf]
      %v53 = vld [vmem:[%s1 + $0x18] sm:$0xf]
      %v54 = vld [vmem:[%s1 + $0x1c] sm:$0xf]
      %v55 = vld [vmem:[%s1 + $0x20] sm:$0xf]
      %v56 = vld [vmem:[%s1 + $0x24] sm:$0xf]
      %v57 = vld [vmem:[%s1 + $0x28] sm:$0xf]
      %v58 = vld [vmem:[%s1 + $0x2c] sm:$0xf]
      %v59 = vld [vmem:[%s1 + $0x30] sm:$0xf]
      %v60 = vld [vmem:[%s1 + $0x34] sm:$0xf]
      %v61 = vld [vmem:[%s1 + $0x38] sm:$0xf]
      %v62 = vld [vmem:[%s1 + $0x3c] sm:$0xf]
      %v63 = vpack.c.bf16 %v46, %v46
      %v64 = vld [vmem:[%s2] sm:$0x1]
      %v66 = vlaneseq
      %v67 = vshrl.u32 %v66, 7
      %v68 = vsub.s32 0, %v67
      %v69 = vrot.slane %v64, %v68
      %v87 = vunpack.c.l.b16 %v47
      %v88 = vunpack.c.l.b16 %v48
      %v89 = vunpack.c.l.b16 %v49
      %v90 = vunpack.c.l.b16 %v50
      %v91 = vunpack.c.l.b16 %v51
      %v92 = vunpack.c.l.b16 %v52
      %v93 = vunpack.c.l.b16 %v53
      %v94 = vunpack.c.l.b16 %v54
      %v95 = vunpack.c.l.b16 %v55
      %v96 = vunpack.c.l.b16 %v56
      %v97 = vunpack.c.l.b16 %v57
      %v98 = vunpack.c.l.b16 %v58
      %v99 = vunpack.c.l.b16 %v59
      %v100 = vunpack.c.l.b16 %v60
      %v101 = vunpack.c.l.b16 %v61
      %v102 = vunpack.c.l.b16 %v62
      %v103 = vpack.c.b16 %v88, %v87
      %v104 = vpack.c.b16 %v90, %v89
      %v105 = vpack.c.b16 %v92, %v91
      %v106 = vpack.c.b16 %v94, %v93
      %v107 = vpack.c.b16 %v96, %v95
      %v108 = vpack.c.b16 %v98, %v97
      %v109 = vpack.c.b16 %v100, %v99
      %v110 = vpack.c.b16 %v102, %v101
      %119 = vmatprep.subr.bf16.mxu0 0
      %120 = vmatpush1.bf16.msra.mxu0 %v103
      %121 = vmatprep.subr.bf16.mxu0 0
      %122 = vmatpush1.bf16.msra.mxu0 %v104
      %123 = vmatprep.subr.bf16.mxu0 0
      %124 = vmatpush1.bf16.msra.mxu0 %v105
      %125 = vmatprep.subr.bf16.mxu0 0
      %126 = vmatpush1.bf16.msra.mxu0 %v106
      %127 = vmatprep.subr.bf16.mxu0 0
      %128 = vmatpush1.bf16.msra.mxu0 %v107
      %129 = vmatprep.subr.bf16.mxu0 0
      %130 = vmatpush1.bf16.msra.mxu0 %v108
      %131 = vmatprep.subr.bf16.mxu0 0
      %132 = vmatpush1.bf16.msra.mxu0 %v109
      %133 = vmatprep.subr.bf16.mxu0 0
      %134 = vmatpush1.bf16.msra.mxu0 %v110
      %135 = vmatprep.subr.bf16.mxu0 0
      %136 = vmatpush1.bf16.msra.mxu0 0
      %137 = vmatprep.subr.bf16.mxu0 0
      %138 = vmatpush1.bf16.msra.mxu0 0
      %139 = vmatprep.subr.bf16.mxu0 0
      %140 = vmatpush1.bf16.msra.mxu0 0
      %141 = vmatprep.subr.bf16.mxu0 0
      %142 = vmatpush1.bf16.msra.mxu0 0
      %143 = vmatprep.subr.bf16.mxu0 0
      %144 = vmatpush1.bf16.msra.mxu0 0
      %145 = vmatprep.subr.bf16.mxu0 0
      %146 = vmatpush1.bf16.msra.mxu0 0
      %147 = vmatprep.subr.bf16.mxu0 0
      %148 = vmatpush1.bf16.msra.mxu0 0
      %149 = vmatprep.subr.bf16.mxu0 0
      %150 = vmatpush1.bf16.msra.mxu0 0
      %151 = vmatprep.mubr.bf16.mxu0 0
      %152 = vmatmul.mubr.bf16.gmra.mrb[0].mxu0 %v63
      %v153 = vpop.f32.mrb[0].mxu0
      %v154 = vadd.f32 %v69, %v153
      %v155 = vpop.f32.mrb[0].mxu0
      %v156 = vpop.f32.mrb[0].mxu0
      %v157 = vpop.f32.mrb[0].mxu0
      %158 = vdwg.mxu0
      %v159 = vmax.f32 %v154, 0.0
      %v160 = vmul.f32 %v159, %v159
      %v161 = vmin.f32 %v160, 10.0
      %vm162 = vcmask 261120
      %163 = vst.msk [vmem:[#allocation2] sm:$0xff] %vm162, %v161
    $region37: #{tpu_custom_call.1} parent=1 // pred_fallthru
      _
    %v164 = vld [vmem:[#allocation2] sm:$0xff]
    %v165 = vld [vmem:[#allocation3] sm:$0xf]
    %v166 = vld [vmem:[#allocation3 + $0x4] sm:$0xf]
    %v167 = vld [vmem:[#allocation3 + $0x8] sm:$0xf]
    %v168 = vld [vmem:[#allocation3 + $0xc] sm:$0xf]
    %s169 = smul.u32 0, 31
    %s170 = scalar_lea.vmem %s4, %s169
    %v171 = vld [vmem:[%s170] sm:$0x1]
    %v172 = vpack.c.bf16 %v164, %v164
    %v174 = vlaneseq
    %v175 = vshrl.u32 %v174, 7
    %v176 = vsub.s32 0, %v175
    %v177 = vrot.slane %v171, %v176
    %v183 = vunpack.c.l.b16 %v165
    %v184 = vunpack.c.l.b16 %v166
    %v185 = vunpack.c.l.b16 %v167
    %v186 = vunpack.c.l.b16 %v168
    %v187 = vpack.c.b16 %v184, %v183
    %v188 = vpack.c.b16 %v186, %v185
    %vm191 = vcmask 261120
    %v193 = vsel %vm191, %v172, 0
    %195 = vmatprep.subr.bf16.mxu0 0
    %196 = vmatpush1.bf16.msra.mxu0 %v187
    %197 = vmatprep.subr.bf16.mxu0 0
    %198 = vmatpush1.bf16.msra.mxu0 %v188
    %199 = vmatprep.subr.bf16.mxu0 0
    %200 = vmatpush1.bf16.msra.mxu0 0
    %201 = vmatprep.subr.bf16.mxu0 0
    %202 = vmatpush1.bf16.msra.mxu0 0
    %203 = vmatprep.subr.bf16.mxu0 0
    %204 = vmatpush1.bf16.msra.mxu0 0
    %205 = vmatprep.subr.bf16.mxu0 0
    %206 = vmatpush1.bf16.msra.mxu0 0
    %207 = vmatprep.subr.bf16.mxu0 0
    %208 = vmatpush1.bf16.msra.mxu0 0
    %209 = vmatprep.subr.bf16.mxu0 0
    %210 = vmatpush1.bf16.msra.mxu0 0
    %211 = vmatprep.subr.bf16.mxu0 0
    %212 = vmatpush1.bf16.msra.mxu0 0
    %213 = vmatprep.subr.bf16.mxu0 0
    %214 = vmatpush1.bf16.msra.mxu0 0
    %215 = vmatprep.subr.bf16.mxu0 0
    %216 = vmatpush1.bf16.msra.mxu0 0
    %217 = vmatprep.subr.bf16.mxu0 0
    %218 = vmatpush1.bf16.msra.mxu0 0
    %219 = vmatprep.subr.bf16.mxu0 0
    %220 = vmatpush1.bf16.msra.mxu0 0
    %221 = vmatprep.subr.bf16.mxu0 0
    %222 = vmatpush1.bf16.msra.mxu0 0
    %223 = vmatprep.subr.bf16.mxu0 0
    %224 = vmatpush1.bf16.msra.mxu0 0
    %225 = vmatprep.subr.bf16.mxu0 0
    %226 = vmatpush1.bf16.msra.mxu0 0
    %227 = vmatprep.mubr.bf16.mxu0 0
    %228 = vmatmul.mubr.bf16.gmra.mrb[0].mxu0 %v193
    %v229 = vpop.f32.mrb[0].mxu0
    %v230 = vadd.f32 %v177, %v229
    %v231 = vpop.f32.mrb[0].mxu0
    %v232 = vpop.f32.mrb[0].mxu0
    %v233 = vpop.f32.mrb[0].mxu0
    %234 = vdwg.mxu0
    %v235 = vmax.f32 %v230, 0.0
    %v236 = vmul.f32 %v235, %v235
    %v237 = vmin.f32 %v236, 10.0
    %v238 = vadd.f32 %v164, %v237
    %s239 = scalar_lea.vmem [#allocation3], 16
    %v240 = vld [vmem:[%s239] sm:$0xf]
    %v241 = vld [vmem:[%s239 + $0x4] sm:$0xf]
    %v242 = vld [vmem:[%s239 + $0x8] sm:$0xf]
    %v243 = vld [vmem:[%s239 + $0xc] sm:$0xf]
    %s244 = sadd.s32 %s169, 1
    %s245 = scalar_lea.vmem %s4, %s244
    %v246 = vld [vmem:[%s245] sm:$0x1]
    %v247 = vpack.c.bf16 %v238, %v238
    %v249 = vlaneseq
    %v250 = vshrl.u32 %v249, 7
    %v251 = vsub.s32 0, %v250
    %v252 = vrot.slane %v246, %v251
    %v258 = vunpack.c.l.b16 %v240
    %v259 = vunpack.c.l.b16 %v241
    %v260 = vunpack.c.l.b16 %v242
    %v261 = vunpack.c.l.b16 %v243
    %v262 = vpack.c.b16 %v259, %v258
    %v263 = vpack.c.b16 %v261, %v260
    %v267 = vsel %vm191, %v247, 0
    %269 = vmatprep.subr.bf16.mxu0 0
    %270 = vmatpush1.bf16.msra.mxu0 %v262
    %271 = vmatprep.subr.bf16.mxu0 0
    %272 = vmatpush1.bf16.msra.mxu0 %v263
    %273 = vmatprep.subr.bf16.mxu0 0
    %274 = vmatpush1.bf16.msra.mxu0 0
    %275 = vmatprep.subr.bf16.mxu0 0
    %276 = vmatpush1.bf16.msra.mxu0 0
    %277 = vmatprep.subr.bf16.mxu0 0
    %278 = vmatpush1.bf16.msra.mxu0 0
    %279 = vmatprep.subr.bf16.mxu0 0
    %280 = vmatpush1.bf16.msra.mxu0 0
    %281 = vmatprep.subr.bf16.mxu0 0
    %282 = vmatpush1.bf16.msra.mxu0 0
    %283 = vmatprep.subr.bf16.mxu0 0
    %284 = vmatpush1.bf16.msra.mxu0 0
    %285 = vmatprep.subr.bf16.mxu0 0
    %286 = vmatpush1.bf16.msra.mxu0 0
    %287 = vmatprep.subr.bf16.mxu0 0
    %288 = vmatpush1.bf16.msra.mxu0 0
    %289 = vmatprep.subr.bf16.mxu0 0
    %290 = vmatpush1.bf16.msra.mxu0 0
    %291 = vmatprep.subr.bf16.mxu0 0
    %292 = vmatpush1.bf16.msra.mxu0 0
    %293 = vmatprep.subr.bf16.mxu0 0
    %294 = vmatpush1.bf16.msra.mxu0 0
    %295 = vmatprep.subr.bf16.mxu0 0
    %296 = vmatpush1.bf16.msra.mxu0 0
    %297 = vmatprep.subr.bf16.mxu0 0
    %298 = vmatpush1.bf16.msra.mxu0 0
    %299 = vmatprep.subr.bf16.mxu0 0
    %300 = vmatpush1.bf16.msra.mxu0 0
    %301 = vmatprep.mubr.bf16.mxu0 0
    %302 = vmatmul.mubr.bf16.gmra.mrb[0].mxu0 %v267
    %v303 = vpop.f32.mrb[0].mxu0
    %v304 = vadd.f32 %v252, %v303
    %v305 = vpop.f32.mrb[0].mxu0
    %v306 = vpop.f32.mrb[0].mxu0
    %v307 = vpop.f32.mrb[0].mxu0
    %308 = vdwg.mxu0
    %v309 = vmax.f32 %v304, 0.0
    %v310 = vmul.f32 %v309, %v309
    %v311 = vmin.f32 %v310, 10.0
    %v312 = vadd.f32 %v238, %v311
    %s313 = scalar_lea.vmem [#allocation3], 32
    %v314 = vld [vmem:[%s313] sm:$0xf]
    %v315 = vld [vmem:[%s313 + $0x4] sm:$0xf]
    %v316 = vld [vmem:[%s313 + $0x8] sm:$0xf]
    %v317 = vld [vmem:[%s313 + $0xc] sm:$0xf]
    %s318 = sadd.s32 %s169, 2
    %s319 = scalar_lea.vmem %s4, %s318
    %v320 = vld [vmem:[%s319] sm:$0x1]
    %v321 = vpack.c.bf16 %v312, %v312
    %v323 = vlaneseq
    %v324 = vshrl.u32 %v323, 7
    %v325 = vsub.s32 0, %v324
    %v326 = vrot.slane %v320, %v325
    %v332 = vunpack.c.l.b16 %v314
    %v333 = vunpack.c.l.b16 %v315
    %v334 = vunpack.c.l.b16 %v316
    %v335 = vunpack.c.l.b16 %v317
    %v336 = vpack.c.b16 %v333, %v332
    %v337 = vpack.c.b16 %v335, %v334
    %v341 = vsel %vm191, %v321, 0
    %343 = vmatprep.subr.bf16.mxu0 0
    %344 = vmatpush1.bf16.msra.mxu0 %v336
    %345 = vmatprep.subr.bf16.mxu0 0
    %346 = vmatpush1.bf16.msra.mxu0 %v337
    %347 = vmatprep.subr.bf16.mxu0 0
    %348 = vmatpush1.bf16.msra.mxu0 0
    %349 = vmatprep.subr.bf16.mxu0 0
    %350 = vmatpush1.bf16.msra.mxu0 0
    %351 = vmatprep.subr.bf16.mxu0 0
    %352 = vmatpush1.bf16.msra.mxu0 0
    %353 = vmatprep.subr.bf16.mxu0 0
    %354 = vmatpush1.bf16.msra.mxu0 0
    %355 = vmatprep.subr.bf16.mxu0 0
    %356 = vmatpush1.bf16.msra.mxu0 0
    %357 = vmatprep.subr.bf16.mxu0 0
    %358 = vmatpush1.bf16.msra.mxu0 0
    %359 = vmatprep.subr.bf16.mxu0 0
    %360 = vmatpush1.bf16.msra.mxu0 0
    %361 = vmatprep.subr.bf16.mxu0 0
    %362 = vmatpush1.bf16.msra.mxu0 0
    %363 = vmatprep.subr.bf16.mxu0 0
    %364 = vmatpush1.bf16.msra.mxu0 0
    %365 = vmatprep.subr.bf16.mxu0 0
    %366 = vmatpush1.bf16.msra.mxu0 0
    %367 = vmatprep.subr.bf16.mxu0 0
    %368 = vmatpush1.bf16.msra.mxu0 0
    %369 = vmatprep.subr.bf16.mxu0 0
    %370 = vmatpush1.bf16.msra.mxu0 0
    %371 = vmatprep.subr.bf16.mxu0 0
    %372 = vmatpush1.bf16.msra.mxu0 0
    %373 = vmatprep.subr.bf16.mxu0 0
    %374 = vmatpush1.bf16.msra.mxu0 0
    %375 = vmatprep.mubr.bf16.mxu0 0
    %376 = vmatmul.mubr.bf16.gmra.mrb[0].mxu0 %v341
    %v377 = vpop.f32.mrb[0].mxu0
    %v378 = vadd.f32 %v326, %v377
    %v379 = vpop.f32.mrb[0].mxu0
    %v380 = vpop.f32.mrb[0].mxu0
    %v381 = vpop.f32.mrb[0].mxu0
    %382 = vdwg.mxu0
    %v383 = vmax.f32 %v378, 0.0
    %v384 = vmul.f32 %v383, %v383
    %v385 = vmin.f32 %v384, 10.0
    %v386 = vadd.f32 %v312, %v385
    %s387 = scalar_lea.vmem [#allocation3], 48
    %v388 = vld [vmem:[%s387] sm:$0xf]
    %v389 = vld [vmem:[%s387 + $0x4] sm:$0xf]
    %v390 = vld [vmem:[%s387 + $0x8] sm:$0xf]
    %v391 = vld [vmem:[%s387 + $0xc] sm:$0xf]
    %s392 = sadd.s32 %s169, 3
    %s393 = scalar_lea.vmem %s4, %s392
    %v394 = vld [vmem:[%s393] sm:$0x1]
    %v395 = vpack.c.bf16 %v386, %v386
    %v397 = vlaneseq
    %v398 = vshrl.u32 %v397, 7
    %v399 = vsub.s32 0, %v398
    %v400 = vrot.slane %v394, %v399
    %v406 = vunpack.c.l.b16 %v388
    %v407 = vunpack.c.l.b16 %v389
    %v408 = vunpack.c.l.b16 %v390
    %v409 = vunpack.c.l.b16 %v391
    %v410 = vpack.c.b16 %v407, %v406
    %v411 = vpack.c.b16 %v409, %v408
    %v415 = vsel %vm191, %v395, 0
    %417 = vmatprep.subr.bf16.mxu0 0
    %418 = vmatpush1.bf16.msra.mxu0 %v410
    %419 = vmatprep.subr.bf16.mxu0 0
    %420 = vmatpush1.bf16.msra.mxu0 %v411
    %421 = vmatprep.subr.bf16.mxu0 0
    %422 = vmatpush1.bf16.msra.mxu0 0
    %423 = vmatprep.subr.bf16.mxu0 0
    %424 = vmatpush1.bf16.msra.mxu0 0
    %425 = vmatprep.subr.bf16.mxu0 0
    %426 = vmatpush1.bf16.msra.mxu0 0
    %427 = vmatprep.subr.bf16.mxu0 0
    %428 = vmatpush1.bf16.msra.mxu0 0
    %429 = vmatprep.subr.bf16.mxu0 0
    %430 = vmatpush1.bf16.msra.mxu0 0
    %431 = vmatprep.subr.bf16.mxu0 0
    %432 = vmatpush1.bf16.msra.mxu0 0
    %433 = vmatprep.subr.bf16.mxu0 0
    %434 = vmatpush1.bf16.msra.mxu0 0
    %435 = vmatprep.subr.bf16.mxu0 0
    %436 = vmatpush1.bf16.msra.mxu0 0
    %437 = vmatprep.subr.bf16.mxu0 0
    %438 = vmatpush1.bf16.msra.mxu0 0
    %439 = vmatprep.subr.bf16.mxu0 0
    %440 = vmatpush1.bf16.msra.mxu0 0
    %441 = vmatprep.subr.bf16.mxu0 0
    %442 = vmatpush1.bf16.msra.mxu0 0
    %443 = vmatprep.subr.bf16.mxu0 0
    %444 = vmatpush1.bf16.msra.mxu0 0
    %445 = vmatprep.subr.bf16.mxu0 0
    %446 = vmatpush1.bf16.msra.mxu0 0
    %447 = vmatprep.subr.bf16.mxu0 0
    %448 = vmatpush1.bf16.msra.mxu0 0
    %449 = vmatprep.mubr.bf16.mxu0 0
    %450 = vmatmul.mubr.bf16.gmra.mrb[0].mxu0 %v415
    %v451 = vpop.f32.mrb[0].mxu0
    %v452 = vadd.f32 %v400, %v451
    %v453 = vpop.f32.mrb[0].mxu0
    %v454 = vpop.f32.mrb[0].mxu0
    %v455 = vpop.f32.mrb[0].mxu0
    %456 = vdwg.mxu0
    %v457 = vmax.f32 %v452, 0.0
    %v458 = vmul.f32 %v457, %v457
    %v459 = vmin.f32 %v458, 10.0
    %v460 = vadd.f32 %v386, %v459
    %s461 = scalar_lea.vmem [#allocation3], 64
    %v462 = vld [vmem:[%s461] sm:$0xf]
    %v463 = vld [vmem:[%s461 + $0x4] sm:$0xf]
    %v464 = vld [vmem:[%s461 + $0x8] sm:$0xf]
    %v465 = vld [vmem:[%s461 + $0xc] sm:$0xf]
    %s466 = sadd.s32 %s169, 4
    %s467 = scalar_lea.vmem %s4, %s466
    %v468 = vld [vmem:[%s467] sm:$0x1]
    %v469 = vpack.c.bf16 %v460, %v460
    %v471 = vlaneseq
    %v472 = vshrl.u32 %v471, 7
    %v473 = vsub.s32 0, %v472
    %v474 = vrot.slane %v468, %v473
    %v480 = vunpack.c.l.b16 %v462
    %v481 = vunpack.c.l.b16 %v463
    %v482 = vunpack.c.l.b16 %v464
    %v483 = vunpack.c.l.b16 %v465
    %v484 = vpack.c.b16 %v481, %v480
    %v485 = vpack.c.b16 %v483, %v482
    %v489 = vsel %vm191, %v469, 0
    %491 = vmatprep.subr.bf16.mxu0 0
    %492 = vmatpush1.bf16.msra.mxu0 %v484
    %493 = vmatprep.subr.bf16.mxu0 0
    %494 = vmatpush1.bf16.msra.mxu0 %v485
    %495 = vmatprep.subr.bf16.mxu0 0
    %496 = vmatpush1.bf16.msra.mxu0 0
    %497 = vmatprep.subr.bf16.mxu0 0
    %498 = vmatpush1.bf16.msra.mxu0 0
    %499 = vmatprep.subr.bf16.mxu0 0
    %500 = vmatpush1.bf16.msra.mxu0 0
    %501 = vmatprep.subr.bf16.mxu0 0
    %502 = vmatpush1.bf16.msra.mxu0 0
    %503 = vmatprep.subr.bf16.mxu0 0
    %504 = vmatpush1.bf16.msra.mxu0 0
    %505 = vmatprep.subr.bf16.mxu0 0
    %506 = vmatpush1.bf16.msra.mxu0 0
    %507 = vmatprep.subr.bf16.mxu0 0
    %508 = vmatpush1.bf16.msra.mxu0 0
    %509 = vmatprep.subr.bf16.mxu0 0
    %510 = vmatpush1.bf16.msra.mxu0 0
    %511 = vmatprep.subr.bf16.mxu0 0
    %512 = vmatpush1.bf16.msra.mxu0 0
    %513 = vmatprep.subr.bf16.mxu0 0
    %514 = vmatpush1.bf16.msra.mxu0 0
    %515 = vmatprep.subr.bf16.mxu0 0
    %516 = vmatpush1.bf16.msra.mxu0 0
    %517 = vmatprep.subr.bf16.mxu0 0
    %518 = vmatpush1.bf16.msra.mxu0 0
    %519 = vmatprep.subr.bf16.mxu0 0
    %520 = vmatpush1.bf16.msra.mxu0 0
    %521 = vmatprep.subr.bf16.mxu0 0
    %522 = vmatpush1.bf16.msra.mxu0 0
    %523 = vmatprep.mubr.bf16.mxu0 0
    %524 = vmatmul.mubr.bf16.gmra.mrb[0].mxu0 %v489
    %v525 = vpop.f32.mrb[0].mxu0
    %v526 = vadd.f32 %v474, %v525
    %v527 = vpop.f32.mrb[0].mxu0
    %v528 = vpop.f32.mrb[0].mxu0
    %v529 = vpop.f32.mrb[0].mxu0
    %530 = vdwg.mxu0
    %v531 = vmax.f32 %v526, 0.0
    %v532 = vmul.f32 %v531, %v531
    %v533 = vmin.f32 %v532, 10.0
    %v534 = vadd.f32 %v460, %v533
    %s535 = scalar_lea.vmem [#allocation3], 80
    %v536 = vld [vmem:[%s535] sm:$0xf]
    %v537 = vld [vmem:[%s535 + $0x4] sm:$0xf]
    %v538 = vld [vmem:[%s535 + $0x8] sm:$0xf]
    %v539 = vld [vmem:[%s535 + $0xc] sm:$0xf]
    %s540 = sadd.s32 %s169, 5
    %s541 = scalar_lea.vmem %s4, %s540
    %v542 = vld [vmem:[%s541] sm:$0x1]
    %v543 = vpack.c.bf16 %v534, %v534
    %v545 = vlaneseq
    %v546 = vshrl.u32 %v545, 7
    %v547 = vsub.s32 0, %v546
    %v548 = vrot.slane %v542, %v547
    %v554 = vunpack.c.l.b16 %v536
    %v555 = vunpack.c.l.b16 %v537
    %v556 = vunpack.c.l.b16 %v538
    %v557 = vunpack.c.l.b16 %v539
    %v558 = vpack.c.b16 %v555, %v554
    %v559 = vpack.c.b16 %v557, %v556
    %v563 = vsel %vm191, %v543, 0
    %565 = vmatprep.subr.bf16.mxu0 0
    %566 = vmatpush1.bf16.msra.mxu0 %v558
    %567 = vmatprep.subr.bf16.mxu0 0
    %568 = vmatpush1.bf16.msra.mxu0 %v559
    %569 = vmatprep.subr.bf16.mxu0 0
    %570 = vmatpush1.bf16.msra.mxu0 0
    %571 = vmatprep.subr.bf16.mxu0 0
    %572 = vmatpush1.bf16.msra.mxu0 0
    %573 = vmatprep.subr.bf16.mxu0 0
    %574 = vmatpush1.bf16.msra.mxu0 0
    %575 = vmatprep.subr.bf16.mxu0 0
    %576 = vmatpush1.bf16.msra.mxu0 0
    %577 = vmatprep.subr.bf16.mxu0 0
    %578 = vmatpush1.bf16.msra.mxu0 0
    %579 = vmatprep.subr.bf16.mxu0 0
    %580 = vmatpush1.bf16.msra.mxu0 0
    %581 = vmatprep.subr.bf16.mxu0 0
    %582 = vmatpush1.bf16.msra.mxu0 0
    %583 = vmatprep.subr.bf16.mxu0 0
    %584 = vmatpush1.bf16.msra.mxu0 0
    %585 = vmatprep.subr.bf16.mxu0 0
    %586 = vmatpush1.bf16.msra.mxu0 0
    %587 = vmatprep.subr.bf16.mxu0 0
    %588 = vmatpush1.bf16.msra.mxu0 0
    %589 = vmatprep.subr.bf16.mxu0 0
    %590 = vmatpush1.bf16.msra.mxu0 0
    %591 = vmatprep.subr.bf16.mxu0 0
    %592 = vmatpush1.bf16.msra.mxu0 0
    %593 = vmatprep.subr.bf16.mxu0 0
    %594 = vmatpush1.bf16.msra.mxu0 0
    %595 = vmatprep.subr.bf16.mxu0 0
    %596 = vmatpush1.bf16.msra.mxu0 0
    %597 = vmatprep.mubr.bf16.mxu0 0
    %598 = vmatmul.mubr.bf16.gmra.mrb[0].mxu0 %v563
    %v599 = vpop.f32.mrb[0].mxu0
    %v600 = vadd.f32 %v548, %v599
    %v601 = vpop.f32.mrb[0].mxu0
    %v602 = vpop.f32.mrb[0].mxu0
    %v603 = vpop.f32.mrb[0].mxu0
    %604 = vdwg.mxu0
    %v605 = vmax.f32 %v600, 0.0
    %v606 = vmul.f32 %v605, %v605
    %v607 = vmin.f32 %v606, 10.0
    %v608 = vadd.f32 %v534, %v607
    %s609 = scalar_lea.vmem [#allocation3], 96
    %v610 = vld [vmem:[%s609] sm:$0xf]
    %v611 = vld [vmem:[%s609 + $0x4] sm:$0xf]
    %v612 = vld [vmem:[%s609 + $0x8] sm:$0xf]
    %v613 = vld [vmem:[%s609 + $0xc] sm:$0xf]
    %s614 = sadd.s32 %s169, 6
    %s615 = scalar_lea.vmem %s4, %s614
    %v616 = vld [vmem:[%s615] sm:$0x1]
    %v617 = vpack.c.bf16 %v608, %v608
    %v619 = vlaneseq
    %v620 = vshrl.u32 %v619, 7
    %v621 = vsub.s32 0, %v620
    %v622 = vrot.slane %v616, %v621
    %v628 = vunpack.c.l.b16 %v610
    %v629 = vunpack.c.l.b16 %v611
    %v630 = vunpack.c.l.b16 %v612
    %v631 = vunpack.c.l.b16 %v613
    %v632 = vpack.c.b16 %v629, %v628
    %v633 = vpack.c.b16 %v631, %v630
    %v637 = vsel %vm191, %v617, 0
    %639 = vmatprep.subr.bf16.mxu0 0
    %640 = vmatpush1.bf16.msra.mxu0 %v632
    %641 = vmatprep.subr.bf16.mxu0 0
    %642 = vmatpush1.bf16.msra.mxu0 %v633
    %643 = vmatprep.subr.bf16.mxu0 0
    %644 = vmatpush1.bf16.msra.mxu0 0
    %645 = vmatprep.subr.bf16.mxu0 0
    %646 = vmatpush1.bf16.msra.mxu0 0
    %647 = vmatprep.subr.bf16.mxu0 0
    %648 = vmatpush1.bf16.msra.mxu0 0
    %649 = vmatprep.subr.bf16.mxu0 0
    %650 = vmatpush1.bf16.msra.mxu0 0
    %651 = vmatprep.subr.bf16.mxu0 0
    %652 = vmatpush1.bf16.msra.mxu0 0
    %653 = vmatprep.subr.bf16.mxu0 0
    %654 = vmatpush1.bf16.msra.mxu0 0
    %655 = vmatprep.subr.bf16.mxu0 0
    %656 = vmatpush1.bf16.msra.mxu0 0
    %657 = vmatprep.subr.bf16.mxu0 0
    %658 = vmatpush1.bf16.msra.mxu0 0
    %659 = vmatprep.subr.bf16.mxu0 0
    %660 = vmatpush1.bf16.msra.mxu0 0
    %661 = vmatprep.subr.bf16.mxu0 0
    %662 = vmatpush1.bf16.msra.mxu0 0
    %663 = vmatprep.subr.bf16.mxu0 0
    %664 = vmatpush1.bf16.msra.mxu0 0
    %665 = vmatprep.subr.bf16.mxu0 0
    %666 = vmatpush1.bf16.msra.mxu0 0
    %667 = vmatprep.subr.bf16.mxu0 0
    %668 = vmatpush1.bf16.msra.mxu0 0
    %669 = vmatprep.subr.bf16.mxu0 0
    %670 = vmatpush1.bf16.msra.mxu0 0
    %671 = vmatprep.mubr.bf16.mxu0 0
    %672 = vmatmul.mubr.bf16.gmra.mrb[0].mxu0 %v637
    %v673 = vpop.f32.mrb[0].mxu0
    %v674 = vadd.f32 %v622, %v673
    %v675 = vpop.f32.mrb[0].mxu0
    %v676 = vpop.f32.mrb[0].mxu0
    %v677 = vpop.f32.mrb[0].mxu0
    %678 = vdwg.mxu0
    %v679 = vmax.f32 %v674, 0.0
    %v680 = vmul.f32 %v679, %v679
    %v681 = vmin.f32 %v680, 10.0
    %v682 = vadd.f32 %v608, %v681
    %s683 = scalar_lea.vmem [#allocation3], 112
    %v684 = vld [vmem:[%s683] sm:$0xf]
    %v685 = vld [vmem:[%s683 + $0x4] sm:$0xf]
    %v686 = vld [vmem:[%s683 + $0x8] sm:$0xf]
    %v687 = vld [vmem:[%s683 + $0xc] sm:$0xf]
    %s688 = sadd.s32 %s169, 7
    %s689 = scalar_lea.vmem %s4, %s688
    %v690 = vld [vmem:[%s689] sm:$0x1]
    %v691 = vpack.c.bf16 %v682, %v682
    %v693 = vlaneseq
    %v694 = vshrl.u32 %v693, 7
    %v695 = vsub.s32 0, %v694
    %v696 = vrot.slane %v690, %v695
    %v702 = vunpack.c.l.b16 %v684
    %v703 = vunpack.c.l.b16 %v685
    %v704 = vunpack.c.l.b16 %v686
    %v705 = vunpack.c.l.b16 %v687
    %v706 = vpack.c.b16 %v703, %v702
    %v707 = vpack.c.b16 %v705, %v704
    %v711 = vsel %vm191, %v691, 0
    %713 = vmatprep.subr.bf16.mxu0 0
    %714 = vmatpush1.bf16.msra.mxu0 %v706
    %715 = vmatprep.subr.bf16.mxu0 0
    %716 = vmatpush1.bf16.msra.mxu0 %v707
    %717 = vmatprep.subr.bf16.mxu0 0
    %718 = vmatpush1.bf16.msra.mxu0 0
    %719 = vmatprep.subr.bf16.mxu0 0
    %720 = vmatpush1.bf16.msra.mxu0 0
    %721 = vmatprep.subr.bf16.mxu0 0
    %722 = vmatpush1.bf16.msra.mxu0 0
    %723 = vmatprep.subr.bf16.mxu0 0
    %724 = vmatpush1.bf16.msra.mxu0 0
    %725 = vmatprep.subr.bf16.mxu0 0
    %726 = vmatpush1.bf16.msra.mxu0 0
    %727 = vmatprep.subr.bf16.mxu0 0
    %728 = vmatpush1.bf16.msra.mxu0 0
    %729 = vmatprep.subr.bf16.mxu0 0
    %730 = vmatpush1.bf16.msra.mxu0 0
    %731 = vmatprep.subr.bf16.mxu0 0
    %732 = vmatpush1.bf16.msra.mxu0 0
    %733 = vmatprep.subr.bf16.mxu0 0
    %734 = vmatpush1.bf16.msra.mxu0 0
    %735 = vmatprep.subr.bf16.mxu0 0
    %736 = vmatpush1.bf16.msra.mxu0 0
    %737 = vmatprep.subr.bf16.mxu0 0
    %738 = vmatpush1.bf16.msra.mxu0 0
    %739 = vmatprep.subr.bf16.mxu0 0
    %740 = vmatpush1.bf16.msra.mxu0 0
    %741 = vmatprep.subr.bf16.mxu0 0
    %742 = vmatpush1.bf16.msra.mxu0 0
    %743 = vmatprep.subr.bf16.mxu0 0
    %744 = vmatpush1.bf16.msra.mxu0 0
    %745 = vmatprep.mubr.bf16.mxu0 0
    %746 = vmatmul.mubr.bf16.gmra.mrb[0].mxu0 %v711
    %v747 = vpop.f32.mrb[0].mxu0
    %v748 = vadd.f32 %v696, %v747
    %v749 = vpop.f32.mrb[0].mxu0
    %v750 = vpop.f32.mrb[0].mxu0
    %v751 = vpop.f32.mrb[0].mxu0
    %752 = vdwg.mxu0
    %v753 = vmax.f32 %v748, 0.0
    %v754 = vmul.f32 %v753, %v753
    %v755 = vmin.f32 %v754, 10.0
    %v756 = vadd.f32 %v682, %v755
    %s757 = scalar_lea.vmem [#allocation3], 128
    %v758 = vld [vmem:[%s757] sm:$0xf]
    %v759 = vld [vmem:[%s757 + $0x4] sm:$0xf]
    %v760 = vld [vmem:[%s757 + $0x8] sm:$0xf]
    %v761 = vld [vmem:[%s757 + $0xc] sm:$0xf]
    %s762 = sadd.s32 %s169, 8
    %s763 = scalar_lea.vmem %s4, %s762
    %v764 = vld [vmem:[%s763] sm:$0x1]
    %v765 = vpack.c.bf16 %v756, %v756
    %v767 = vlaneseq
    %v768 = vshrl.u32 %v767, 7
    %v769 = vsub.s32 0, %v768
    %v770 = vrot.slane %v764, %v769
    %v776 = vunpack.c.l.b16 %v758
    %v777 = vunpack.c.l.b16 %v759
    %v778 = vunpack.c.l.b16 %v760
    %v779 = vunpack.c.l.b16 %v761
    %v780 = vpack.c.b16 %v777, %v776
    %v781 = vpack.c.b16 %v779, %v778
    %v785 = vsel %vm191, %v765, 0
    %787 = vmatprep.subr.bf16.mxu0 0
    %788 = vmatpush1.bf16.msra.mxu0 %v780
    %789 = vmatprep.subr.bf16.mxu0 0
    %790 = vmatpush1.bf16.msra.mxu0 %v781
    %791 = vmatprep.subr.bf16.mxu0 0
    %792 = vmatpush1.bf16.msra.mxu0 0
    %793 = vmatprep.subr.bf16.mxu0 0
    %794 = vmatpush1.bf16.msra.mxu0 0
    %795 = vmatprep.subr.bf16.mxu0 0
    %796 = vmatpush1.bf16.msra.mxu0 0
    %797 = vmatprep.subr.bf16.mxu0 0
    %798 = vmatpush1.bf16.msra.mxu0 0
    %799 = vmatprep.subr.bf16.mxu0 0
    %800 = vmatpush1.bf16.msra.mxu0 0
    %801 = vmatprep.subr.bf16.mxu0 0
    %802 = vmatpush1.bf16.msra.mxu0 0
    %803 = vmatprep.subr.bf16.mxu0 0
    %804 = vmatpush1.bf16.msra.mxu0 0
    %805 = vmatprep.subr.bf16.mxu0 0
    %806 = vmatpush1.bf16.msra.mxu0 0
    %807 = vmatprep.subr.bf16.mxu0 0
    %808 = vmatpush1.bf16.msra.mxu0 0
    %809 = vmatprep.subr.bf16.mxu0 0
    %810 = vmatpush1.bf16.msra.mxu0 0
    %811 = vmatprep.subr.bf16.mxu0 0
    %812 = vmatpush1.bf16.msra.mxu0 0
    %813 = vmatprep.subr.bf16.mxu0 0
    %814 = vmatpush1.bf16.msra.mxu0 0
    %815 = vmatprep.subr.bf16.mxu0 0
    %816 = vmatpush1.bf16.msra.mxu0 0
    %817 = vmatprep.subr.bf16.mxu0 0
    %818 = vmatpush1.bf16.msra.mxu0 0
    %819 = vmatprep.mubr.bf16.mxu0 0
    %820 = vmatmul.mubr.bf16.gmra.mrb[0].mxu0 %v785
    %v821 = vpop.f32.mrb[0].mxu0
    %v822 = vadd.f32 %v770, %v821
    %v823 = vpop.f32.mrb[0].mxu0
    %v824 = vpop.f32.mrb[0].mxu0
    %v825 = vpop.f32.mrb[0].mxu0
    %826 = vdwg.mxu0
    %v827 = vmax.f32 %v822, 0.0
    %v828 = vmul.f32 %v827, %v827
    %v829 = vmin.f32 %v828, 10.0
    %v830 = vadd.f32 %v756, %v829
    %s831 = scalar_lea.vmem [#allocation3], 144
    %v832 = vld [vmem:[%s831] sm:$0xf]
    %v833 = vld [vmem:[%s831 + $0x4] sm:$0xf]
    %v834 = vld [vmem:[%s831 + $0x8] sm:$0xf]
    %v835 = vld [vmem:[%s831 + $0xc] sm:$0xf]
    %s836 = sadd.s32 %s169, 9
    %s837 = scalar_lea.vmem %s4, %s836
    %v838 = vld [vmem:[%s837] sm:$0x1]
    %v839 = vpack.c.bf16 %v830, %v830
    %v841 = vlaneseq
    %v842 = vshrl.u32 %v841, 7
    %v843 = vsub.s32 0, %v842
    %v844 = vrot.slane %v838, %v843
    %v850 = vunpack.c.l.b16 %v832
    %v851 = vunpack.c.l.b16 %v833
    %v852 = vunpack.c.l.b16 %v834
    %v853 = vunpack.c.l.b16 %v835
    %v854 = vpack.c.b16 %v851, %v850
    %v855 = vpack.c.b16 %v853, %v852
    %v859 = vsel %vm191, %v839, 0
    %861 = vmatprep.subr.bf16.mxu0 0
    %862 = vmatpush1.bf16.msra.mxu0 %v854
    %863 = vmatprep.subr.bf16.mxu0 0
    %864 = vmatpush1.bf16.msra.mxu0 %v855
    %865 = vmatprep.subr.bf16.mxu0 0
    %866 = vmatpush1.bf16.msra.mxu0 0
    %867 = vmatprep.subr.bf16.mxu0 0
    %868 = vmatpush1.bf16.msra.mxu0 0
    %869 = vmatprep.subr.bf16.mxu0 0
    %870 = vmatpush1.bf16.msra.mxu0 0
    %871 = vmatprep.subr.bf16.mxu0 0
    %872 = vmatpush1.bf16.msra.mxu0 0
    %873 = vmatprep.subr.bf16.mxu0 0
    %874 = vmatpush1.bf16.msra.mxu0 0
    %875 = vmatprep.subr.bf16.mxu0 0
    %876 = vmatpush1.bf16.msra.mxu0 0
    %877 = vmatprep.subr.bf16.mxu0 0
    %878 = vmatpush1.bf16.msra.mxu0 0
    %879 = vmatprep.subr.bf16.mxu0 0
    %880 = vmatpush1.bf16.msra.mxu0 0
    %881 = vmatprep.subr.bf16.mxu0 0
    %882 = vmatpush1.bf16.msra.mxu0 0
    %883 = vmatprep.subr.bf16.mxu0 0
    %884 = vmatpush1.bf16.msra.mxu0 0
    %885 = vmatprep.subr.bf16.mxu0 0
    %886 = vmatpush1.bf16.msra.mxu0 0
    %887 = vmatprep.subr.bf16.mxu0 0
    %888 = vmatpush1.bf16.msra.mxu0 0
    %889 = vmatprep.subr.bf16.mxu0 0
    %890 = vmatpush1.bf16.msra.mxu0 0
    %891 = vmatprep.subr.bf16.mxu0 0
    %892 = vmatpush1.bf16.msra.mxu0 0
    %893 = vmatprep.mubr.bf16.mxu0 0
    %894 = vmatmul.mubr.bf16.gmra.mrb[0].mxu0 %v859
    %v895 = vpop.f32.mrb[0].mxu0
    %v896 = vadd.f32 %v844, %v895
    %v897 = vpop.f32.mrb[0].mxu0
    %v898 = vpop.f32.mrb[0].mxu0
    %v899 = vpop.f32.mrb[0].mxu0
    %900 = vdwg.mxu0
    %v901 = vmax.f32 %v896, 0.0
    %v902 = vmul.f32 %v901, %v901
    %v903 = vmin.f32 %v902, 10.0
    %v904 = vadd.f32 %v830, %v903
    %s905 = scalar_lea.vmem [#allocation3], 160
    %v906 = vld [vmem:[%s905] sm:$0xf]
    %v907 = vld [vmem:[%s905 + $0x4] sm:$0xf]
    %v908 = vld [vmem:[%s905 + $0x8] sm:$0xf]
    %v909 = vld [vmem:[%s905 + $0xc] sm:$0xf]
    %s910 = sadd.s32 %s169, 10
    %s911 = scalar_lea.vmem %s4, %s910
    %v912 = vld [vmem:[%s911] sm:$0x1]
    %v913 = vpack.c.bf16 %v904, %v904
    %v915 = vlaneseq
    %v916 = vshrl.u32 %v915, 7
    %v917 = vsub.s32 0, %v916
    %v918 = vrot.slane %v912, %v917
    %v924 = vunpack.c.l.b16 %v906
    %v925 = vunpack.c.l.b16 %v907
    %v926 = vunpack.c.l.b16 %v908
    %v927 = vunpack.c.l.b16 %v909
    %v928 = vpack.c.b16 %v925, %v924
    %v929 = vpack.c.b16 %v927, %v926
    %v933 = vsel %vm191, %v913, 0
    %935 = vmatprep.subr.bf16.mxu0 0
    %936 = vmatpush1.bf16.msra.mxu0 %v928
    %937 = vmatprep.subr.bf16.mxu0 0
    %938 = vmatpush1.bf16.msra.mxu0 %v929
    %939 = vmatprep.subr.bf16.mxu0 0
    %940 = vmatpush1.bf16.msra.mxu0 0
    %941 = vmatprep.subr.bf16.mxu0 0
    %942 = vmatpush1.bf16.msra.mxu0 0
    %943 = vmatprep.subr.bf16.mxu0 0
    %944 = vmatpush1.bf16.msra.mxu0 0
    %945 = vmatprep.subr.bf16.mxu0 0
    %946 = vmatpush1.bf16.msra.mxu0 0
    %947 = vmatprep.subr.bf16.mxu0 0
    %948 = vmatpush1.bf16.msra.mxu0 0
    %949 = vmatprep.subr.bf16.mxu0 0
    %950 = vmatpush1.bf16.msra.mxu0 0
    %951 = vmatprep.subr.bf16.mxu0 0
    %952 = vmatpush1.bf16.msra.mxu0 0
    %953 = vmatprep.subr.bf16.mxu0 0
    %954 = vmatpush1.bf16.msra.mxu0 0
    %955 = vmatprep.subr.bf16.mxu0 0
    %956 = vmatpush1.bf16.msra.mxu0 0
    %957 = vmatprep.subr.bf16.mxu0 0
    %958 = vmatpush1.bf16.msra.mxu0 0
    %959 = vmatprep.subr.bf16.mxu0 0
    %960 = vmatpush1.bf16.msra.mxu0 0
    %961 = vmatprep.subr.bf16.mxu0 0
    %962 = vmatpush1.bf16.msra.mxu0 0
    %963 = vmatprep.subr.bf16.mxu0 0
    %964 = vmatpush1.bf16.msra.mxu0 0
    %965 = vmatprep.subr.bf16.mxu0 0
    %966 = vmatpush1.bf16.msra.mxu0 0
    %967 = vmatprep.mubr.bf16.mxu0 0
    %968 = vmatmul.mubr.bf16.gmra.mrb[0].mxu0 %v933
    %v969 = vpop.f32.mrb[0].mxu0
    %v970 = vadd.f32 %v918, %v969
    %v971 = vpop.f32.mrb[0].mxu0
    %v972 = vpop.f32.mrb[0].mxu0
    %v973 = vpop.f32.mrb[0].mxu0
    %974 = vdwg.mxu0
    %v975 = vmax.f32 %v970, 0.0
    %v976 = vmul.f32 %v975, %v975
    %v977 = vmin.f32 %v976, 10.0
    %v978 = vadd.f32 %v904, %v977
    %s979 = scalar_lea.vmem [#allocation3], 176
    %v980 = vld [vmem:[%s979] sm:$0xf]
    %v981 = vld [vmem:[%s979 + $0x4] sm:$0xf]
    %v982 = vld [vmem:[%s979 + $0x8] sm:$0xf]
    %v983 = vld [vmem:[%s979 + $0xc] sm:$0xf]
    %s984 = sadd.s32 %s169, 11
    %s985 = scalar_lea.vmem %s4, %s984
    %v986 = vld [vmem:[%s985] sm:$0x1]
    %v987 = vpack.c.bf16 %v978, %v978
    %v989 = vlaneseq
    %v990 = vshrl.u32 %v989, 7
    %v991 = vsub.s32 0, %v990
    %v992 = vrot.slane %v986, %v991
    %v998 = vunpack.c.l.b16 %v980
    %v999 = vunpack.c.l.b16 %v981
    %v1000 = vunpack.c.l.b16 %v982
    %v1001 = vunpack.c.l.b16 %v983
    %v1002 = vpack.c.b16 %v999, %v998
    %v1003 = vpack.c.b16 %v1001, %v1000
    %v1007 = vsel %vm191, %v987, 0
    %1009 = vmatprep.subr.bf16.mxu0 0
    %1010 = vmatpush1.bf16.msra.mxu0 %v1002
    %1011 = vmatprep.subr.bf16.mxu0 0
    %1012 = vmatpush1.bf16.msra.mxu0 %v1003
    %1013 = vmatprep.subr.bf16.mxu0 0
    %1014 = vmatpush1.bf16.msra.mxu0 0
    %1015 = vmatprep.subr.bf16.mxu0 0
    %1016 = vmatpush1.bf16.msra.mxu0 0
    %1017 = vmatprep.subr.bf16.mxu0 0
    %1018 = vmatpush1.bf16.msra.mxu0 0
    %1019 = vmatprep.subr.bf16.mxu0 0
    %1020 = vmatpush1.bf16.msra.mxu0 0
    %1021 = vmatprep.subr.bf16.mxu0 0
    %1022 = vmatpush1.bf16.msra.mxu0 0
    %1023 = vmatprep.subr.bf16.mxu0 0
    %1024 = vmatpush1.bf16.msra.mxu0 0
    %1025 = vmatprep.subr.bf16.mxu0 0
    %1026 = vmatpush1.bf16.msra.mxu0 0
    %1027 = vmatprep.subr.bf16.mxu0 0
    %1028 = vmatpush1.bf16.msra.mxu0 0
    %1029 = vmatprep.subr.bf16.mxu0 0
    %1030 = vmatpush1.bf16.msra.mxu0 0
    %1031 = vmatprep.subr.bf16.mxu0 0
    %1032 = vmatpush1.bf16.msra.mxu0 0
    %1033 = vmatprep.subr.bf16.mxu0 0
    %1034 = vmatpush1.bf16.msra.mxu0 0
    %1035 = vmatprep.subr.bf16.mxu0 0
    %1036 = vmatpush1.bf16.msra.mxu0 0
    %1037 = vmatprep.subr.bf16.mxu0 0
    %1038 = vmatpush1.bf16.msra.mxu0 0
    %1039 = vmatprep.subr.bf16.mxu0 0
    %1040 = vmatpush1.bf16.msra.mxu0 0
    %1041 = vmatprep.mubr.bf16.mxu0 0
    %1042 = vmatmul.mubr.bf16.gmra.mrb[0].mxu0 %v1007
    %v1043 = vpop.f32.mrb[0].mxu0
    %v1044 = vadd.f32 %v992, %v1043
    %v1045 = vpop.f32.mrb[0].mxu0
    %v1046 = vpop.f32.mrb[0].mxu0
    %v1047 = vpop.f32.mrb[0].mxu0
    %1048 = vdwg.mxu0
    %v1049 = vmax.f32 %v1044, 0.0
    %v1050 = vmul.f32 %v1049, %v1049
    %v1051 = vmin.f32 %v1050, 10.0
    %v1052 = vadd.f32 %v978, %v1051
    %s1053 = scalar_lea.vmem [#allocation3], 192
    %v1054 = vld [vmem:[%s1053] sm:$0xf]
    %v1055 = vld [vmem:[%s1053 + $0x4] sm:$0xf]
    %v1056 = vld [vmem:[%s1053 + $0x8] sm:$0xf]
    %v1057 = vld [vmem:[%s1053 + $0xc] sm:$0xf]
    %s1058 = sadd.s32 %s169, 12
    %s1059 = scalar_lea.vmem %s4, %s1058
    %v1060 = vld [vmem:[%s1059] sm:$0x1]
    %v1061 = vpack.c.bf16 %v1052, %v1052
    %v1063 = vlaneseq
    %v1064 = vshrl.u32 %v1063, 7
    %v1065 = vsub.s32 0, %v1064
    %v1066 = vrot.slane %v1060, %v1065
    %v1072 = vunpack.c.l.b16 %v1054
    %v1073 = vunpack.c.l.b16 %v1055
    %v1074 = vunpack.c.l.b16 %v1056
    %v1075 = vunpack.c.l.b16 %v1057
    %v1076 = vpack.c.b16 %v1073, %v1072
    %v1077 = vpack.c.b16 %v1075, %v1074
    %v1081 = vsel %vm191, %v1061, 0
    %1083 = vmatprep.subr.bf16.mxu0 0
    %1084 = vmatpush1.bf16.msra.mxu0 %v1076
    %1085 = vmatprep.subr.bf16.mxu0 0
    %1086 = vmatpush1.bf16.msra.mxu0 %v1077
    %1087 = vmatprep.subr.bf16.mxu0 0
    %1088 = vmatpush1.bf16.msra.mxu0 0
    %1089 = vmatprep.subr.bf16.mxu0 0
    %1090 = vmatpush1.bf16.msra.mxu0 0
    %1091 = vmatprep.subr.bf16.mxu0 0
    %1092 = vmatpush1.bf16.msra.mxu0 0
    %1093 = vmatprep.subr.bf16.mxu0 0
    %1094 = vmatpush1.bf16.msra.mxu0 0
    %1095 = vmatprep.subr.bf16.mxu0 0
    %1096 = vmatpush1.bf16.msra.mxu0 0
    %1097 = vmatprep.subr.bf16.mxu0 0
    %1098 = vmatpush1.bf16.msra.mxu0 0
    %1099 = vmatprep.subr.bf16.mxu0 0
    %1100 = vmatpush1.bf16.msra.mxu0 0
    %1101 = vmatprep.subr.bf16.mxu0 0
    %1102 = vmatpush1.bf16.msra.mxu0 0
    %1103 = vmatprep.subr.bf16.mxu0 0
    %1104 = vmatpush1.bf16.msra.mxu0 0
    %1105 = vmatprep.subr.bf16.mxu0 0
    %1106 = vmatpush1.bf16.msra.mxu0 0
    %1107 = vmatprep.subr.bf16.mxu0 0
    %1108 = vmatpush1.bf16.msra.mxu0 0
    %1109 = vmatprep.subr.bf16.mxu0 0
    %1110 = vmatpush1.bf16.msra.mxu0 0
    %1111 = vmatprep.subr.bf16.mxu0 0
    %1112 = vmatpush1.bf16.msra.mxu0 0
    %1113 = vmatprep.subr.bf16.mxu0 0
    %1114 = vmatpush1.bf16.msra.mxu0 0
    %1115 = vmatprep.mubr.bf16.mxu0 0
    %1116 = vmatmul.mubr.bf16.gmra.mrb[0].mxu0 %v1081
    %v1117 = vpop.f32.mrb[0].mxu0
    %v1118 = vadd.f32 %v1066, %v1117
    %v1119 = vpop.f32.mrb[0].mxu0
    %v1120 = vpop.f32.mrb[0].mxu0
    %v1121 = vpop.f32.mrb[0].mxu0
    %1122 = vdwg.mxu0
    %v1123 = vmax.f32 %v1118, 0.0
    %v1124 = vmul.f32 %v1123, %v1123
    %v1125 = vmin.f32 %v1124, 10.0
    %v1126 = vadd.f32 %v1052, %v1125
    %s1127 = scalar_lea.vmem [#allocation3], 208
    %v1128 = vld [vmem:[%s1127] sm:$0xf]
    %v1129 = vld [vmem:[%s1127 + $0x4] sm:$0xf]
    %v1130 = vld [vmem:[%s1127 + $0x8] sm:$0xf]
    %v1131 = vld [vmem:[%s1127 + $0xc] sm:$0xf]
    %s1132 = sadd.s32 %s169, 13
    %s1133 = scalar_lea.vmem %s4, %s1132
    %v1134 = vld [vmem:[%s1133] sm:$0x1]
    %v1135 = vpack.c.bf16 %v1126, %v1126
    %v1137 = vlaneseq
    %v1138 = vshrl.u32 %v1137, 7
    %v1139 = vsub.s32 0, %v1138
    %v1140 = vrot.slane %v1134, %v1139
    %v1146 = vunpack.c.l.b16 %v1128
    %v1147 = vunpack.c.l.b16 %v1129
    %v1148 = vunpack.c.l.b16 %v1130
    %v1149 = vunpack.c.l.b16 %v1131
    %v1150 = vpack.c.b16 %v1147, %v1146
    %v1151 = vpack.c.b16 %v1149, %v1148
    %v1155 = vsel %vm191, %v1135, 0
    %1157 = vmatprep.subr.bf16.mxu0 0
    %1158 = vmatpush1.bf16.msra.mxu0 %v1150
    %1159 = vmatprep.subr.bf16.mxu0 0
    %1160 = vmatpush1.bf16.msra.mxu0 %v1151
    %1161 = vmatprep.subr.bf16.mxu0 0
    %1162 = vmatpush1.bf16.msra.mxu0 0
    %1163 = vmatprep.subr.bf16.mxu0 0
    %1164 = vmatpush1.bf16.msra.mxu0 0
    %1165 = vmatprep.subr.bf16.mxu0 0
    %1166 = vmatpush1.bf16.msra.mxu0 0
    %1167 = vmatprep.subr.bf16.mxu0 0
    %1168 = vmatpush1.bf16.msra.mxu0 0
    %1169 = vmatprep.subr.bf16.mxu0 0
    %1170 = vmatpush1.bf16.msra.mxu0 0
    %1171 = vmatprep.subr.bf16.mxu0 0
    %1172 = vmatpush1.bf16.msra.mxu0 0
    %1173 = vmatprep.subr.bf16.mxu0 0
    %1174 = vmatpush1.bf16.msra.mxu0 0
    %1175 = vmatprep.subr.bf16.mxu0 0
    %1176 = vmatpush1.bf16.msra.mxu0 0
    %1177 = vmatprep.subr.bf16.mxu0 0
    %1178 = vmatpush1.bf16.msra.mxu0 0
    %1179 = vmatprep.subr.bf16.mxu0 0
    %1180 = vmatpush1.bf16.msra.mxu0 0
    %1181 = vmatprep.subr.bf16.mxu0 0
    %1182 = vmatpush1.bf16.msra.mxu0 0
    %1183 = vmatprep.subr.bf16.mxu0 0
    %1184 = vmatpush1.bf16.msra.mxu0 0
    %1185 = vmatprep.subr.bf16.mxu0 0
    %1186 = vmatpush1.bf16.msra.mxu0 0
    %1187 = vmatprep.subr.bf16.mxu0 0
    %1188 = vmatpush1.bf16.msra.mxu0 0
    %1189 = vmatprep.mubr.bf16.mxu0 0
    %1190 = vmatmul.mubr.bf16.gmra.mrb[0].mxu0 %v1155
    %v1191 = vpop.f32.mrb[0].mxu0
    %v1192 = vadd.f32 %v1140, %v1191
    %v1193 = vpop.f32.mrb[0].mxu0
    %v1194 = vpop.f32.mrb[0].mxu0
    %v1195 = vpop.f32.mrb[0].mxu0
    %1196 = vdwg.mxu0
    %v1197 = vmax.f32 %v1192, 0.0
    %v1198 = vmul.f32 %v1197, %v1197
    %v1199 = vmin.f32 %v1198, 10.0
    %v1200 = vadd.f32 %v1126, %v1199
    %s1201 = scalar_lea.vmem [#allocation3], 224
    %v1202 = vld [vmem:[%s1201] sm:$0xf]
    %v1203 = vld [vmem:[%s1201 + $0x4] sm:$0xf]
    %v1204 = vld [vmem:[%s1201 + $0x8] sm:$0xf]
    %v1205 = vld [vmem:[%s1201 + $0xc] sm:$0xf]
    %s1206 = sadd.s32 %s169, 14
    %s1207 = scalar_lea.vmem %s4, %s1206
    %v1208 = vld [vmem:[%s1207] sm:$0x1]
    %v1209 = vpack.c.bf16 %v1200, %v1200
    %v1211 = vlaneseq
    %v1212 = vshrl.u32 %v1211, 7
    %v1213 = vsub.s32 0, %v1212
    %v1214 = vrot.slane %v1208, %v1213
    %v1220 = vunpack.c.l.b16 %v1202
    %v1221 = vunpack.c.l.b16 %v1203
    %v1222 = vunpack.c.l.b16 %v1204
    %v1223 = vunpack.c.l.b16 %v1205
    %v1224 = vpack.c.b16 %v1221, %v1220
    %v1225 = vpack.c.b16 %v1223, %v1222
    %v1229 = vsel %vm191, %v1209, 0
    %1231 = vmatprep.subr.bf16.mxu0 0
    %1232 = vmatpush1.bf16.msra.mxu0 %v1224
    %1233 = vmatprep.subr.bf16.mxu0 0
    %1234 = vmatpush1.bf16.msra.mxu0 %v1225
    %1235 = vmatprep.subr.bf16.mxu0 0
    %1236 = vmatpush1.bf16.msra.mxu0 0
    %1237 = vmatprep.subr.bf16.mxu0 0
    %1238 = vmatpush1.bf16.msra.mxu0 0
    %1239 = vmatprep.subr.bf16.mxu0 0
    %1240 = vmatpush1.bf16.msra.mxu0 0
    %1241 = vmatprep.subr.bf16.mxu0 0
    %1242 = vmatpush1.bf16.msra.mxu0 0
    %1243 = vmatprep.subr.bf16.mxu0 0
    %1244 = vmatpush1.bf16.msra.mxu0 0
    %1245 = vmatprep.subr.bf16.mxu0 0
    %1246 = vmatpush1.bf16.msra.mxu0 0
    %1247 = vmatprep.subr.bf16.mxu0 0
    %1248 = vmatpush1.bf16.msra.mxu0 0
    %1249 = vmatprep.subr.bf16.mxu0 0
    %1250 = vmatpush1.bf16.msra.mxu0 0
    %1251 = vmatprep.subr.bf16.mxu0 0
    %1252 = vmatpush1.bf16.msra.mxu0 0
    %1253 = vmatprep.subr.bf16.mxu0 0
    %1254 = vmatpush1.bf16.msra.mxu0 0
    %1255 = vmatprep.subr.bf16.mxu0 0
    %1256 = vmatpush1.bf16.msra.mxu0 0
    %1257 = vmatprep.subr.bf16.mxu0 0
    %1258 = vmatpush1.bf16.msra.mxu0 0
    %1259 = vmatprep.subr.bf16.mxu0 0
    %1260 = vmatpush1.bf16.msra.mxu0 0
    %1261 = vmatprep.subr.bf16.mxu0 0
    %1262 = vmatpush1.bf16.msra.mxu0 0
    %1263 = vmatprep.mubr.bf16.mxu0 0
    %1264 = vmatmul.mubr.bf16.gmra.mrb[0].mxu0 %v1229
    %v1265 = vpop.f32.mrb[0].mxu0
    %v1266 = vadd.f32 %v1214, %v1265
    %v1267 = vpop.f32.mrb[0].mxu0
    %v1268 = vpop.f32.mrb[0].mxu0
    %v1269 = vpop.f32.mrb[0].mxu0
    %1270 = vdwg.mxu0
    %v1271 = vmax.f32 %v1266, 0.0
    %v1272 = vmul.f32 %v1271, %v1271
    %v1273 = vmin.f32 %v1272, 10.0
    %v1274 = vadd.f32 %v1200, %v1273
    %s1275 = scalar_lea.vmem [#allocation3], 240
    %v1276 = vld [vmem:[%s1275] sm:$0xf]
    %v1277 = vld [vmem:[%s1275 + $0x4] sm:$0xf]
    %v1278 = vld [vmem:[%s1275 + $0x8] sm:$0xf]
    %v1279 = vld [vmem:[%s1275 + $0xc] sm:$0xf]
    %s1280 = sadd.s32 %s169, 15
    %s1281 = scalar_lea.vmem %s4, %s1280
    %v1282 = vld [vmem:[%s1281] sm:$0x1]
    %v1283 = vpack.c.bf16 %v1274, %v1274
    %v1285 = vlaneseq
    %v1286 = vshrl.u32 %v1285, 7
    %v1287 = vsub.s32 0, %v1286
    %v1288 = vrot.slane %v1282, %v1287
    %v1294 = vunpack.c.l.b16 %v1276
    %v1295 = vunpack.c.l.b16 %v1277
    %v1296 = vunpack.c.l.b16 %v1278
    %v1297 = vunpack.c.l.b16 %v1279
    %v1298 = vpack.c.b16 %v1295, %v1294
    %v1299 = vpack.c.b16 %v1297, %v1296
    %v1303 = vsel %vm191, %v1283, 0
    %1305 = vmatprep.subr.bf16.mxu0 0
    %1306 = vmatpush1.bf16.msra.mxu0 %v1298
    %1307 = vmatprep.subr.bf16.mxu0 0
    %1308 = vmatpush1.bf16.msra.mxu0 %v1299
    %1309 = vmatprep.subr.bf16.mxu0 0
    %1310 = vmatpush1.bf16.msra.mxu0 0
    %1311 = vmatprep.subr.bf16.mxu0 0
    %1312 = vmatpush1.bf16.msra.mxu0 0
    %1313 = vmatprep.subr.bf16.mxu0 0
    %1314 = vmatpush1.bf16.msra.mxu0 0
    %1315 = vmatprep.subr.bf16.mxu0 0
    %1316 = vmatpush1.bf16.msra.mxu0 0
    %1317 = vmatprep.subr.bf16.mxu0 0
    %1318 = vmatpush1.bf16.msra.mxu0 0
    %1319 = vmatprep.subr.bf16.mxu0 0
    %1320 = vmatpush1.bf16.msra.mxu0 0
    %1321 = vmatprep.subr.bf16.mxu0 0
    %1322 = vmatpush1.bf16.msra.mxu0 0
    %1323 = vmatprep.subr.bf16.mxu0 0
    %1324 = vmatpush1.bf16.msra.mxu0 0
    %1325 = vmatprep.subr.bf16.mxu0 0
    %1326 = vmatpush1.bf16.msra.mxu0 0
    %1327 = vmatprep.subr.bf16.mxu0 0
    %1328 = vmatpush1.bf16.msra.mxu0 0
    %1329 = vmatprep.subr.bf16.mxu0 0
    %1330 = vmatpush1.bf16.msra.mxu0 0
    %1331 = vmatprep.subr.bf16.mxu0 0
    %1332 = vmatpush1.bf16.msra.mxu0 0
    %1333 = vmatprep.subr.bf16.mxu0 0
    %1334 = vmatpush1.bf16.msra.mxu0 0
    %1335 = vmatprep.subr.bf16.mxu0 0
    %1336 = vmatpush1.bf16.msra.mxu0 0
    %1337 = vmatprep.mubr.bf16.mxu0 0
    %1338 = vmatmul.mubr.bf16.gmra.mrb[0].mxu0 %v1303
    %v1339 = vpop.f32.mrb[0].mxu0
    %v1340 = vadd.f32 %v1288, %v1339
    %v1341 = vpop.f32.mrb[0].mxu0
    %v1342 = vpop.f32.mrb[0].mxu0
    %v1343 = vpop.f32.mrb[0].mxu0
    %1344 = vdwg.mxu0
    %v1345 = vmax.f32 %v1340, 0.0
    %v1346 = vmul.f32 %v1345, %v1345
    %v1347 = vmin.f32 %v1346, 10.0
    %v1348 = vadd.f32 %v1274, %v1347
    %s1349 = scalar_lea.vmem [#allocation3], 256
    %v1350 = vld [vmem:[%s1349] sm:$0xf]
    %v1351 = vld [vmem:[%s1349 + $0x4] sm:$0xf]
    %v1352 = vld [vmem:[%s1349 + $0x8] sm:$0xf]
    %v1353 = vld [vmem:[%s1349 + $0xc] sm:$0xf]
    %s1354 = sadd.s32 %s169, 16
    %s1355 = scalar_lea.vmem %s4, %s1354
    %v1356 = vld [vmem:[%s1355] sm:$0x1]
    %v1357 = vpack.c.bf16 %v1348, %v1348
    %v1359 = vlaneseq
    %v1360 = vshrl.u32 %v1359, 7
    %v1361 = vsub.s32 0, %v1360
    %v1362 = vrot.slane %v1356, %v1361
    %v1368 = vunpack.c.l.b16 %v1350
    %v1369 = vunpack.c.l.b16 %v1351
    %v1370 = vunpack.c.l.b16 %v1352
    %v1371 = vunpack.c.l.b16 %v1353
    %v1372 = vpack.c.b16 %v1369, %v1368
    %v1373 = vpack.c.b16 %v1371, %v1370
    %v1377 = vsel %vm191, %v1357, 0
    %1379 = vmatprep.subr.bf16.mxu0 0
    %1380 = vmatpush1.bf16.msra.mxu0 %v1372
    %1381 = vmatprep.subr.bf16.mxu0 0
    %1382 = vmatpush1.bf16.msra.mxu0 %v1373
    %1383 = vmatprep.subr.bf16.mxu0 0
    %1384 = vmatpush1.bf16.msra.mxu0 0
    %1385 = vmatprep.subr.bf16.mxu0 0
    %1386 = vmatpush1.bf16.msra.mxu0 0
    %1387 = vmatprep.subr.bf16.mxu0 0
    %1388 = vmatpush1.bf16.msra.mxu0 0
    %1389 = vmatprep.subr.bf16.mxu0 0
    %1390 = vmatpush1.bf16.msra.mxu0 0
    %1391 = vmatprep.subr.bf16.mxu0 0
    %1392 = vmatpush1.bf16.msra.mxu0 0
    %1393 = vmatprep.subr.bf16.mxu0 0
    %1394 = vmatpush1.bf16.msra.mxu0 0
    %1395 = vmatprep.subr.bf16.mxu0 0
    %1396 = vmatpush1.bf16.msra.mxu0 0
    %1397 = vmatprep.subr.bf16.mxu0 0
    %1398 = vmatpush1.bf16.msra.mxu0 0
    %1399 = vmatprep.subr.bf16.mxu0 0
    %1400 = vmatpush1.bf16.msra.mxu0 0
    %1401 = vmatprep.subr.bf16.mxu0 0
    %1402 = vmatpush1.bf16.msra.mxu0 0
    %1403 = vmatprep.subr.bf16.mxu0 0
    %1404 = vmatpush1.bf16.msra.mxu0 0
    %1405 = vmatprep.subr.bf16.mxu0 0
    %1406 = vmatpush1.bf16.msra.mxu0 0
    %1407 = vmatprep.subr.bf16.mxu0 0
    %1408 = vmatpush1.bf16.msra.mxu0 0
    %1409 = vmatprep.subr.bf16.mxu0 0
    %1410 = vmatpush1.bf16.msra.mxu0 0
    %1411 = vmatprep.mubr.bf16.mxu0 0
    %1412 = vmatmul.mubr.bf16.gmra.mrb[0].mxu0 %v1377
    %v1413 = vpop.f32.mrb[0].mxu0
    %v1414 = vadd.f32 %v1362, %v1413
    %v1415 = vpop.f32.mrb[0].mxu0
    %v1416 = vpop.f32.mrb[0].mxu0
    %v1417 = vpop.f32.mrb[0].mxu0
    %1418 = vdwg.mxu0
    %v1419 = vmax.f32 %v1414, 0.0
    %v1420 = vmul.f32 %v1419, %v1419
    %v1421 = vmin.f32 %v1420, 10.0
    %v1422 = vadd.f32 %v1348, %v1421
    %s1423 = scalar_lea.vmem [#allocation3], 272
    %v1424 = vld [vmem:[%s1423] sm:$0xf]
    %v1425 = vld [vmem:[%s1423 + $0x4] sm:$0xf]
    %v1426 = vld [vmem:[%s1423 + $0x8] sm:$0xf]
    %v1427 = vld [vmem:[%s1423 + $0xc] sm:$0xf]
    %s1428 = sadd.s32 %s169, 17
    %s1429 = scalar_lea.vmem %s4, %s1428
    %v1430 = vld [vmem:[%s1429] sm:$0x1]
    %v1431 = vpack.c.bf16 %v1422, %v1422
    %v1433 = vlaneseq
    %v1434 = vshrl.u32 %v1433, 7
    %v1435 = vsub.s32 0, %v1434
    %v1436 = vrot.slane %v1430, %v1435
    %v1442 = vunpack.c.l.b16 %v1424
    %v1443 = vunpack.c.l.b16 %v1425
    %v1444 = vunpack.c.l.b16 %v1426
    %v1445 = vunpack.c.l.b16 %v1427
    %v1446 = vpack.c.b16 %v1443, %v1442
    %v1447 = vpack.c.b16 %v1445, %v1444
    %v1451 = vsel %vm191, %v1431, 0
    %1453 = vmatprep.subr.bf16.mxu0 0
    %1454 = vmatpush1.bf16.msra.mxu0 %v1446
    %1455 = vmatprep.subr.bf16.mxu0 0
    %1456 = vmatpush1.bf16.msra.mxu0 %v1447
    %1457 = vmatprep.subr.bf16.mxu0 0
    %1458 = vmatpush1.bf16.msra.mxu0 0
    %1459 = vmatprep.subr.bf16.mxu0 0
    %1460 = vmatpush1.bf16.msra.mxu0 0
    %1461 = vmatprep.subr.bf16.mxu0 0
    %1462 = vmatpush1.bf16.msra.mxu0 0
    %1463 = vmatprep.subr.bf16.mxu0 0
    %1464 = vmatpush1.bf16.msra.mxu0 0
    %1465 = vmatprep.subr.bf16.mxu0 0
    %1466 = vmatpush1.bf16.msra.mxu0 0
    %1467 = vmatprep.subr.bf16.mxu0 0
    %1468 = vmatpush1.bf16.msra.mxu0 0
    %1469 = vmatprep.subr.bf16.mxu0 0
    %1470 = vmatpush1.bf16.msra.mxu0 0
    %1471 = vmatprep.subr.bf16.mxu0 0
    %1472 = vmatpush1.bf16.msra.mxu0 0
    %1473 = vmatprep.subr.bf16.mxu0 0
    %1474 = vmatpush1.bf16.msra.mxu0 0
    %1475 = vmatprep.subr.bf16.mxu0 0
    %1476 = vmatpush1.bf16.msra.mxu0 0
    %1477 = vmatprep.subr.bf16.mxu0 0
    %1478 = vmatpush1.bf16.msra.mxu0 0
    %1479 = vmatprep.subr.bf16.mxu0 0
    %1480 = vmatpush1.bf16.msra.mxu0 0
    %1481 = vmatprep.subr.bf16.mxu0 0
    %1482 = vmatpush1.bf16.msra.mxu0 0
    %1483 = vmatprep.subr.bf16.mxu0 0
    %1484 = vmatpush1.bf16.msra.mxu0 0
    %1485 = vmatprep.mubr.bf16.mxu0 0
    %1486 = vmatmul.mubr.bf16.gmra.mrb[0].mxu0 %v1451
    %v1487 = vpop.f32.mrb[0].mxu0
    %v1488 = vadd.f32 %v1436, %v1487
    %v1489 = vpop.f32.mrb[0].mxu0
    %v1490 = vpop.f32.mrb[0].mxu0
    %v1491 = vpop.f32.mrb[0].mxu0
    %1492 = vdwg.mxu0
    %v1493 = vmax.f32 %v1488, 0.0
    %v1494 = vmul.f32 %v1493, %v1493
    %v1495 = vmin.f32 %v1494, 10.0
    %v1496 = vadd.f32 %v1422, %v1495
    %s1497 = scalar_lea.vmem [#allocation3], 288
    %v1498 = vld [vmem:[%s1497] sm:$0xf]
    %v1499 = vld [vmem:[%s1497 + $0x4] sm:$0xf]
    %v1500 = vld [vmem:[%s1497 + $0x8] sm:$0xf]
    %v1501 = vld [vmem:[%s1497 + $0xc] sm:$0xf]
    %s1502 = sadd.s32 %s169, 18
    %s1503 = scalar_lea.vmem %s4, %s1502
    %v1504 = vld [vmem:[%s1503] sm:$0x1]
    %v1505 = vpack.c.bf16 %v1496, %v1496
    %v1507 = vlaneseq
    %v1508 = vshrl.u32 %v1507, 7
    %v1509 = vsub.s32 0, %v1508
    %v1510 = vrot.slane %v1504, %v1509
    %v1516 = vunpack.c.l.b16 %v1498
    %v1517 = vunpack.c.l.b16 %v1499
    %v1518 = vunpack.c.l.b16 %v1500
    %v1519 = vunpack.c.l.b16 %v1501
    %v1520 = vpack.c.b16 %v1517, %v1516
    %v1521 = vpack.c.b16 %v1519, %v1518
    %v1525 = vsel %vm191, %v1505, 0
    %1527 = vmatprep.subr.bf16.mxu0 0
    %1528 = vmatpush1.bf16.msra.mxu0 %v1520
    %1529 = vmatprep.subr.bf16.mxu0 0
    %1530 = vmatpush1.bf16.msra.mxu0 %v1521
    %1531 = vmatprep.subr.bf16.mxu0 0
    %1532 = vmatpush1.bf16.msra.mxu0 0
    %1533 = vmatprep.subr.bf16.mxu0 0
    %1534 = vmatpush1.bf16.msra.mxu0 0
    %1535 = vmatprep.subr.bf16.mxu0 0
    %1536 = vmatpush1.bf16.msra.mxu0 0
    %1537 = vmatprep.subr.bf16.mxu0 0
    %1538 = vmatpush1.bf16.msra.mxu0 0
    %1539 = vmatprep.subr.bf16.mxu0 0
    %1540 = vmatpush1.bf16.msra.mxu0 0
    %1541 = vmatprep.subr.bf16.mxu0 0
    %1542 = vmatpush1.bf16.msra.mxu0 0
    %1543 = vmatprep.subr.bf16.mxu0 0
    %1544 = vmatpush1.bf16.msra.mxu0 0
    %1545 = vmatprep.subr.bf16.mxu0 0
    %1546 = vmatpush1.bf16.msra.mxu0 0
    %1547 = vmatprep.subr.bf16.mxu0 0
    %1548 = vmatpush1.bf16.msra.mxu0 0
    %1549 = vmatprep.subr.bf16.mxu0 0
    %1550 = vmatpush1.bf16.msra.mxu0 0
    %1551 = vmatprep.subr.bf16.mxu0 0
    %1552 = vmatpush1.bf16.msra.mxu0 0
    %1553 = vmatprep.subr.bf16.mxu0 0
    %1554 = vmatpush1.bf16.msra.mxu0 0
    %1555 = vmatprep.subr.bf16.mxu0 0
    %1556 = vmatpush1.bf16.msra.mxu0 0
    %1557 = vmatprep.subr.bf16.mxu0 0
    %1558 = vmatpush1.bf16.msra.mxu0 0
    %1559 = vmatprep.mubr.bf16.mxu0 0
    %1560 = vmatmul.mubr.bf16.gmra.mrb[0].mxu0 %v1525
    %v1561 = vpop.f32.mrb[0].mxu0
    %v1562 = vadd.f32 %v1510, %v1561
    %v1563 = vpop.f32.mrb[0].mxu0
    %v1564 = vpop.f32.mrb[0].mxu0
    %v1565 = vpop.f32.mrb[0].mxu0
    %1566 = vdwg.mxu0
    %v1567 = vmax.f32 %v1562, 0.0
    %v1568 = vmul.f32 %v1567, %v1567
    %v1569 = vmin.f32 %v1568, 10.0
    %v1570 = vadd.f32 %v1496, %v1569
    %s1571 = scalar_lea.vmem [#allocation3], 304
    %v1572 = vld [vmem:[%s1571] sm:$0xf]
    %v1573 = vld [vmem:[%s1571 + $0x4] sm:$0xf]
    %v1574 = vld [vmem:[%s1571 + $0x8] sm:$0xf]
    %v1575 = vld [vmem:[%s1571 + $0xc] sm:$0xf]
    %s1576 = sadd.s32 %s169, 19
    %s1577 = scalar_lea.vmem %s4, %s1576
    %v1578 = vld [vmem:[%s1577] sm:$0x1]
    %v1579 = vpack.c.bf16 %v1570, %v1570
    %v1581 = vlaneseq
    %v1582 = vshrl.u32 %v1581, 7
    %v1583 = vsub.s32 0, %v1582
    %v1584 = vrot.slane %v1578, %v1583
    %v1590 = vunpack.c.l.b16 %v1572
    %v1591 = vunpack.c.l.b16 %v1573
    %v1592 = vunpack.c.l.b16 %v1574
    %v1593 = vunpack.c.l.b16 %v1575
    %v1594 = vpack.c.b16 %v1591, %v1590
    %v1595 = vpack.c.b16 %v1593, %v1592
    %v1599 = vsel %vm191, %v1579, 0
    %1601 = vmatprep.subr.bf16.mxu0 0
    %1602 = vmatpush1.bf16.msra.mxu0 %v1594
    %1603 = vmatprep.subr.bf16.mxu0 0
    %1604 = vmatpush1.bf16.msra.mxu0 %v1595
    %1605 = vmatprep.subr.bf16.mxu0 0
    %1606 = vmatpush1.bf16.msra.mxu0 0
    %1607 = vmatprep.subr.bf16.mxu0 0
    %1608 = vmatpush1.bf16.msra.mxu0 0
    %1609 = vmatprep.subr.bf16.mxu0 0
    %1610 = vmatpush1.bf16.msra.mxu0 0
    %1611 = vmatprep.subr.bf16.mxu0 0
    %1612 = vmatpush1.bf16.msra.mxu0 0
    %1613 = vmatprep.subr.bf16.mxu0 0
    %1614 = vmatpush1.bf16.msra.mxu0 0
    %1615 = vmatprep.subr.bf16.mxu0 0
    %1616 = vmatpush1.bf16.msra.mxu0 0
    %1617 = vmatprep.subr.bf16.mxu0 0
    %1618 = vmatpush1.bf16.msra.mxu0 0
    %1619 = vmatprep.subr.bf16.mxu0 0
    %1620 = vmatpush1.bf16.msra.mxu0 0
    %1621 = vmatprep.subr.bf16.mxu0 0
    %1622 = vmatpush1.bf16.msra.mxu0 0
    %1623 = vmatprep.subr.bf16.mxu0 0
    %1624 = vmatpush1.bf16.msra.mxu0 0
    %1625 = vmatprep.subr.bf16.mxu0 0
    %1626 = vmatpush1.bf16.msra.mxu0 0
    %1627 = vmatprep.subr.bf16.mxu0 0
    %1628 = vmatpush1.bf16.msra.mxu0 0
    %1629 = vmatprep.subr.bf16.mxu0 0
    %1630 = vmatpush1.bf16.msra.mxu0 0
    %1631 = vmatprep.subr.bf16.mxu0 0
    %1632 = vmatpush1.bf16.msra.mxu0 0
    %1633 = vmatprep.mubr.bf16.mxu0 0
    %1634 = vmatmul.mubr.bf16.gmra.mrb[0].mxu0 %v1599
    %v1635 = vpop.f32.mrb[0].mxu0
    %v1636 = vadd.f32 %v1584, %v1635
    %v1637 = vpop.f32.mrb[0].mxu0
    %v1638 = vpop.f32.mrb[0].mxu0
    %v1639 = vpop.f32.mrb[0].mxu0
    %1640 = vdwg.mxu0
    %v1641 = vmax.f32 %v1636, 0.0
    %v1642 = vmul.f32 %v1641, %v1641
    %v1643 = vmin.f32 %v1642, 10.0
    %v1644 = vadd.f32 %v1570, %v1643
    %s1645 = scalar_lea.vmem [#allocation3], 320
    %v1646 = vld [vmem:[%s1645] sm:$0xf]
    %v1647 = vld [vmem:[%s1645 + $0x4] sm:$0xf]
    %v1648 = vld [vmem:[%s1645 + $0x8] sm:$0xf]
    %v1649 = vld [vmem:[%s1645 + $0xc] sm:$0xf]
    %s1650 = sadd.s32 %s169, 20
    %s1651 = scalar_lea.vmem %s4, %s1650
    %v1652 = vld [vmem:[%s1651] sm:$0x1]
    %v1653 = vpack.c.bf16 %v1644, %v1644
    %v1655 = vlaneseq
    %v1656 = vshrl.u32 %v1655, 7
    %v1657 = vsub.s32 0, %v1656
    %v1658 = vrot.slane %v1652, %v1657
    %v1664 = vunpack.c.l.b16 %v1646
    %v1665 = vunpack.c.l.b16 %v1647
    %v1666 = vunpack.c.l.b16 %v1648
    %v1667 = vunpack.c.l.b16 %v1649
    %v1668 = vpack.c.b16 %v1665, %v1664
    %v1669 = vpack.c.b16 %v1667, %v1666
    %v1673 = vsel %vm191, %v1653, 0
    %1675 = vmatprep.subr.bf16.mxu0 0
    %1676 = vmatpush1.bf16.msra.mxu0 %v1668
    %1677 = vmatprep.subr.bf16.mxu0 0
    %1678 = vmatpush1.bf16.msra.mxu0 %v1669
    %1679 = vmatprep.subr.bf16.mxu0 0
    %1680 = vmatpush1.bf16.msra.mxu0 0
    %1681 = vmatprep.subr.bf16.mxu0 0
    %1682 = vmatpush1.bf16.msra.mxu0 0
    %1683 = vmatprep.subr.bf16.mxu0 0
    %1684 = vmatpush1.bf16.msra.mxu0 0
    %1685 = vmatprep.subr.bf16.mxu0 0
    %1686 = vmatpush1.bf16.msra.mxu0 0
    %1687 = vmatprep.subr.bf16.mxu0 0
    %1688 = vmatpush1.bf16.msra.mxu0 0
    %1689 = vmatprep.subr.bf16.mxu0 0
    %1690 = vmatpush1.bf16.msra.mxu0 0
    %1691 = vmatprep.subr.bf16.mxu0 0
    %1692 = vmatpush1.bf16.msra.mxu0 0
    %1693 = vmatprep.subr.bf16.mxu0 0
    %1694 = vmatpush1.bf16.msra.mxu0 0
    %1695 = vmatprep.subr.bf16.mxu0 0
    %1696 = vmatpush1.bf16.msra.mxu0 0
    %1697 = vmatprep.subr.bf16.mxu0 0
    %1698 = vmatpush1.bf16.msra.mxu0 0
    %1699 = vmatprep.subr.bf16.mxu0 0
    %1700 = vmatpush1.bf16.msra.mxu0 0
    %1701 = vmatprep.subr.bf16.mxu0 0
    %1702 = vmatpush1.bf16.msra.mxu0 0
    %1703 = vmatprep.subr.bf16.mxu0 0
    %1704 = vmatpush1.bf16.msra.mxu0 0
    %1705 = vmatprep.subr.bf16.mxu0 0
    %1706 = vmatpush1.bf16.msra.mxu0 0
    %1707 = vmatprep.mubr.bf16.mxu0 0
    %1708 = vmatmul.mubr.bf16.gmra.mrb[0].mxu0 %v1673
    %v1709 = vpop.f32.mrb[0].mxu0
    %v1710 = vadd.f32 %v1658, %v1709
    %v1711 = vpop.f32.mrb[0].mxu0
    %v1712 = vpop.f32.mrb[0].mxu0
    %v1713 = vpop.f32.mrb[0].mxu0
    %1714 = vdwg.mxu0
    %v1715 = vmax.f32 %v1710, 0.0
    %v1716 = vmul.f32 %v1715, %v1715
    %v1717 = vmin.f32 %v1716, 10.0
    %v1718 = vadd.f32 %v1644, %v1717
    %s1719 = scalar_lea.vmem [#allocation3], 336
    %v1720 = vld [vmem:[%s1719] sm:$0xf]
    %v1721 = vld [vmem:[%s1719 + $0x4] sm:$0xf]
    %v1722 = vld [vmem:[%s1719 + $0x8] sm:$0xf]
    %v1723 = vld [vmem:[%s1719 + $0xc] sm:$0xf]
    %s1724 = sadd.s32 %s169, 21
    %s1725 = scalar_lea.vmem %s4, %s1724
    %v1726 = vld [vmem:[%s1725] sm:$0x1]
    %v1727 = vpack.c.bf16 %v1718, %v1718
    %v1729 = vlaneseq
    %v1730 = vshrl.u32 %v1729, 7
    %v1731 = vsub.s32 0, %v1730
    %v1732 = vrot.slane %v1726, %v1731
    %v1738 = vunpack.c.l.b16 %v1720
    %v1739 = vunpack.c.l.b16 %v1721
    %v1740 = vunpack.c.l.b16 %v1722
    %v1741 = vunpack.c.l.b16 %v1723
    %v1742 = vpack.c.b16 %v1739, %v1738
    %v1743 = vpack.c.b16 %v1741, %v1740
    %v1747 = vsel %vm191, %v1727, 0
    %1749 = vmatprep.subr.bf16.mxu0 0
    %1750 = vmatpush1.bf16.msra.mxu0 %v1742
    %1751 = vmatprep.subr.bf16.mxu0 0
    %1752 = vmatpush1.bf16.msra.mxu0 %v1743
    %1753 = vmatprep.subr.bf16.mxu0 0
    %1754 = vmatpush1.bf16.msra.mxu0 0
    %1755 = vmatprep.subr.bf16.mxu0 0
    %1756 = vmatpush1.bf16.msra.mxu0 0
    %1757 = vmatprep.subr.bf16.mxu0 0
    %1758 = vmatpush1.bf16.msra.mxu0 0
    %1759 = vmatprep.subr.bf16.mxu0 0
    %1760 = vmatpush1.bf16.msra.mxu0 0
    %1761 = vmatprep.subr.bf16.mxu0 0
    %1762 = vmatpush1.bf16.msra.mxu0 0
    %1763 = vmatprep.subr.bf16.mxu0 0
    %1764 = vmatpush1.bf16.msra.mxu0 0
    %1765 = vmatprep.subr.bf16.mxu0 0
    %1766 = vmatpush1.bf16.msra.mxu0 0
    %1767 = vmatprep.subr.bf16.mxu0 0
    %1768 = vmatpush1.bf16.msra.mxu0 0
    %1769 = vmatprep.subr.bf16.mxu0 0
    %1770 = vmatpush1.bf16.msra.mxu0 0
    %1771 = vmatprep.subr.bf16.mxu0 0
    %1772 = vmatpush1.bf16.msra.mxu0 0
    %1773 = vmatprep.subr.bf16.mxu0 0
    %1774 = vmatpush1.bf16.msra.mxu0 0
    %1775 = vmatprep.subr.bf16.mxu0 0
    %1776 = vmatpush1.bf16.msra.mxu0 0
    %1777 = vmatprep.subr.bf16.mxu0 0
    %1778 = vmatpush1.bf16.msra.mxu0 0
    %1779 = vmatprep.subr.bf16.mxu0 0
    %1780 = vmatpush1.bf16.msra.mxu0 0
    %1781 = vmatprep.mubr.bf16.mxu0 0
    %1782 = vmatmul.mubr.bf16.gmra.mrb[0].mxu0 %v1747
    %v1783 = vpop.f32.mrb[0].mxu0
    %v1784 = vadd.f32 %v1732, %v1783
    %v1785 = vpop.f32.mrb[0].mxu0
    %v1786 = vpop.f32.mrb[0].mxu0
    %v1787 = vpop.f32.mrb[0].mxu0
    %1788 = vdwg.mxu0
    %v1789 = vmax.f32 %v1784, 0.0
    %v1790 = vmul.f32 %v1789, %v1789
    %v1791 = vmin.f32 %v1790, 10.0
    %v1792 = vadd.f32 %v1718, %v1791
    %s1793 = scalar_lea.vmem [#allocation3], 352
    %v1794 = vld [vmem:[%s1793] sm:$0xf]
    %v1795 = vld [vmem:[%s1793 + $0x4] sm:$0xf]
    %v1796 = vld [vmem:[%s1793 + $0x8] sm:$0xf]
    %v1797 = vld [vmem:[%s1793 + $0xc] sm:$0xf]
    %s1798 = sadd.s32 %s169, 22
    %s1799 = scalar_lea.vmem %s4, %s1798
    %v1800 = vld [vmem:[%s1799] sm:$0x1]
    %v1801 = vpack.c.bf16 %v1792, %v1792
    %v1803 = vlaneseq
    %v1804 = vshrl.u32 %v1803, 7
    %v1805 = vsub.s32 0, %v1804
    %v1806 = vrot.slane %v1800, %v1805
    %v1812 = vunpack.c.l.b16 %v1794
    %v1813 = vunpack.c.l.b16 %v1795
    %v1814 = vunpack.c.l.b16 %v1796
    %v1815 = vunpack.c.l.b16 %v1797
    %v1816 = vpack.c.b16 %v1813, %v1812
    %v1817 = vpack.c.b16 %v1815, %v1814
    %v1821 = vsel %vm191, %v1801, 0
    %1823 = vmatprep.subr.bf16.mxu0 0
    %1824 = vmatpush1.bf16.msra.mxu0 %v1816
    %1825 = vmatprep.subr.bf16.mxu0 0
    %1826 = vmatpush1.bf16.msra.mxu0 %v1817
    %1827 = vmatprep.subr.bf16.mxu0 0
    %1828 = vmatpush1.bf16.msra.mxu0 0
    %1829 = vmatprep.subr.bf16.mxu0 0
    %1830 = vmatpush1.bf16.msra.mxu0 0
    %1831 = vmatprep.subr.bf16.mxu0 0
    %1832 = vmatpush1.bf16.msra.mxu0 0
    %1833 = vmatprep.subr.bf16.mxu0 0
    %1834 = vmatpush1.bf16.msra.mxu0 0
    %1835 = vmatprep.subr.bf16.mxu0 0
    %1836 = vmatpush1.bf16.msra.mxu0 0
    %1837 = vmatprep.subr.bf16.mxu0 0
    %1838 = vmatpush1.bf16.msra.mxu0 0
    %1839 = vmatprep.subr.bf16.mxu0 0
    %1840 = vmatpush1.bf16.msra.mxu0 0
    %1841 = vmatprep.subr.bf16.mxu0 0
    %1842 = vmatpush1.bf16.msra.mxu0 0
    %1843 = vmatprep.subr.bf16.mxu0 0
    %1844 = vmatpush1.bf16.msra.mxu0 0
    %1845 = vmatprep.subr.bf16.mxu0 0
    %1846 = vmatpush1.bf16.msra.mxu0 0
    %1847 = vmatprep.subr.bf16.mxu0 0
    %1848 = vmatpush1.bf16.msra.mxu0 0
    %1849 = vmatprep.subr.bf16.mxu0 0
    %1850 = vmatpush1.bf16.msra.mxu0 0
    %1851 = vmatprep.subr.bf16.mxu0 0
    %1852 = vmatpush1.bf16.msra.mxu0 0
    %1853 = vmatprep.subr.bf16.mxu0 0
    %1854 = vmatpush1.bf16.msra.mxu0 0
    %1855 = vmatprep.mubr.bf16.mxu0 0
    %1856 = vmatmul.mubr.bf16.gmra.mrb[0].mxu0 %v1821
    %v1857 = vpop.f32.mrb[0].mxu0
    %v1858 = vadd.f32 %v1806, %v1857
    %v1859 = vpop.f32.mrb[0].mxu0
    %v1860 = vpop.f32.mrb[0].mxu0
    %v1861 = vpop.f32.mrb[0].mxu0
    %1862 = vdwg.mxu0
    %v1863 = vmax.f32 %v1858, 0.0
    %v1864 = vmul.f32 %v1863, %v1863
    %v1865 = vmin.f32 %v1864, 10.0
    %v1866 = vadd.f32 %v1792, %v1865
    %s1867 = scalar_lea.vmem [#allocation3], 368
    %v1868 = vld [vmem:[%s1867] sm:$0xf]
    %v1869 = vld [vmem:[%s1867 + $0x4] sm:$0xf]
    %v1870 = vld [vmem:[%s1867 + $0x8] sm:$0xf]
    %v1871 = vld [vmem:[%s1867 + $0xc] sm:$0xf]
    %s1872 = sadd.s32 %s169, 23
    %s1873 = scalar_lea.vmem %s4, %s1872
    %v1874 = vld [vmem:[%s1873] sm:$0x1]
    %v1875 = vpack.c.bf16 %v1866, %v1866
    %v1877 = vlaneseq
    %v1878 = vshrl.u32 %v1877, 7
    %v1879 = vsub.s32 0, %v1878
    %v1880 = vrot.slane %v1874, %v1879
    %v1886 = vunpack.c.l.b16 %v1868
    %v1887 = vunpack.c.l.b16 %v1869
    %v1888 = vunpack.c.l.b16 %v1870
    %v1889 = vunpack.c.l.b16 %v1871
    %v1890 = vpack.c.b16 %v1887, %v1886
    %v1891 = vpack.c.b16 %v1889, %v1888
    %v1895 = vsel %vm191, %v1875, 0
    %1897 = vmatprep.subr.bf16.mxu0 0
    %1898 = vmatpush1.bf16.msra.mxu0 %v1890
    %1899 = vmatprep.subr.bf16.mxu0 0
    %1900 = vmatpush1.bf16.msra.mxu0 %v1891
    %1901 = vmatprep.subr.bf16.mxu0 0
    %1902 = vmatpush1.bf16.msra.mxu0 0
    %1903 = vmatprep.subr.bf16.mxu0 0
    %1904 = vmatpush1.bf16.msra.mxu0 0
    %1905 = vmatprep.subr.bf16.mxu0 0
    %1906 = vmatpush1.bf16.msra.mxu0 0
    %1907 = vmatprep.subr.bf16.mxu0 0
    %1908 = vmatpush1.bf16.msra.mxu0 0
    %1909 = vmatprep.subr.bf16.mxu0 0
    %1910 = vmatpush1.bf16.msra.mxu0 0
    %1911 = vmatprep.subr.bf16.mxu0 0
    %1912 = vmatpush1.bf16.msra.mxu0 0
    %1913 = vmatprep.subr.bf16.mxu0 0
    %1914 = vmatpush1.bf16.msra.mxu0 0
    %1915 = vmatprep.subr.bf16.mxu0 0
    %1916 = vmatpush1.bf16.msra.mxu0 0
    %1917 = vmatprep.subr.bf16.mxu0 0
    %1918 = vmatpush1.bf16.msra.mxu0 0
    %1919 = vmatprep.subr.bf16.mxu0 0
    %1920 = vmatpush1.bf16.msra.mxu0 0
    %1921 = vmatprep.subr.bf16.mxu0 0
    %1922 = vmatpush1.bf16.msra.mxu0 0
    %1923 = vmatprep.subr.bf16.mxu0 0
    %1924 = vmatpush1.bf16.msra.mxu0 0
    %1925 = vmatprep.subr.bf16.mxu0 0
    %1926 = vmatpush1.bf16.msra.mxu0 0
    %1927 = vmatprep.subr.bf16.mxu0 0
    %1928 = vmatpush1.bf16.msra.mxu0 0
    %1929 = vmatprep.mubr.bf16.mxu0 0
    %1930 = vmatmul.mubr.bf16.gmra.mrb[0].mxu0 %v1895
    %v1931 = vpop.f32.mrb[0].mxu0
    %v1932 = vadd.f32 %v1880, %v1931
    %v1933 = vpop.f32.mrb[0].mxu0
    %v1934 = vpop.f32.mrb[0].mxu0
    %v1935 = vpop.f32.mrb[0].mxu0
    %1936 = vdwg.mxu0
    %v1937 = vmax.f32 %v1932, 0.0
    %v1938 = vmul.f32 %v1937, %v1937
    %v1939 = vmin.f32 %v1938, 10.0
    %v1940 = vadd.f32 %v1866, %v1939
    %s1941 = scalar_lea.vmem [#allocation3], 384
    %v1942 = vld [vmem:[%s1941] sm:$0xf]
    %v1943 = vld [vmem:[%s1941 + $0x4] sm:$0xf]
    %v1944 = vld [vmem:[%s1941 + $0x8] sm:$0xf]
    %v1945 = vld [vmem:[%s1941 + $0xc] sm:$0xf]
    %s1946 = sadd.s32 %s169, 24
    %s1947 = scalar_lea.vmem %s4, %s1946
    %v1948 = vld [vmem:[%s1947] sm:$0x1]
    %v1949 = vpack.c.bf16 %v1940, %v1940
    %v1951 = vlaneseq
    %v1952 = vshrl.u32 %v1951, 7
    %v1953 = vsub.s32 0, %v1952
    %v1954 = vrot.slane %v1948, %v1953
    %v1960 = vunpack.c.l.b16 %v1942
    %v1961 = vunpack.c.l.b16 %v1943
    %v1962 = vunpack.c.l.b16 %v1944
    %v1963 = vunpack.c.l.b16 %v1945
    %v1964 = vpack.c.b16 %v1961, %v1960
    %v1965 = vpack.c.b16 %v1963, %v1962
    %v1969 = vsel %vm191, %v1949, 0
    %1971 = vmatprep.subr.bf16.mxu0 0
    %1972 = vmatpush1.bf16.msra.mxu0 %v1964
    %1973 = vmatprep.subr.bf16.mxu0 0
    %1974 = vmatpush1.bf16.msra.mxu0 %v1965
    %1975 = vmatprep.subr.bf16.mxu0 0
    %1976 = vmatpush1.bf16.msra.mxu0 0
    %1977 = vmatprep.subr.bf16.mxu0 0
    %1978 = vmatpush1.bf16.msra.mxu0 0
    %1979 = vmatprep.subr.bf16.mxu0 0
    %1980 = vmatpush1.bf16.msra.mxu0 0
    %1981 = vmatprep.subr.bf16.mxu0 0
    %1982 = vmatpush1.bf16.msra.mxu0 0
    %1983 = vmatprep.subr.bf16.mxu0 0
    %1984 = vmatpush1.bf16.msra.mxu0 0
    %1985 = vmatprep.subr.bf16.mxu0 0
    %1986 = vmatpush1.bf16.msra.mxu0 0
    %1987 = vmatprep.subr.bf16.mxu0 0
    %1988 = vmatpush1.bf16.msra.mxu0 0
    %1989 = vmatprep.subr.bf16.mxu0 0
    %1990 = vmatpush1.bf16.msra.mxu0 0
    %1991 = vmatprep.subr.bf16.mxu0 0
    %1992 = vmatpush1.bf16.msra.mxu0 0
    %1993 = vmatprep.subr.bf16.mxu0 0
    %1994 = vmatpush1.bf16.msra.mxu0 0
    %1995 = vmatprep.subr.bf16.mxu0 0
    %1996 = vmatpush1.bf16.msra.mxu0 0
    %1997 = vmatprep.subr.bf16.mxu0 0
    %1998 = vmatpush1.bf16.msra.mxu0 0
    %1999 = vmatprep.subr.bf16.mxu0 0
    %2000 = vmatpush1.bf16.msra.mxu0 0
    %2001 = vmatprep.subr.bf16.mxu0 0
    %2002 = vmatpush1.bf16.msra.mxu0 0
    %2003 = vmatprep.mubr.bf16.mxu0 0
    %2004 = vmatmul.mubr.bf16.gmra.mrb[0].mxu0 %v1969
    %v2005 = vpop.f32.mrb[0].mxu0
    %v2006 = vadd.f32 %v1954, %v2005
    %v2007 = vpop.f32.mrb[0].mxu0
    %v2008 = vpop.f32.mrb[0].mxu0
    %v2009 = vpop.f32.mrb[0].mxu0
    %2010 = vdwg.mxu0
    %v2011 = vmax.f32 %v2006, 0.0
    %v2012 = vmul.f32 %v2011, %v2011
    %v2013 = vmin.f32 %v2012, 10.0
    %v2014 = vadd.f32 %v1940, %v2013
    %s2015 = scalar_lea.vmem [#allocation3], 400
    %v2016 = vld [vmem:[%s2015] sm:$0xf]
    %v2017 = vld [vmem:[%s2015 + $0x4] sm:$0xf]
    %v2018 = vld [vmem:[%s2015 + $0x8] sm:$0xf]
    %v2019 = vld [vmem:[%s2015 + $0xc] sm:$0xf]
    %s2020 = sadd.s32 %s169, 25
    %s2021 = scalar_lea.vmem %s4, %s2020
    %v2022 = vld [vmem:[%s2021] sm:$0x1]
    %v2023 = vpack.c.bf16 %v2014, %v2014
    %v2025 = vlaneseq
    %v2026 = vshrl.u32 %v2025, 7
    %v2027 = vsub.s32 0, %v2026
    %v2028 = vrot.slane %v2022, %v2027
    %v2034 = vunpack.c.l.b16 %v2016
    %v2035 = vunpack.c.l.b16 %v2017
    %v2036 = vunpack.c.l.b16 %v2018
    %v2037 = vunpack.c.l.b16 %v2019
    %v2038 = vpack.c.b16 %v2035, %v2034
    %v2039 = vpack.c.b16 %v2037, %v2036
    %v2043 = vsel %vm191, %v2023, 0
    %2045 = vmatprep.subr.bf16.mxu0 0
    %2046 = vmatpush1.bf16.msra.mxu0 %v2038
    %2047 = vmatprep.subr.bf16.mxu0 0
    %2048 = vmatpush1.bf16.msra.mxu0 %v2039
    %2049 = vmatprep.subr.bf16.mxu0 0
    %2050 = vmatpush1.bf16.msra.mxu0 0
    %2051 = vmatprep.subr.bf16.mxu0 0
    %2052 = vmatpush1.bf16.msra.mxu0 0
    %2053 = vmatprep.subr.bf16.mxu0 0
    %2054 = vmatpush1.bf16.msra.mxu0 0
    %2055 = vmatprep.subr.bf16.mxu0 0
    %2056 = vmatpush1.bf16.msra.mxu0 0
    %2057 = vmatprep.subr.bf16.mxu0 0
    %2058 = vmatpush1.bf16.msra.mxu0 0
    %2059 = vmatprep.subr.bf16.mxu0 0
    %2060 = vmatpush1.bf16.msra.mxu0 0
    %2061 = vmatprep.subr.bf16.mxu0 0
    %2062 = vmatpush1.bf16.msra.mxu0 0
    %2063 = vmatprep.subr.bf16.mxu0 0
    %2064 = vmatpush1.bf16.msra.mxu0 0
    %2065 = vmatprep.subr.bf16.mxu0 0
    %2066 = vmatpush1.bf16.msra.mxu0 0
    %2067 = vmatprep.subr.bf16.mxu0 0
    %2068 = vmatpush1.bf16.msra.mxu0 0
    %2069 = vmatprep.subr.bf16.mxu0 0
    %2070 = vmatpush1.bf16.msra.mxu0 0
    %2071 = vmatprep.subr.bf16.mxu0 0
    %2072 = vmatpush1.bf16.msra.mxu0 0
    %2073 = vmatprep.subr.bf16.mxu0 0
    %2074 = vmatpush1.bf16.msra.mxu0 0
    %2075 = vmatprep.subr.bf16.mxu0 0
    %2076 = vmatpush1.bf16.msra.mxu0 0
    %2077 = vmatprep.mubr.bf16.mxu0 0
    %2078 = vmatmul.mubr.bf16.gmra.mrb[0].mxu0 %v2043
    %v2079 = vpop.f32.mrb[0].mxu0
    %v2080 = vadd.f32 %v2028, %v2079
    %v2081 = vpop.f32.mrb[0].mxu0
    %v2082 = vpop.f32.mrb[0].mxu0
    %v2083 = vpop.f32.mrb[0].mxu0
    %2084 = vdwg.mxu0
    %v2085 = vmax.f32 %v2080, 0.0
    %v2086 = vmul.f32 %v2085, %v2085
    %v2087 = vmin.f32 %v2086, 10.0
    %v2088 = vadd.f32 %v2014, %v2087
    %s2089 = scalar_lea.vmem [#allocation3], 416
    %v2090 = vld [vmem:[%s2089] sm:$0xf]
    %v2091 = vld [vmem:[%s2089 + $0x4] sm:$0xf]
    %v2092 = vld [vmem:[%s2089 + $0x8] sm:$0xf]
    %v2093 = vld [vmem:[%s2089 + $0xc] sm:$0xf]
    %s2094 = sadd.s32 %s169, 26
    %s2095 = scalar_lea.vmem %s4, %s2094
    %v2096 = vld [vmem:[%s2095] sm:$0x1]
    %v2097 = vpack.c.bf16 %v2088, %v2088
    %v2099 = vlaneseq
    %v2100 = vshrl.u32 %v2099, 7
    %v2101 = vsub.s32 0, %v2100
    %v2102 = vrot.slane %v2096, %v2101
    %v2108 = vunpack.c.l.b16 %v2090
    %v2109 = vunpack.c.l.b16 %v2091
    %v2110 = vunpack.c.l.b16 %v2092
    %v2111 = vunpack.c.l.b16 %v2093
    %v2112 = vpack.c.b16 %v2109, %v2108
    %v2113 = vpack.c.b16 %v2111, %v2110
    %v2117 = vsel %vm191, %v2097, 0
    %2119 = vmatprep.subr.bf16.mxu0 0
    %2120 = vmatpush1.bf16.msra.mxu0 %v2112
    %2121 = vmatprep.subr.bf16.mxu0 0
    %2122 = vmatpush1.bf16.msra.mxu0 %v2113
    %2123 = vmatprep.subr.bf16.mxu0 0
    %2124 = vmatpush1.bf16.msra.mxu0 0
    %2125 = vmatprep.subr.bf16.mxu0 0
    %2126 = vmatpush1.bf16.msra.mxu0 0
    %2127 = vmatprep.subr.bf16.mxu0 0
    %2128 = vmatpush1.bf16.msra.mxu0 0
    %2129 = vmatprep.subr.bf16.mxu0 0
    %2130 = vmatpush1.bf16.msra.mxu0 0
    %2131 = vmatprep.subr.bf16.mxu0 0
    %2132 = vmatpush1.bf16.msra.mxu0 0
    %2133 = vmatprep.subr.bf16.mxu0 0
    %2134 = vmatpush1.bf16.msra.mxu0 0
    %2135 = vmatprep.subr.bf16.mxu0 0
    %2136 = vmatpush1.bf16.msra.mxu0 0
    %2137 = vmatprep.subr.bf16.mxu0 0
    %2138 = vmatpush1.bf16.msra.mxu0 0
    %2139 = vmatprep.subr.bf16.mxu0 0
    %2140 = vmatpush1.bf16.msra.mxu0 0
    %2141 = vmatprep.subr.bf16.mxu0 0
    %2142 = vmatpush1.bf16.msra.mxu0 0
    %2143 = vmatprep.subr.bf16.mxu0 0
    %2144 = vmatpush1.bf16.msra.mxu0 0
    %2145 = vmatprep.subr.bf16.mxu0 0
    %2146 = vmatpush1.bf16.msra.mxu0 0
    %2147 = vmatprep.subr.bf16.mxu0 0
    %2148 = vmatpush1.bf16.msra.mxu0 0
    %2149 = vmatprep.subr.bf16.mxu0 0
    %2150 = vmatpush1.bf16.msra.mxu0 0
    %2151 = vmatprep.mubr.bf16.mxu0 0
    %2152 = vmatmul.mubr.bf16.gmra.mrb[0].mxu0 %v2117
    %v2153 = vpop.f32.mrb[0].mxu0
    %v2154 = vadd.f32 %v2102, %v2153
    %v2155 = vpop.f32.mrb[0].mxu0
    %v2156 = vpop.f32.mrb[0].mxu0
    %v2157 = vpop.f32.mrb[0].mxu0
    %2158 = vdwg.mxu0
    %v2159 = vmax.f32 %v2154, 0.0
    %v2160 = vmul.f32 %v2159, %v2159
    %v2161 = vmin.f32 %v2160, 10.0
    %v2162 = vadd.f32 %v2088, %v2161
    %s2163 = scalar_lea.vmem [#allocation3], 432
    %v2164 = vld [vmem:[%s2163] sm:$0xf]
    %v2165 = vld [vmem:[%s2163 + $0x4] sm:$0xf]
    %v2166 = vld [vmem:[%s2163 + $0x8] sm:$0xf]
    %v2167 = vld [vmem:[%s2163 + $0xc] sm:$0xf]
    %s2168 = sadd.s32 %s169, 27
    %s2169 = scalar_lea.vmem %s4, %s2168
    %v2170 = vld [vmem:[%s2169] sm:$0x1]
    %v2171 = vpack.c.bf16 %v2162, %v2162
    %v2173 = vlaneseq
    %v2174 = vshrl.u32 %v2173, 7
    %v2175 = vsub.s32 0, %v2174
    %v2176 = vrot.slane %v2170, %v2175
    %v2182 = vunpack.c.l.b16 %v2164
    %v2183 = vunpack.c.l.b16 %v2165
    %v2184 = vunpack.c.l.b16 %v2166
    %v2185 = vunpack.c.l.b16 %v2167
    %v2186 = vpack.c.b16 %v2183, %v2182
    %v2187 = vpack.c.b16 %v2185, %v2184
    %v2191 = vsel %vm191, %v2171, 0
    %2193 = vmatprep.subr.bf16.mxu0 0
    %2194 = vmatpush1.bf16.msra.mxu0 %v2186
    %2195 = vmatprep.subr.bf16.mxu0 0
    %2196 = vmatpush1.bf16.msra.mxu0 %v2187
    %2197 = vmatprep.subr.bf16.mxu0 0
    %2198 = vmatpush1.bf16.msra.mxu0 0
    %2199 = vmatprep.subr.bf16.mxu0 0
    %2200 = vmatpush1.bf16.msra.mxu0 0
    %2201 = vmatprep.subr.bf16.mxu0 0
    %2202 = vmatpush1.bf16.msra.mxu0 0
    %2203 = vmatprep.subr.bf16.mxu0 0
    %2204 = vmatpush1.bf16.msra.mxu0 0
    %2205 = vmatprep.subr.bf16.mxu0 0
    %2206 = vmatpush1.bf16.msra.mxu0 0
    %2207 = vmatprep.subr.bf16.mxu0 0
    %2208 = vmatpush1.bf16.msra.mxu0 0
    %2209 = vmatprep.subr.bf16.mxu0 0
    %2210 = vmatpush1.bf16.msra.mxu0 0
    %2211 = vmatprep.subr.bf16.mxu0 0
    %2212 = vmatpush1.bf16.msra.mxu0 0
    %2213 = vmatprep.subr.bf16.mxu0 0
    %2214 = vmatpush1.bf16.msra.mxu0 0
    %2215 = vmatprep.subr.bf16.mxu0 0
    %2216 = vmatpush1.bf16.msra.mxu0 0
    %2217 = vmatprep.subr.bf16.mxu0 0
    %2218 = vmatpush1.bf16.msra.mxu0 0
    %2219 = vmatprep.subr.bf16.mxu0 0
    %2220 = vmatpush1.bf16.msra.mxu0 0
    %2221 = vmatprep.subr.bf16.mxu0 0
    %2222 = vmatpush1.bf16.msra.mxu0 0
    %2223 = vmatprep.subr.bf16.mxu0 0
    %2224 = vmatpush1.bf16.msra.mxu0 0
    %2225 = vmatprep.mubr.bf16.mxu0 0
    %2226 = vmatmul.mubr.bf16.gmra.mrb[0].mxu0 %v2191
    %v2227 = vpop.f32.mrb[0].mxu0
    %v2228 = vadd.f32 %v2176, %v2227
    %v2229 = vpop.f32.mrb[0].mxu0
    %v2230 = vpop.f32.mrb[0].mxu0
    %v2231 = vpop.f32.mrb[0].mxu0
    %2232 = vdwg.mxu0
    %v2233 = vmax.f32 %v2228, 0.0
    %v2234 = vmul.f32 %v2233, %v2233
    %v2235 = vmin.f32 %v2234, 10.0
    %v2236 = vadd.f32 %v2162, %v2235
    %s2237 = scalar_lea.vmem [#allocation3], 448
    %v2238 = vld [vmem:[%s2237] sm:$0xf]
    %v2239 = vld [vmem:[%s2237 + $0x4] sm:$0xf]
    %v2240 = vld [vmem:[%s2237 + $0x8] sm:$0xf]
    %v2241 = vld [vmem:[%s2237 + $0xc] sm:$0xf]
    %s2242 = sadd.s32 %s169, 28
    %s2243 = scalar_lea.vmem %s4, %s2242
    %v2244 = vld [vmem:[%s2243] sm:$0x1]
    %v2245 = vpack.c.bf16 %v2236, %v2236
    %v2247 = vlaneseq
    %v2248 = vshrl.u32 %v2247, 7
    %v2249 = vsub.s32 0, %v2248
    %v2250 = vrot.slane %v2244, %v2249
    %v2256 = vunpack.c.l.b16 %v2238
    %v2257 = vunpack.c.l.b16 %v2239
    %v2258 = vunpack.c.l.b16 %v2240
    %v2259 = vunpack.c.l.b16 %v2241
    %v2260 = vpack.c.b16 %v2257, %v2256
    %v2261 = vpack.c.b16 %v2259, %v2258
    %v2265 = vsel %vm191, %v2245, 0
    %2267 = vmatprep.subr.bf16.mxu0 0
    %2268 = vmatpush1.bf16.msra.mxu0 %v2260
    %2269 = vmatprep.subr.bf16.mxu0 0
    %2270 = vmatpush1.bf16.msra.mxu0 %v2261
    %2271 = vmatprep.subr.bf16.mxu0 0
    %2272 = vmatpush1.bf16.msra.mxu0 0
    %2273 = vmatprep.subr.bf16.mxu0 0
    %2274 = vmatpush1.bf16.msra.mxu0 0
    %2275 = vmatprep.subr.bf16.mxu0 0
    %2276 = vmatpush1.bf16.msra.mxu0 0
    %2277 = vmatprep.subr.bf16.mxu0 0
    %2278 = vmatpush1.bf16.msra.mxu0 0
    %2279 = vmatprep.subr.bf16.mxu0 0
    %2280 = vmatpush1.bf16.msra.mxu0 0
    %2281 = vmatprep.subr.bf16.mxu0 0
    %2282 = vmatpush1.bf16.msra.mxu0 0
    %2283 = vmatprep.subr.bf16.mxu0 0
    %2284 = vmatpush1.bf16.msra.mxu0 0
    %2285 = vmatprep.subr.bf16.mxu0 0
    %2286 = vmatpush1.bf16.msra.mxu0 0
    %2287 = vmatprep.subr.bf16.mxu0 0
    %2288 = vmatpush1.bf16.msra.mxu0 0
    %2289 = vmatprep.subr.bf16.mxu0 0
    %2290 = vmatpush1.bf16.msra.mxu0 0
    %2291 = vmatprep.subr.bf16.mxu0 0
    %2292 = vmatpush1.bf16.msra.mxu0 0
    %2293 = vmatprep.subr.bf16.mxu0 0
    %2294 = vmatpush1.bf16.msra.mxu0 0
    %2295 = vmatprep.subr.bf16.mxu0 0
    %2296 = vmatpush1.bf16.msra.mxu0 0
    %2297 = vmatprep.subr.bf16.mxu0 0
    %2298 = vmatpush1.bf16.msra.mxu0 0
    %2299 = vmatprep.mubr.bf16.mxu0 0
    %2300 = vmatmul.mubr.bf16.gmra.mrb[0].mxu0 %v2265
    %v2301 = vpop.f32.mrb[0].mxu0
    %v2302 = vadd.f32 %v2250, %v2301
    %v2303 = vpop.f32.mrb[0].mxu0
    %v2304 = vpop.f32.mrb[0].mxu0
    %v2305 = vpop.f32.mrb[0].mxu0
    %2306 = vdwg.mxu0
    %v2307 = vmax.f32 %v2302, 0.0
    %v2308 = vmul.f32 %v2307, %v2307
    %v2309 = vmin.f32 %v2308, 10.0
    %v2310 = vadd.f32 %v2236, %v2309
    %s2311 = scalar_lea.vmem [#allocation3], 464
    %v2312 = vld [vmem:[%s2311] sm:$0xf]
    %v2313 = vld [vmem:[%s2311 + $0x4] sm:$0xf]
    %v2314 = vld [vmem:[%s2311 + $0x8] sm:$0xf]
    %v2315 = vld [vmem:[%s2311 + $0xc] sm:$0xf]
    %s2316 = sadd.s32 %s169, 29
    %s2317 = scalar_lea.vmem %s4, %s2316
    %v2318 = vld [vmem:[%s2317] sm:$0x1]
    %v2319 = vpack.c.bf16 %v2310, %v2310
    %v2321 = vlaneseq
    %v2322 = vshrl.u32 %v2321, 7
    %v2323 = vsub.s32 0, %v2322
    %v2324 = vrot.slane %v2318, %v2323
    %v2330 = vunpack.c.l.b16 %v2312
    %v2331 = vunpack.c.l.b16 %v2313
    %v2332 = vunpack.c.l.b16 %v2314
    %v2333 = vunpack.c.l.b16 %v2315
    %v2334 = vpack.c.b16 %v2331, %v2330
    %v2335 = vpack.c.b16 %v2333, %v2332
    %v2339 = vsel %vm191, %v2319, 0
    %2341 = vmatprep.subr.bf16.mxu0 0
    %2342 = vmatpush1.bf16.msra.mxu0 %v2334
    %2343 = vmatprep.subr.bf16.mxu0 0
    %2344 = vmatpush1.bf16.msra.mxu0 %v2335
    %2345 = vmatprep.subr.bf16.mxu0 0
    %2346 = vmatpush1.bf16.msra.mxu0 0
    %2347 = vmatprep.subr.bf16.mxu0 0
    %2348 = vmatpush1.bf16.msra.mxu0 0
    %2349 = vmatprep.subr.bf16.mxu0 0
    %2350 = vmatpush1.bf16.msra.mxu0 0
    %2351 = vmatprep.subr.bf16.mxu0 0
    %2352 = vmatpush1.bf16.msra.mxu0 0
    %2353 = vmatprep.subr.bf16.mxu0 0
    %2354 = vmatpush1.bf16.msra.mxu0 0
    %2355 = vmatprep.subr.bf16.mxu0 0
    %2356 = vmatpush1.bf16.msra.mxu0 0
    %2357 = vmatprep.subr.bf16.mxu0 0
    %2358 = vmatpush1.bf16.msra.mxu0 0
    %2359 = vmatprep.subr.bf16.mxu0 0
    %2360 = vmatpush1.bf16.msra.mxu0 0
    %2361 = vmatprep.subr.bf16.mxu0 0
    %2362 = vmatpush1.bf16.msra.mxu0 0
    %2363 = vmatprep.subr.bf16.mxu0 0
    %2364 = vmatpush1.bf16.msra.mxu0 0
    %2365 = vmatprep.subr.bf16.mxu0 0
    %2366 = vmatpush1.bf16.msra.mxu0 0
    %2367 = vmatprep.subr.bf16.mxu0 0
    %2368 = vmatpush1.bf16.msra.mxu0 0
    %2369 = vmatprep.subr.bf16.mxu0 0
    %2370 = vmatpush1.bf16.msra.mxu0 0
    %2371 = vmatprep.subr.bf16.mxu0 0
    %2372 = vmatpush1.bf16.msra.mxu0 0
    %2373 = vmatprep.mubr.bf16.mxu0 0
    %2374 = vmatmul.mubr.bf16.gmra.mrb[0].mxu0 %v2339
    %v2375 = vpop.f32.mrb[0].mxu0
    %v2376 = vadd.f32 %v2324, %v2375
    %v2377 = vpop.f32.mrb[0].mxu0
    %v2378 = vpop.f32.mrb[0].mxu0
    %v2379 = vpop.f32.mrb[0].mxu0
    %2380 = vdwg.mxu0
    %v2381 = vmax.f32 %v2376, 0.0
    %v2382 = vmul.f32 %v2381, %v2381
    %v2383 = vmin.f32 %v2382, 10.0
    %v2384 = vadd.f32 %v2310, %v2383
    %s2385 = scalar_lea.vmem [#allocation3], 480
    %v2386 = vld [vmem:[%s2385] sm:$0xf]
    %v2387 = vld [vmem:[%s2385 + $0x4] sm:$0xf]
    %v2388 = vld [vmem:[%s2385 + $0x8] sm:$0xf]
    %v2389 = vld [vmem:[%s2385 + $0xc] sm:$0xf]
    %s2390 = sadd.s32 %s169, 30
    %s2391 = scalar_lea.vmem %s4, %s2390
    %v2392 = vld [vmem:[%s2391] sm:$0x1]
    %v2393 = vpack.c.bf16 %v2384, %v2384
    %v2395 = vlaneseq
    %v2396 = vshrl.u32 %v2395, 7
    %v2397 = vsub.s32 0, %v2396
    %v2398 = vrot.slane %v2392, %v2397
    %v2404 = vunpack.c.l.b16 %v2386
    %v2405 = vunpack.c.l.b16 %v2387
    %v2406 = vunpack.c.l.b16 %v2388
    %v2407 = vunpack.c.l.b16 %v2389
    %v2408 = vpack.c.b16 %v2405, %v2404
    %v2409 = vpack.c.b16 %v2407, %v2406
    %v2413 = vsel %vm191, %v2393, 0
    %2415 = vmatprep.subr.bf16.mxu0 0
    %2416 = vmatpush1.bf16.msra.mxu0 %v2408
    %2417 = vmatprep.subr.bf16.mxu0 0
    %2418 = vmatpush1.bf16.msra.mxu0 %v2409
    %2419 = vmatprep.subr.bf16.mxu0 0
    %2420 = vmatpush1.bf16.msra.mxu0 0
    %2421 = vmatprep.subr.bf16.mxu0 0
    %2422 = vmatpush1.bf16.msra.mxu0 0
    %2423 = vmatprep.subr.bf16.mxu0 0
    %2424 = vmatpush1.bf16.msra.mxu0 0
    %2425 = vmatprep.subr.bf16.mxu0 0
    %2426 = vmatpush1.bf16.msra.mxu0 0
    %2427 = vmatprep.subr.bf16.mxu0 0
    %2428 = vmatpush1.bf16.msra.mxu0 0
    %2429 = vmatprep.subr.bf16.mxu0 0
    %2430 = vmatpush1.bf16.msra.mxu0 0
    %2431 = vmatprep.subr.bf16.mxu0 0
    %2432 = vmatpush1.bf16.msra.mxu0 0
    %2433 = vmatprep.subr.bf16.mxu0 0
    %2434 = vmatpush1.bf16.msra.mxu0 0
    %2435 = vmatprep.subr.bf16.mxu0 0
    %2436 = vmatpush1.bf16.msra.mxu0 0
    %2437 = vmatprep.subr.bf16.mxu0 0
    %2438 = vmatpush1.bf16.msra.mxu0 0
    %2439 = vmatprep.subr.bf16.mxu0 0
    %2440 = vmatpush1.bf16.msra.mxu0 0
    %2441 = vmatprep.subr.bf16.mxu0 0
    %2442 = vmatpush1.bf16.msra.mxu0 0
    %2443 = vmatprep.subr.bf16.mxu0 0
    %2444 = vmatpush1.bf16.msra.mxu0 0
    %2445 = vmatprep.subr.bf16.mxu0 0
    %2446 = vmatpush1.bf16.msra.mxu0 0
    %2447 = vmatprep.mubr.bf16.mxu0 0
    %2448 = vmatmul.mubr.bf16.gmra.mrb[0].mxu0 %v2413
    %v2449 = vpop.f32.mrb[0].mxu0
    %v2450 = vadd.f32 %v2398, %v2449
    %v2451 = vpop.f32.mrb[0].mxu0
    %v2452 = vpop.f32.mrb[0].mxu0
    %v2453 = vpop.f32.mrb[0].mxu0
    %2454 = vdwg.mxu0
    %v2455 = vmax.f32 %v2450, 0.0
    %v2456 = vmul.f32 %v2455, %v2455
    %v2457 = vmin.f32 %v2456, 10.0
    %v2458 = vadd.f32 %v2384, %v2457
    %2459 = vst.msk [vmem:[#allocation2] sm:$0xff] %vm191, %v2458
    // Predicated region
    $region38: #{tpu_custom_call.1} parent=1 // pred_check
      %p2460 = pneg %p42
    $region39: #{tpu_custom_call.1} parent=1 // pred_check_branch
      %2462 = sbr.rel (%p2460) target = $region41
    $region40: #{tpu_custom_call.1} parent=1 // pred_region
      %v2463 = vld [vmem:[%s5] sm:$0xf]
      %v2464 = vld [vmem:[%s5 + $0x4] sm:$0xf]
      %v2465 = vld [vmem:[%s5 + $0x8] sm:$0xf]
      %v2466 = vld [vmem:[%s5 + $0xc] sm:$0xf]
      %v2467 = vpack.c.bf16 %v2458, %v2458
      %v2468 = vld [vmem:[%s6] sm:$0x1]
      %v2470 = vlaneseq
      %v2471 = vshrl.u32 %v2470, 7
      %v2472 = vsub.s32 0, %v2471
      %v2473 = vrot.slane %v2468, %v2472
      %v2479 = vunpack.c.l.b16 %v2463
      %v2480 = vunpack.c.l.b16 %v2464
      %v2481 = vunpack.c.l.b16 %v2465
      %v2482 = vunpack.c.l.b16 %v2466
      %v2483 = vpack.c.b16 %v2480, %v2479
      %v2484 = vpack.c.b16 %v2482, %v2481
      %v2488 = vsel %vm191, %v2467, 0
      %2490 = vmatprep.subr.bf16.mxu0 0
      %2491 = vmatpush1.bf16.msra.mxu0 %v2483
      %2492 = vmatprep.subr.bf16.mxu0 0
      %2493 = vmatpush1.bf16.msra.mxu0 %v2484
      %2494 = vmatprep.subr.bf16.mxu0 0
      %2495 = vmatpush1.bf16.msra.mxu0 0
      %2496 = vmatprep.subr.bf16.mxu0 0
      %2497 = vmatpush1.bf16.msra.mxu0 0
      %2498 = vmatprep.subr.bf16.mxu0 0
      %2499 = vmatpush1.bf16.msra.mxu0 0
      %2500 = vmatprep.subr.bf16.mxu0 0
      %2501 = vmatpush1.bf16.msra.mxu0 0
      %2502 = vmatprep.subr.bf16.mxu0 0
      %2503 = vmatpush1.bf16.msra.mxu0 0
      %2504 = vmatprep.subr.bf16.mxu0 0
      %2505 = vmatpush1.bf16.msra.mxu0 0
      %2506 = vmatprep.subr.bf16.mxu0 0
      %2507 = vmatpush1.bf16.msra.mxu0 0
      %2508 = vmatprep.subr.bf16.mxu0 0
      %2509 = vmatpush1.bf16.msra.mxu0 0
      %2510 = vmatprep.subr.bf16.mxu0 0
      %2511 = vmatpush1.bf16.msra.mxu0 0
      %2512 = vmatprep.subr.bf16.mxu0 0
      %2513 = vmatpush1.bf16.msra.mxu0 0
      %2514 = vmatprep.subr.bf16.mxu0 0
      %2515 = vmatpush1.bf16.msra.mxu0 0
      %2516 = vmatprep.subr.bf16.mxu0 0
      %2517 = vmatpush1.bf16.msra.mxu0 0
      %2518 = vmatprep.subr.bf16.mxu0 0
      %2519 = vmatpush1.bf16.msra.mxu0 0
      %2520 = vmatprep.subr.bf16.mxu0 0
      %2521 = vmatpush1.bf16.msra.mxu0 0
      %2522 = vmatprep.mubr.bf16.mxu0 0
      %2523 = vmatmul.mubr.bf16.gmra.mrb[0].mxu0 %v2488
      %v2524 = vpop.f32.mrb[0].mxu0
      %v2525 = vadd.f32 %v2473, %v2524
      %v2526 = vpop.f32.mrb[0].mxu0
      %v2527 = vpop.f32.mrb[0].mxu0
      %v2528 = vpop.f32.mrb[0].mxu0
      %2529 = vdwg.mxu0
      %2530 = vst [vmem:[#allocation6] sm:$0xff] %v2525
    $region41: #{tpu_custom_call.1} parent=1 // pred_fallthru
      _
    // Predicated region
    $region42: #{tpu_custom_call.1} parent=1 // pred_check
      _
    $region43: #{tpu_custom_call.1} parent=1 // pred_check_branch
      %2532 = sbr.rel (0) target = $region45
    $region44: #{tpu_custom_call.1} parent=1 // pred_region
      %s2534 = ssub.s32 128, 128
      %2535 = vsyncadd [#allocation5], %s2534
      %s2537 = sshll.u32 [#allocation6], 4
      %s2538 = int_to_ptr.vmem [resolvable:$true] %s2537
      %2540 = dma.vmem_to_hbm [thread:$0]  %s2538, 128, %s7, [#allocation5]
    $region45: #{tpu_custom_call.1} parent=1 // pred_fallthru
      _
    // Predicated region
    $region46: #{tpu_custom_call.1} parent=1 // pred_check
      _
    $region47: #{tpu_custom_call.1} parent=1 // pred_check_branch
      %2542 = sbr.rel (0) target = $region49
    $region48: #{tpu_custom_call.1} parent=1 // pred_region
      %2543 = dma.done [#allocation5], 128
    $region49: #{tpu_custom_call.1} parent=1 // pred_fallthru
      _
    %2544 = vsyncpa [#allocation4], 1
    %2545 = vsyncpa [#allocation5], 1

</llo_original>
